<compile_context>
chip_gen: v6e
topology: v6e:2x2x1
jax: 0.10.0
libtpu: 0.0.40
codegen_flags: <defaults>
</compile_context>

<pallas_src>
import functools

import jax
import jax.numpy as jnp
from jax.experimental import pallas as pl
from jax.experimental.pallas import tpu as pltpu

IN_DIM = 2048
OUT_DIM = 1198          # doubles as the number of text classes
N_SELECT = 108
MARGIN = 0.2
EPS = 1e-8
TK = 512                # reduction-axis tile (v5e-friendly, 4 grid steps)


def _enhanced_loss_kernel(img_ref, w_ref, b_ref, txt_ref, tgt_ref,
                          iw_ref, tw_ref, out_ref, acc_ref,
                          *, margin, n_rows):
    k = pl.program_id(0)

    # ---- projection: accumulate (S_pad, tk) @ (C, tk)^T into f32 scratch ----
    @pl.when(k == 0)
    def _init():
        acc_ref[...] = jnp.zeros_like(acc_ref)

    acc_ref[...] += jax.lax.dot_general(
        img_ref[...], w_ref[...],                       # bf16 x bf16
        (((1,), (1,)), ((), ())),
        preferred_element_type=jnp.float32)             # f32 accumulation

    # ---- finalize on the last K-step ----------------------------------------
    @pl.when(k == pl.num_programs(0) - 1)
    def _finalize():
        mapped = acc_ref[...] + b_ref[...]              # (S_pad, C) f32
        txt = txt_ref[...]                              # (M, C) f32
        tgt = tgt_ref[...]                              # (M, 1) i32

        S = mapped.shape[0]
        M = txt.shape[0]
        K = min(n_rows, M)                              # len(positive_pairs_loss)

        # cosine similarity: row-normalize with EUP rsqrt-style reciprocals
        # (no rank-1 MXU outer product, no f32 divides)
        inv_img = pl.reciprocal(
            jnp.maximum(jnp.sqrt(jnp.sum(mapped * mapped, axis=-1, keepdims=True)),
                        EPS), approx=True)              # (S, 1)
        inv_txt = pl.reciprocal(
            jnp.maximum(jnp.sqrt(jnp.sum(txt * txt, axis=-1, keepdims=True)),
                        EPS), approx=True)              # (M, 1)
        txt_n = txt * inv_txt                           # (M, C) column-normalized rows
        dots = jax.lax.dot_general(mapped, txt_n, (((1,), (1,)), ((), ())),
                                   preferred_element_type=jnp.float32)   # (S, M)
        sim = dots * inv_img                            # (S, M) cosine similarity

        row_ids = jax.lax.broadcasted_iota(jnp.int32, (S, M), 0)
        col_ids = jax.lax.broadcasted_iota(jnp.int32, (S, M), 1)
        diag = jnp.sum(jnp.where(row_ids == col_ids, sim, 0.0),
                       axis=1, keepdims=True)           # (S, 1)
        pos = 1.0 - diag
        neg = jnp.sum(jnp.maximum(sim - margin, 0.0),
                      axis=1, keepdims=True) - margin   # (S, 1)
        row_sel = jax.lax.broadcasted_iota(jnp.int32, (S, 1), 0) < K
        image_loss = jnp.sum(jnp.where(row_sel, pos + neg, 0.0)) * (1.0 / K)

        # cross entropy on text logits (kept in f32)
        mx = jnp.max(txt, axis=-1, keepdims=True)
        lse = jnp.log(jnp.sum(jnp.exp(txt - mx), axis=-1, keepdims=True)) + mx
        cls_ids = jax.lax.broadcasted_iota(jnp.int32, txt.shape, 1)
        tgt_logit = jnp.sum(jnp.where(cls_ids == tgt, txt, 0.0),
                            axis=-1, keepdims=True)
        text_loss = jnp.sum(lse - tgt_logit) * (1.0 / M)

        out_ref[0, 0] = iw_ref[0, 0] * image_loss + tw_ref[0, 0] * text_loss


def enhanced_loss(image_output, text_output, text_target,
                  weight, bias, image_loss_weight, text_loss_weight,
                  perm_key, margin=MARGIN):
    """JAX/Pallas equivalent of EnhancedLoss.forward."""
    # --- glue: flatten + deterministic "randperm" row selection ----------
    img_flat = image_output.reshape(-1, IN_DIM)
    n = img_flat.shape[0]
    n_sel = min(N_SELECT, n)
    sel_idx = jax.random.permutation(perm_key, n)[:n_sel]
    # TODO(synk): the row gather could be folded into the kernel via
    # PrefetchScalarGridSpec + Element BlockSpec; kept in XLA for simplicity.
    img_sel = img_flat[sel_idx].astype(jnp.bfloat16)    # (n_sel, 2048) bf16

    # zero-pad selected rows to a multiple of 8 sublanes (masked in-kernel)
    s_pad = max(8, ((n_sel + 7) // 8) * 8)
    if s_pad != n_sel:
        img_sel = jnp.pad(img_sel, ((0, s_pad - n_sel), (0, 0)))

    w_bf16 = weight.astype(jnp.bfloat16)                # (1198, 2048), NOT transposed
    b_2d = bias.reshape(1, OUT_DIM).astype(jnp.float32)
    txt = text_output.astype(jnp.float32)
    tgt_2d = text_target.astype(jnp.int32).reshape(-1, 1)
    iw = jnp.asarray(image_loss_weight, jnp.float32).reshape(1, 1)
    tw = jnp.asarray(text_loss_weight, jnp.float32).reshape(1, 1)
    m = txt.shape[0]

    kernel = functools.partial(_enhanced_loss_kernel, margin=margin, n_rows=n_sel)

    out = pl.pallas_call(
        kernel,
        out_shape=jax.ShapeDtypeStruct((1, 1), jnp.float32),
        grid=(IN_DIM // TK,),
        in_specs=[
            pl.BlockSpec((s_pad, TK), lambda k: (0, k)),                 # img rows (bf16)
            pl.BlockSpec((OUT_DIM, TK), lambda k: (0, k)),               # weight  (bf16)
            pl.BlockSpec((1, OUT_DIM), lambda k: (0, 0)),                # bias
            pl.BlockSpec((m, OUT_DIM), lambda k: (0, 0)),                # text logits
            pl.BlockSpec((m, 1), lambda k: (0, 0)),                      # targets
            pl.BlockSpec((1, 1), lambda k: (0, 0),
                         memory_space=pltpu.MemorySpace.SMEM),           # image weight
            pl.BlockSpec((1, 1), lambda k: (0, 0),
                         memory_space=pltpu.MemorySpace.SMEM),           # text weight
        ],
        out_specs=pl.BlockSpec((1, 1), lambda k: (0, 0),
                               memory_space=pltpu.MemorySpace.SMEM),
        scratch_shapes=[pltpu.VMEM((s_pad, OUT_DIM), jnp.float32)],      # f32 accumulator
        compiler_params=pltpu.CompilerParams(
            dimension_semantics=("arbitrary",)),
    )(img_sel, w_bf16, b_2d, txt, tgt_2d, iw, tw)
    return out[0, 0]


def _reference_loss(image_output, text_output, text_target,
                    weight, bias, iw, tw, perm_key, margin=MARGIN):
    """Pure-JAX reference mirroring the PyTorch forward (same permutation)."""
    img_flat = image_output.reshape(-1, IN_DIM)
    n_sel = min(N_SELECT, img_flat.shape[0])
    sel_idx = jax.random.permutation(perm_key, img_flat.shape[0])[:n_sel]
    mapped = img_flat[sel_idx] @ weight.T + bias                      # (S, C)
    txt = text_output
    sim = (mapped @ txt.T) / jnp.maximum(
        jnp.linalg.norm(mapped, axis=-1, keepdims=True)
        * jnp.linalg.norm(txt, axis=-1, keepdims=True).T, EPS)
    k = min(mapped.shape[0], txt.shape[0])
    pos = 1.0 - jnp.diagonal(sim)[:k]
    neg = (jnp.sum(jnp.maximum(sim - margin, 0.0), axis=1) - margin)[:k]
    image_loss = jnp.mean(pos + neg)
    logits = txt
    lse = jax.scipy.special.logsumexp(logits, axis=-1)
    ce = jnp.mean(lse - jnp.take_along_axis(
        logits, text_target.reshape(-1, 1), axis=1)[:, 0])
    return iw * image_loss + tw * ce


if __name__ == "__main__":
    key = jax.random.PRNGKey(0)
    k_img, k_txt, k_tgt, k_w, k_b, k_perm = jax.random.split(key, 6)

    # small batch sizes; feature dims are fixed by the module (2048 -> 1198)
    image_output = jax.random.normal(k_img, (2, 64, IN_DIM), jnp.float32)  # 128 rows
    text_output = jax.random.normal(k_txt, (16, OUT_DIM), jnp.float32)
    text_target = jax.random.randint(k_tgt, (16,), 0, OUT_DIM, jnp.int32)

    # deterministic parameter init (synthetic, not a checkpoint load)
    weight = jax.random.normal(k_w, (OUT_DIM, IN_DIM), jnp.float32) * (1.0 / IN_DIM ** 0.5)
    bias = jax.random.normal(k_b, (OUT_DIM,), jnp.float32) * 0.01
    image_loss_weight = jnp.float32(0.5)
    text_loss_weight = jnp.float32(0.5)

    loss = enhanced_loss(image_output, text_output, text_target,
                         weight, bias, image_loss_weight, text_loss_weight,
                         k_perm)
    loss = jax.block_until_ready(loss)

    ref = _reference_loss(image_output, text_output, text_target,
                          weight, bias, image_loss_weight, text_loss_weight,
                          k_perm)
    assert jnp.isfinite(loss), "kernel produced non-finite loss"
    assert jnp.allclose(loss, ref, rtol=2e-2, atol=2e-2), (loss, ref)

    print("KERNEL_OK")
</pallas_src>

<mosaic_0001>
module attributes {stable_mosaic.version = 11 : i64} {
  func.func @_enhanced_loss_kernel(%arg0: i32, %arg1: memref<112x512xbf16, #tpu.memory_space<vmem>>, %arg2: memref<1198x512xbf16, #tpu.memory_space<vmem>>, %arg3: memref<1x1198xf32, #tpu.memory_space<vmem>>, %arg4: memref<16x1198xf32, #tpu.memory_space<vmem>>, %arg5: memref<16x1xi32, #tpu.memory_space<vmem>>, %arg6: memref<1x1xf32, #tpu.memory_space<smem>>, %arg7: memref<1x1xf32, #tpu.memory_space<smem>>, %arg8: memref<1x1xf32, #tpu.memory_space<smem>>, %arg9: memref<112x1198xf32, #tpu.memory_space<vmem>>) attributes {dimension_semantics = [#tpu.dimension_semantics<arbitrary>], iteration_bounds = array<i64: 4>, scalar_prefetch = 0 : i64, scratch_operands = 1 : i64, tpu.core_type = #tpu.core_type<tc>, window_params = [{transform_indices = @transform_0, window_bounds = array<i64: 112, 512>}, {transform_indices = @transform_1, window_bounds = array<i64: 1198, 512>}, {pipeline_mode = #tpu.pipeline_mode<synchronous>, transform_indices = @transform_2, window_bounds = array<i64: 1, 1198>}, {pipeline_mode = #tpu.pipeline_mode<synchronous>, transform_indices = @transform_3, window_bounds = array<i64: 16, 1198>}, {pipeline_mode = #tpu.pipeline_mode<synchronous>, transform_indices = @transform_4, window_bounds = array<i64: 16, 1>}, {transform_indices = @transform_5, window_bounds = array<i64: 1, 1>}, {transform_indices = @transform_6, window_bounds = array<i64: 1, 1>}, {transform_indices = @transform_7, window_bounds = array<i64: 1, 1>}]} {
    %c0_i32 = arith.constant 0 : i32
    %0 = arith.cmpi eq, %arg0, %c0_i32 : i32
    %1 = arith.extui %0 : i1 to i32
    %c0_i32_0 = arith.constant 0 : i32
    %2 = arith.cmpi ne, %1, %c0_i32_0 : i32
    scf.if %2 {
      %cst_9 = arith.constant 0.000000e+00 : f32
      %12 = vector.broadcast %cst_9 : f32 to vector<112x1198xf32>
      %c0_10 = arith.constant 0 : index
      %c0_11 = arith.constant 0 : index
      %13 = vector.load %arg9[%c0_10, %c0_11] : memref<112x1198xf32, #tpu.memory_space<vmem>>, vector<112x1198xf32>
      tpu.vector_store %arg9[%c0_10, %c0_11], %12 {strides = array<i32>} : memref<112x1198xf32, #tpu.memory_space<vmem>>, vector<112x1198xf32>,
    } else {
    }
    %c0 = arith.constant 0 : index
    %c0_1 = arith.constant 0 : index
    %3 = vector.load %arg9[%c0, %c0_1] : memref<112x1198xf32, #tpu.memory_space<vmem>>, vector<112x1198xf32>
    %c0_2 = arith.constant 0 : index
    %c0_3 = arith.constant 0 : index
    %4 = vector.load %arg1[%c0_2, %c0_3] : memref<112x512xbf16, #tpu.memory_space<vmem>>, vector<112x512xbf16>
    %c0_4 = arith.constant 0 : index
    %c0_5 = arith.constant 0 : index
    %5 = vector.load %arg2[%c0_4, %c0_5] : memref<1198x512xbf16, #tpu.memory_space<vmem>>, vector<1198x512xbf16>
    %cst = arith.constant dense<0.000000e+00> : vector<112x1198xf32>
    %6 = tpu.matmul %4, %5, %cst {dimension_numbers = #tpu.dot_dimension_numbers<[1], [1], [0], [0], [0, 0, 1, 0], [], []>} : vector<112x512xbf16>, vector<1198x512xbf16>, vector<112x1198xf32> -> vector<112x1198xf32>
    %7 = arith.addf %3, %6 : vector<112x1198xf32>
    %c0_6 = arith.constant 0 : index
    %c0_7 = arith.constant 0 : index
    %8 = vector.load %arg9[%c0_6, %c0_7] : memref<112x1198xf32, #tpu.memory_space<vmem>>, vector<112x1198xf32>
    tpu.vector_store %arg9[%c0_6, %c0_7], %7 {strides = array<i32>} : memref<112x1198xf32, #tpu.memory_space<vmem>>, vector<112x1198xf32>,
    %c3_i32 = arith.constant 3 : i32
    %9 = arith.cmpi eq, %arg0, %c3_i32 : i32
    %10 = arith.extui %9 : i1 to i32
    %c0_i32_8 = arith.constant 0 : i32
    %11 = arith.cmpi ne, %10, %c0_i32_8 : i32
    scf.if %11 {
      %c0_9 = arith.constant 0 : index
      %c0_10 = arith.constant 0 : index
      %12 = vector.load %arg9[%c0_9, %c0_10] : memref<112x1198xf32, #tpu.memory_space<vmem>>, vector<112x1198xf32>
      %c0_11 = arith.constant 0 : index
      %c0_12 = arith.constant 0 : index
      %13 = vector.load %arg3[%c0_11, %c0_12] : memref<1x1198xf32, #tpu.memory_space<vmem>>, vector<1x1198xf32>
      %14 = vector.broadcast %13 : vector<1x1198xf32> to vector<112x1198xf32>
      %15 = arith.addf %12, %14 : vector<112x1198xf32>
      %c0_13 = arith.constant 0 : index
      %c0_14 = arith.constant 0 : index
      %16 = vector.load %arg4[%c0_13, %c0_14] : memref<16x1198xf32, #tpu.memory_space<vmem>>, vector<16x1198xf32>
      %c0_15 = arith.constant 0 : index
      %c0_16 = arith.constant 0 : index
      %17 = vector.load %arg5[%c0_15, %c0_16] : memref<16x1xi32, #tpu.memory_space<vmem>>, vector<16x1xi32>
      %18 = arith.mulf %15, %15 : vector<112x1198xf32>
      %cst_17 = arith.constant dense<0.000000e+00> : vector<112xf32>
      %19 = vector.multi_reduction <add>, %18, %cst_17 [1] : vector<112x1198xf32> to vector<112xf32>
      %20 = vector.shape_cast %19 : vector<112xf32> to vector<112x1xf32>
      %21 = math.sqrt %20 : vector<112x1xf32>
      %cst_18 = arith.constant 9.99999993E-9 : f32
      %22 = vector.broadcast %cst_18 : f32 to vector<112x1xf32>
      %23 = arith.maximumf %21, %22 : vector<112x1xf32>
      %24 = tpu.reciprocal %23 {approx = true} : vector<112x1xf32> -> vector<112x1xf32>
      %25 = arith.mulf %16, %16 : vector<16x1198xf32>
      %cst_19 = arith.constant dense<0.000000e+00> : vector<16xf32>
      %26 = vector.multi_reduction <add>, %25, %cst_19 [1] : vector<16x1198xf32> to vector<16xf32>
      %27 = vector.shape_cast %26 : vector<16xf32> to vector<16x1xf32>
      %28 = math.sqrt %27 : vector<16x1xf32>
      %cst_20 = arith.constant 9.99999993E-9 : f32
      %29 = vector.broadcast %cst_20 : f32 to vector<16x1xf32>
      %30 = arith.maximumf %28, %29 : vector<16x1xf32>
      %31 = tpu.reciprocal %30 {approx = true} : vector<16x1xf32> -> vector<16x1xf32>
      %32 = vector.broadcast %31 : vector<16x1xf32> to vector<16x1198xf32>
      %33 = arith.mulf %16, %32 : vector<16x1198xf32>
      %cst_21 = arith.constant dense<0.000000e+00> : vector<112x16xf32>
      %34 = tpu.matmul %15, %33, %cst_21 {dimension_numbers = #tpu.dot_dimension_numbers<[1], [1], [0], [0], [0, 0, 1, 0], [], []>} : vector<112x1198xf32>, vector<16x1198xf32>, vector<112x16xf32> -> vector<112x16xf32>
      %35 = vector.broadcast %24 : vector<112x1xf32> to vector<112x16xf32>
      %36 = arith.mulf %34, %35 : vector<112x16xf32>
      %37 = tpu.iota {dimensions = array<i32: 0>} : vector<112x16xi32>
      %38 = tpu.iota {dimensions = array<i32: 1>} : vector<112x16xi32>
      %39 = arith.cmpi eq, %37, %38 : vector<112x16xi32>
      %cst_22 = arith.constant 0.000000e+00 : f32
      %40 = vector.broadcast %cst_22 : f32 to vector<112x16xf32>
      %41 = arith.select %39, %36, %40 : vector<112x16xi1>, vector<112x16xf32>
      %cst_23 = arith.constant dense<0.000000e+00> : vector<112xf32>
      %42 = vector.multi_reduction <add>, %41, %cst_23 [1] : vector<112x16xf32> to vector<112xf32>
      %43 = vector.shape_cast %42 : vector<112xf32> to vector<112x1xf32>
      %cst_24 = arith.constant 1.000000e+00 : f32
      %44 = vector.broadcast %cst_24 : f32 to vector<112x1xf32>
      %45 = arith.subf %44, %43 : vector<112x1xf32>
      %cst_25 = arith.constant 2.000000e-01 : f32
      %46 = vector.broadcast %cst_25 : f32 to vector<112x16xf32>
      %47 = arith.subf %36, %46 : vector<112x16xf32>
      %cst_26 = arith.constant 0.000000e+00 : f32
      %48 = vector.broadcast %cst_26 : f32 to vector<112x16xf32>
      %49 = arith.maximumf %47, %48 : vector<112x16xf32>
      %cst_27 = arith.constant dense<0.000000e+00> : vector<112xf32>
      %50 = vector.multi_reduction <add>, %49, %cst_27 [1] : vector<112x16xf32> to vector<112xf32>
      %51 = vector.shape_cast %50 : vector<112xf32> to vector<112x1xf32>
      %cst_28 = arith.constant 2.000000e-01 : f32
      %52 = vector.broadcast %cst_28 : f32 to vector<112x1xf32>
      %53 = arith.subf %51, %52 : vector<112x1xf32>
      %54 = tpu.iota {dimensions = array<i32: 0>} : vector<112x1xi32>
      %c16_i32 = arith.constant 16 : i32
      %55 = vector.broadcast %c16_i32 : i32 to vector<112x1xi32>
      %56 = arith.cmpi slt, %54, %55 : vector<112x1xi32>
      %57 = arith.addf %45, %53 : vector<112x1xf32>
      %cst_29 = arith.constant 0.000000e+00 : f32
      %58 = vector.broadcast %cst_29 : f32 to vector<112x1xf32>
      %59 = arith.select %56, %57, %58 : vector<112x1xi1>, vector<112x1xf32>
      %60 = vector.shape_cast %59 : vector<112x1xf32> to vector<1x112x1xf32>
      %cst_30 = arith.constant dense<0.000000e+00> : vector<1xf32>
      %61 = vector.multi_reduction <add>, %60, %cst_30 [1, 2] : vector<1x112x1xf32> to vector<1xf32>
      %62 = vector.shape_cast %61 : vector<1xf32> to vector<1x1x1xf32>
      %63 = vector.extract %62[0, 0, 0] : f32 from vector<1x1x1xf32>
      %cst_31 = arith.constant 6.250000e-02 : f32
      %64 = arith.mulf %63, %cst_31 : f32
      %cst_32 = arith.constant dense<0xFF800000> : vector<16xf32>
      %65 = vector.multi_reduction <maximumf>, %16, %cst_32 [1] : vector<16x1198xf32> to vector<16xf32>
      %66 = vector.shape_cast %65 : vector<16xf32> to vector<16x1xf32>
      %67 = vector.broadcast %66 : vector<16x1xf32> to vector<16x1198xf32>
      %68 = arith.subf %16, %67 : vector<16x1198xf32>
      %69 = math.exp %68 : vector<16x1198xf32>
      %cst_33 = arith.constant dense<0.000000e+00> : vector<16xf32>
      %70 = vector.multi_reduction <add>, %69, %cst_33 [1] : vector<16x1198xf32> to vector<16xf32>
      %71 = vector.shape_cast %70 : vector<16xf32> to vector<16x1xf32>
      %72 = math.log %71 : vector<16x1xf32>
      %73 = arith.addf %72, %66 : vector<16x1xf32>
      %74 = tpu.iota {dimensions = array<i32: 1>} : vector<16x1198xi32>
      %75 = vector.broadcast %17 : vector<16x1xi32> to vector<16x1198xi32>
      %76 = arith.cmpi eq, %74, %75 : vector<16x1198xi32>
      %cst_34 = arith.constant 0.000000e+00 : f32
      %77 = vector.broadcast %cst_34 : f32 to vector<16x1198xf32>
      %78 = arith.select %76, %16, %77 : vector<16x1198xi1>, vector<16x1198xf32>
      %cst_35 = arith.constant dense<0.000000e+00> : vector<16xf32>
      %79 = vector.multi_reduction <add>, %78, %cst_35 [1] : vector<16x1198xf32> to vector<16xf32>
      %80 = vector.shape_cast %79 : vector<16xf32> to vector<16x1xf32>
      %81 = arith.subf %73, %80 : vector<16x1xf32>
      %82 = vector.shape_cast %81 : vector<16x1xf32> to vector<1x16x1xf32>
      %cst_36 = arith.constant dense<0.000000e+00> : vector<1xf32>
      %83 = vector.multi_reduction <add>, %82, %cst_36 [1, 2] : vector<1x16x1xf32> to vector<1xf32>
      %84 = vector.shape_cast %83 : vector<1xf32> to vector<1x1x1xf32>
      %85 = vector.extract %84[0, 0, 0] : f32 from vector<1x1x1xf32>
      %cst_37 = arith.constant 6.250000e-02 : f32
      %86 = arith.mulf %85, %cst_37 : f32
      %c0_38 = arith.constant 0 : index
      %c0_39 = arith.constant 0 : index
      %87 = memref.load %arg6[%c0_38, %c0_39] : memref<1x1xf32, #tpu.memory_space<smem>>
      %88 = arith.mulf %87, %64 : f32
      %c0_40 = arith.constant 0 : index
      %c0_41 = arith.constant 0 : index
      %89 = memref.load %arg7[%c0_40, %c0_41] : memref<1x1xf32, #tpu.memory_space<smem>>
      %90 = arith.mulf %89, %86 : f32
      %91 = arith.addf %88, %90 : f32
      %c0_42 = arith.constant 0 : index
      %c0_43 = arith.constant 0 : index
      %92 = memref.load %arg8[%c0_42, %c0_43] : memref<1x1xf32, #tpu.memory_space<smem>>
      memref.store %91, %arg8[%c0_42, %c0_43] : memref<1x1xf32, #tpu.memory_space<smem>>
    } else {
    }
    return
  }
  func.func @transform_0(%arg0: i32) -> (i32, i32) {
    %c0_i32 = arith.constant 0 : i32
    %c0_i32_0 = arith.constant 0 : i32
    return %c0_i32, %arg0 : i32, i32
  }
  func.func @transform_1(%arg0: i32) -> (i32, i32) {
    %c0_i32 = arith.constant 0 : i32
    %c0_i32_0 = arith.constant 0 : i32
    return %c0_i32, %arg0 : i32, i32
  }
  func.func @transform_2(%arg0: i32) -> (i32, i32) {
    %c0_i32 = arith.constant 0 : i32
    %c0_i32_0 = arith.constant 0 : i32
    %c0_i32_1 = arith.constant 0 : i32
    return %c0_i32, %c0_i32_0 : i32, i32
  }
  func.func @transform_3(%arg0: i32) -> (i32, i32) {
    %c0_i32 = arith.constant 0 : i32
    %c0_i32_0 = arith.constant 0 : i32
    %c0_i32_1 = arith.constant 0 : i32
    return %c0_i32, %c0_i32_0 : i32, i32
  }
  func.func @transform_4(%arg0: i32) -> (i32, i32) {
    %c0_i32 = arith.constant 0 : i32
    %c0_i32_0 = arith.constant 0 : i32
    %c0_i32_1 = arith.constant 0 : i32
    return %c0_i32, %c0_i32_0 : i32, i32
  }
  func.func @transform_5(%arg0: i32) -> (i32, i32) {
    %c0_i32 = arith.constant 0 : i32
    %c0_i32_0 = arith.constant 0 : i32
    %c0_i32_1 = arith.constant 0 : i32
    return %c0_i32, %c0_i32_0 : i32, i32
  }
  func.func @transform_6(%arg0: i32) -> (i32, i32) {
    %c0_i32 = arith.constant 0 : i32
    %c0_i32_0 = arith.constant 0 : i32
    %c0_i32_1 = arith.constant 0 : i32
    return %c0_i32, %c0_i32_0 : i32, i32
  }
  func.func @transform_7(%arg0: i32) -> (i32, i32) {
    %c0_i32 = arith.constant 0 : i32
    %c0_i32_0 = arith.constant 0 : i32
    %c0_i32_1 = arith.constant 0 : i32
    return %c0_i32, %c0_i32_0 : i32, i32
  }
}

</mosaic_0001>

<llo_original>
// kernel: tpu_custom_call.1
$region0: #{tpu_custom_call.1}
  #allocation0 [shape = 'u32[]', space=smem, size = 0x4, offset = 0x4, fixed_abs, tag = 'smem constant byte address 0x4 - core index']
  #allocation1 [shape = 'u32[144,128]{1,0:T(1,128)}', space=vmem, size = 0x12000, scoped, tag = 'internal scratch']
  #allocation2 [shape = 'f32[112,1198]{1,0:T(8,128)}', space=vmem, size = 0x8c000, scoped, tag = 'scratch operand']
  #allocation3 [shape = 'f32[1,1]{1,0:T(1,128)S(6)}', space=smem, size = 0x200, scoped, tag = 'scoped memory for tpu_custom_call.1']
  #allocation4 [shape = 'f32[1,1]{1,0:T(1,128)S(6)}', space=smem, size = 0x200, scoped, tag = 'scoped memory for tpu_custom_call.1']
  %s0 = inlined_call_operand.hbm [shape: bf16[112,2048], index: 0, kind: input, shape index: {}]
  %s1 = inlined_call_operand.hbm [shape: bf16[1198,2048], index: 1, kind: input, shape index: {}]
  %s2 = inlined_call_operand.hbm [shape: f32[1,1198], index: 2, kind: input, shape index: {}]
  %s3 = inlined_call_operand.hbm [shape: f32[16,1198], index: 3, kind: input, shape index: {}]
  %s4 = inlined_call_operand.vmem [shape: s32[16,1], index: 4, kind: input, shape index: {}]
  %s5 = inlined_call_operand.<no memory space> [shape: f32[1,1], index: 5, kind: input, shape index: {}]
  %s6 = inlined_call_operand.<no memory space> [shape: f32[1,1], index: 6, kind: input, shape index: {}]
  %s7 = inlined_call_operand.hbm [shape: f32[1,1], index: 7, kind: output, shape index: {}]
  %s8 = sld [smem:[#allocation0]]
  $region85: #{tpu_custom_call.1} parent=0
    _
  %s10 = ssub.s32 1, %s8
  %s11 = scalar_select 0, %s10, %s8
  %12 = sst [smem:[#allocation3]] %s5
  %13 = sst [smem:[#allocation4]] %s6
  $region1: #{tpu_custom_call.1} parent=0
    #allocation5 [shape = 'u8[229376]{0}', space=vmem, size = 0x38000, scoped, tag = 'input window, operand 0']
    #allocation6 [shape = 's32[2]{0}', space=sflag, size = 0x8, scoped, tag = 'scoped memory for tpu_custom_call.1']
    #allocation7 [shape = 's32[2]{0}', space=sflag, size = 0x8, scoped, tag = 'scoped memory for tpu_custom_call.1']
    #allocation8 [shape = 'u8[2457600]{0}', space=vmem, size = 0x258000, scoped, tag = 'input window, operand 1']
    #allocation9 [shape = 's32[2]{0}', space=sflag, size = 0x8, scoped, tag = 'scoped memory for tpu_custom_call.1']
    #allocation10 [shape = 'u8[5120]{0}', space=vmem, size = 0x1400, scoped, tag = 'input window, operand 2, single buffered']
    #allocation11 [shape = 'u8[81920]{0}', space=vmem, size = 0x14000, scoped, tag = 'input window, operand 3, single buffered']
    #allocation12 [shape = 's32[1]{0}', space=sflag, size = 0x4, scoped, tag = 'scoped memory for tpu_custom_call.1']
    #allocation13 [shape = 'u8[512]{0}', space=smem, size = 0x200, scoped, tag = 'output window, operand 0, single buffered']
    %14 = vsyncpa [#allocation6], 0
    %s15 = scalar_lea.sflag [#allocation6], 1
    %16 = vsyncpa %s15, 0
    %17 = vsyncpa [#allocation9], 0
    %s18 = scalar_lea.sflag [#allocation9], 1
    %19 = vsyncpa %s18, 0
    %20 = vsyncpa [#allocation12], 0
    %21 = vsyncpa [#allocation7], 0
    loop: start=0, step=1, limit=6
    $region2: #{tpu_custom_call.1} parent=1 // loop_pre_header
      _
    $region3: #{tpu_custom_call.1} parent=1 // loop_header
      %s23 = sphi 0, %s27
      %p24 = scmp.ge.s32.totalorder %s23, 6
      %s33 = sphi 0, %s35
      %s36 = sphi 0, %s33
      %s37 = sphi 0, %s36
      %s53 = sphi 0, %s37
      %s59 = sphi 0, %s61
      %s62 = sphi 0, %s59
      %s63 = sphi 0, %s62
      %s79 = sphi 0, %s63
      %s83 = sphi 0, %s83
      %s85 = sphi 0, %s83
      %s86 = sphi 0, %s85
      %s100 = sphi 0, %s86
      %s104 = sphi 0, %s104
      %s106 = sphi 0, %s104
      %s107 = sphi 0, %s106
      %s121 = sphi 0, %s107
      %s125 = sphi 0, %s125
      %s127 = sphi 0, %s125
      %s128 = sphi 0, %s127
      %s142 = sphi 0, %s128
      %s146 = sphi 0, %s146
      %s148 = sphi 0, %s146
      %s149 = sphi 0, %s148
      %s163 = sphi 0, %s149
      %s167 = sphi 0, %s167
      %s169 = sphi 0, %s167
      %s170 = sphi 0, %s169
      %s184 = sphi 0, %s170
      %s188 = sphi 0, %s188
      %s190 = sphi 0, %s188
      %s191 = sphi 0, %s190
      %s205 = sphi 0, %s191
    $region4: #{tpu_custom_call.1} parent=1 // loop_header_branch
      %26 = sbr.rel (%p24) target = $region8
    $region5: #{tpu_custom_call.1} parent=1 // loop_body
      %s28 = ssub.s32 %s23, 1
      %s29 = ssub.s32 %s23, 2
      %s30 = sadd.s32 %s23, 1
      %s31 = ssub.s32 %s23, %s30
      %p32 = scmp.eq.s32.totalorder %s31, 0
      %s34 = sadd.s32 %s33, 1
      %s35 = scalar_select %p32, %s33, %s34
      %p38 = pneg %p32
      %p39 = scmp.eq.s32.totalorder %s23, 3
      %p40 = por %p38, %p39
      %p41 = scmp.ne.s32.totalorder %s33, %s36
      %p42 = scmp.eq.s32.totalorder %s23, 0
      %p43 = por %p41, %p42
      %p44 = scmp.ne.s32.totalorder %s33, %s36
      %p45 = scmp.eq.s32.totalorder %s28, 3
      %p46 = por %p44, %p45
      %p47 = scmp.ne.s32.totalorder %s36, %s37
      %p48 = scmp.eq.s32.totalorder %s28, 0
      %p49 = por %p47, %p48
      %p50 = scmp.ne.s32.totalorder %s36, %s37
      %p51 = scmp.eq.s32.totalorder %s29, 3
      %p52 = por %p50, %p51
      %p54 = scmp.ne.s32.totalorder %s37, %s53
      %p55 = scmp.eq.s32.totalorder %s29, 0
      %p56 = por %p54, %p55
      %s57 = ssub.s32 %s23, %s30
      %p58 = scmp.eq.s32.totalorder %s57, 0
      %s60 = sadd.s32 %s59, 1
      %s61 = scalar_select %p58, %s59, %s60
      %p64 = pneg %p58
      %p65 = scmp.eq.s32.totalorder %s23, 3
      %p66 = por %p64, %p65
      %p67 = scmp.ne.s32.totalorder %s59, %s62
      %p68 = scmp.eq.s32.totalorder %s23, 0
      %p69 = por %p67, %p68
      %p70 = scmp.ne.s32.totalorder %s59, %s62
      %p71 = scmp.eq.s32.totalorder %s28, 3
      %p72 = por %p70, %p71
      %p73 = scmp.ne.s32.totalorder %s62, %s63
      %p74 = scmp.eq.s32.totalorder %s28, 0
      %p75 = por %p73, %p74
      %p76 = scmp.ne.s32.totalorder %s62, %s63
      %p77 = scmp.eq.s32.totalorder %s29, 3
      %p78 = por %p76, %p77
      %p80 = scmp.ne.s32.totalorder %s63, %s79
      %p81 = scmp.eq.s32.totalorder %s29, 0
      %p82 = por %p80, %p81
      %s84 = sadd.s32 %s83, 1
      %p87 = scmp.eq.s32.totalorder %s23, 3
      %p88 = scmp.ne.s32.totalorder %s83, %s85
      %p89 = scmp.eq.s32.totalorder %s23, 0
      %p90 = por %p88, %p89
      %p91 = scmp.ne.s32.totalorder %s83, %s85
      %p92 = scmp.eq.s32.totalorder %s28, 3
      %p93 = por %p91, %p92
      %p94 = scmp.ne.s32.totalorder %s85, %s86
      %p95 = scmp.eq.s32.totalorder %s28, 0
      %p96 = por %p94, %p95
      %p97 = scmp.ne.s32.totalorder %s85, %s86
      %p98 = scmp.eq.s32.totalorder %s29, 3
      %p99 = por %p97, %p98
      %p101 = scmp.ne.s32.totalorder %s86, %s100
      %p102 = scmp.eq.s32.totalorder %s29, 0
      %p103 = por %p101, %p102
      %s105 = sadd.s32 %s104, 1
      %p108 = scmp.eq.s32.totalorder %s23, 3
      %p109 = scmp.ne.s32.totalorder %s104, %s106
      %p110 = scmp.eq.s32.totalorder %s23, 0
      %p111 = por %p109, %p110
      %p112 = scmp.ne.s32.totalorder %s104, %s106
      %p113 = scmp.eq.s32.totalorder %s28, 3
      %p114 = por %p112, %p113
      %p115 = scmp.ne.s32.totalorder %s106, %s107
      %p116 = scmp.eq.s32.totalorder %s28, 0
      %p117 = por %p115, %p116
      %p118 = scmp.ne.s32.totalorder %s106, %s107
      %p119 = scmp.eq.s32.totalorder %s29, 3
      %p120 = por %p118, %p119
      %p122 = scmp.ne.s32.totalorder %s107, %s121
      %p123 = scmp.eq.s32.totalorder %s29, 0
      %p124 = por %p122, %p123
      %s126 = sadd.s32 %s125, 1
      %p129 = scmp.eq.s32.totalorder %s23, 3
      %p130 = scmp.ne.s32.totalorder %s125, %s127
      %p131 = scmp.eq.s32.totalorder %s23, 0
      %p132 = por %p130, %p131
      %p133 = scmp.ne.s32.totalorder %s125, %s127
      %p134 = scmp.eq.s32.totalorder %s28, 3
      %p135 = por %p133, %p134
      %p136 = scmp.ne.s32.totalorder %s127, %s128
      %p137 = scmp.eq.s32.totalorder %s28, 0
      %p138 = por %p136, %p137
      %p139 = scmp.ne.s32.totalorder %s127, %s128
      %p140 = scmp.eq.s32.totalorder %s29, 3
      %p141 = por %p139, %p140
      %p143 = scmp.ne.s32.totalorder %s128, %s142
      %p144 = scmp.eq.s32.totalorder %s29, 0
      %p145 = por %p143, %p144
      %s147 = sadd.s32 %s146, 1
      %p150 = scmp.eq.s32.totalorder %s23, 3
      %p151 = scmp.ne.s32.totalorder %s146, %s148
      %p152 = scmp.eq.s32.totalorder %s23, 0
      %p153 = por %p151, %p152
      %p154 = scmp.ne.s32.totalorder %s146, %s148
      %p155 = scmp.eq.s32.totalorder %s28, 3
      %p156 = por %p154, %p155
      %p157 = scmp.ne.s32.totalorder %s148, %s149
      %p158 = scmp.eq.s32.totalorder %s28, 0
      %p159 = por %p157, %p158
      %p160 = scmp.ne.s32.totalorder %s148, %s149
      %p161 = scmp.eq.s32.totalorder %s29, 3
      %p162 = por %p160, %p161
      %p164 = scmp.ne.s32.totalorder %s149, %s163
      %p165 = scmp.eq.s32.totalorder %s29, 0
      %p166 = por %p164, %p165
      %s168 = sadd.s32 %s167, 1
      %p171 = scmp.eq.s32.totalorder %s23, 3
      %p172 = scmp.ne.s32.totalorder %s167, %s169
      %p173 = scmp.eq.s32.totalorder %s23, 0
      %p174 = por %p172, %p173
      %p175 = scmp.ne.s32.totalorder %s167, %s169
      %p176 = scmp.eq.s32.totalorder %s28, 3
      %p177 = por %p175, %p176
      %p178 = scmp.ne.s32.totalorder %s169, %s170
      %p179 = scmp.eq.s32.totalorder %s28, 0
      %p180 = por %p178, %p179
      %p181 = scmp.ne.s32.totalorder %s169, %s170
      %p182 = scmp.eq.s32.totalorder %s29, 3
      %p183 = por %p181, %p182
      %p185 = scmp.ne.s32.totalorder %s170, %s184
      %p186 = scmp.eq.s32.totalorder %s29, 0
      %p187 = por %p185, %p186
      %s189 = sadd.s32 %s188, 1
      %p192 = scmp.eq.s32.totalorder %s23, 3
      %p193 = scmp.ne.s32.totalorder %s188, %s190
      %p194 = scmp.eq.s32.totalorder %s23, 0
      %p195 = por %p193, %p194
      %p196 = scmp.ne.s32.totalorder %s188, %s190
      %p197 = scmp.eq.s32.totalorder %s28, 3
      %p198 = por %p196, %p197
      %p199 = scmp.ne.s32.totalorder %s190, %s191
      %p200 = scmp.eq.s32.totalorder %s28, 0
      %p201 = por %p199, %p200
      %p202 = scmp.ne.s32.totalorder %s190, %s191
      %p203 = scmp.eq.s32.totalorder %s29, 3
      %p204 = por %p202, %p203
      %p206 = scmp.ne.s32.totalorder %s191, %s205
      %p207 = scmp.eq.s32.totalorder %s29, 0
      %p208 = por %p206, %p207
      %p209 = scmp.le.s32.totalorder 1, %s23
      %p210 = scmp.lt.s32.totalorder %s23, 5
      %p211 = pnand %p209, %p210
      %p212 = pneg %p211
      // Predicated region
      $region9: #{tpu_custom_call.1} parent=5 // pred_check
        _
      $region10: #{tpu_custom_call.1} parent=5 // pred_check_branch
        %214 = sbr.rel (%p211) target = $region12
      $region11: #{tpu_custom_call.1} parent=5 // pred_region
        %s215 = ssub.s32 %s23, 1
        // Predicated region
        $region13: #{tpu_custom_call.1} parent=11 // pred_check
          %p216 = pneg %p96
        $region14: #{tpu_custom_call.1} parent=11 // pred_check_branch
          %218 = sbr.rel (%p216) target = $region16
        $region15: #{tpu_custom_call.1} parent=11 // pred_region
          %s220 = ssub.s32 160, 160
          %221 = vsyncadd [#allocation9], %s220
          %s223 = sshll.u32 [#allocation10], 4
          %s224 = int_to_ptr.vmem [resolvable:$true] %s223
          %226 = dma.hbm_to_vmem [thread:$0]  %s2, 160, %s224, [#allocation9]
        $region16: #{tpu_custom_call.1} parent=11 // pred_fallthru
          _
        // Predicated region
        $region17: #{tpu_custom_call.1} parent=11 // pred_check
          %p227 = pneg %p117
        $region18: #{tpu_custom_call.1} parent=11 // pred_check_branch
          %229 = sbr.rel (%p227) target = $region20
        $region19: #{tpu_custom_call.1} parent=11 // pred_region
          %s231 = ssub.s32 2560, 2560
          %232 = vsyncadd [#allocation12], %s231
          %s233 = sshll.u32 [#allocation11], 4
          %s234 = int_to_ptr.vmem [resolvable:$true] %s233
          %239 = dma.hbm_to_vmem [thread:$0]  %s3, 2560, %s234, [#allocation12], 1280, 1280, 80
        $region20: #{tpu_custom_call.1} parent=11 // pred_fallthru
          _
        // Predicated region
        $region21: #{tpu_custom_call.1} parent=11 // pred_check
          %p240 = pneg %p138
        $region22: #{tpu_custom_call.1} parent=11 // pred_check_branch
          %242 = sbr.rel (%p240) target = $region24
        $region23: #{tpu_custom_call.1} parent=11 // pred_region
          _
        $region24: #{tpu_custom_call.1} parent=11 // pred_fallthru
          _
        // Predicated region
        $region25: #{tpu_custom_call.1} parent=11 // pred_check
          %p243 = pneg %p159
        $region26: #{tpu_custom_call.1} parent=11 // pred_check_branch
          %245 = sbr.rel (%p243) target = $region28
        $region27: #{tpu_custom_call.1} parent=11 // pred_region
          _
        $region28: #{tpu_custom_call.1} parent=11 // pred_fallthru
          _
        // Predicated region
        $region29: #{tpu_custom_call.1} parent=11 // pred_check
          %p246 = pneg %p180
        $region30: #{tpu_custom_call.1} parent=11 // pred_check_branch
          %248 = sbr.rel (%p246) target = $region32
        $region31: #{tpu_custom_call.1} parent=11 // pred_region
          _
        $region32: #{tpu_custom_call.1} parent=11 // pred_fallthru
          _
      $region12: #{tpu_custom_call.1} parent=5 // pred_fallthru
        _
      %p249 = scmp.lt.s32.totalorder %s23, 4
      // Predicated region
      $region33: #{tpu_custom_call.1} parent=5 // pred_check
        %p250 = pneg %p249
      $region34: #{tpu_custom_call.1} parent=5 // pred_check_branch
        %252 = sbr.rel (%p250) target = $region36
      $region35: #{tpu_custom_call.1} parent=5 // pred_region
        // Predicated region
        $region37: #{tpu_custom_call.1} parent=35 // pred_check
          %p253 = pneg %p43
        $region38: #{tpu_custom_call.1} parent=35 // pred_check_branch
          %255 = sbr.rel (%p253) target = $region40
        $region39: #{tpu_custom_call.1} parent=35 // pred_region
          %s256 = sand.u32 %s33, 1
          %s257 = scalar_lea.sflag [#allocation6], %s256
          %s258 = sand.u32 %s33, 1
          %s259 = smul.addr %s258, 224
          %s260 = scalar_lea.vmem [#allocation5], %s259
          %s261 = smul.u32 4, %s23
          %s263 = ssub.s32 3584, 3584
          %264 = vsyncadd %s257, %s263
          %s265 = smul.addr %s261, 64
          %s266 = scalar_lea.hbm %s0, %s265
          %s267 = sshll.u32 %s260, 4
          %s268 = int_to_ptr.vmem [resolvable:$true] %s267
          %273 = dma.hbm_to_vmem [thread:$0]  %s266, 3584, %s268, %s257, 1024, 256, 16
        $region40: #{tpu_custom_call.1} parent=35 // pred_fallthru
          _
        // Predicated region
        $region41: #{tpu_custom_call.1} parent=35 // pred_check
          %p274 = pneg %p69
        $region42: #{tpu_custom_call.1} parent=35 // pred_check_branch
          %276 = sbr.rel (%p274) target = $region44
        $region43: #{tpu_custom_call.1} parent=35 // pred_region
          %s277 = sand.u32 %s23, 1
          %s278 = scalar_lea.sflag [#allocation9], %s277
          %s279 = sand.u32 %s59, 1
          %s280 = smul.addr %s279, 2400
          %s281 = scalar_lea.vmem [#allocation8], %s280
          %s282 = smul.u32 4, %s23
          %s284 = ssub.s32 38400, 38400
          %285 = vsyncadd %s278, %s284
          %s286 = smul.addr %s282, 64
          %s287 = scalar_lea.hbm %s1, %s286
          %s288 = sshll.u32 %s281, 4
          %s289 = int_to_ptr.vmem [resolvable:$true] %s288
          %294 = dma.hbm_to_vmem [thread:$0]  %s287, 38400, %s289, %s278, 1024, 256, 16
        $region44: #{tpu_custom_call.1} parent=35 // pred_fallthru
          _
      $region36: #{tpu_custom_call.1} parent=5 // pred_fallthru
        _
      %p295 = scmp.le.s32.totalorder 1, %s23
      %p296 = scmp.lt.s32.totalorder %s23, 5
      %p297 = pnand %p295, %p296
      %p298 = pneg %p297
      // Predicated region
      $region45: #{tpu_custom_call.1} parent=5 // pred_check
        _
      $region46: #{tpu_custom_call.1} parent=5 // pred_check_branch
        %300 = sbr.rel (%p297) target = $region48
      $region47: #{tpu_custom_call.1} parent=5 // pred_region
        %s301 = ssub.s32 %s23, 1
        %s302 = sand.u32 %s36, 1
        %s303 = scalar_lea.sflag [#allocation6], %s302
        %s304 = sand.u32 %s36, 1
        %s305 = smul.addr %s304, 224
        %s306 = scalar_lea.vmem [#allocation5], %s305
        // Predicated region
        $region49: #{tpu_custom_call.1} parent=47 // pred_check
          %p307 = pneg %p49
        $region50: #{tpu_custom_call.1} parent=47 // pred_check_branch
          %309 = sbr.rel (%p307) target = $region52
        $region51: #{tpu_custom_call.1} parent=47 // pred_region
          %310 = dma.done %s303, 3584
        $region52: #{tpu_custom_call.1} parent=47 // pred_fallthru
          _
        %s311 = sand.u32 %s28, 1
        %s312 = scalar_lea.sflag [#allocation9], %s311
        %s313 = sand.u32 %s62, 1
        %s314 = smul.addr %s313, 2400
        %s315 = scalar_lea.vmem [#allocation8], %s314
        // Predicated region
        $region53: #{tpu_custom_call.1} parent=47 // pred_check
          %p316 = pneg %p75
        $region54: #{tpu_custom_call.1} parent=47 // pred_check_branch
          %318 = sbr.rel (%p316) target = $region56
        $region55: #{tpu_custom_call.1} parent=47 // pred_region
          %319 = dma.done %s312, 38400
        $region56: #{tpu_custom_call.1} parent=47 // pred_fallthru
          _
        // Predicated region
        $region57: #{tpu_custom_call.1} parent=47 // pred_check
          %p320 = pneg %p96
        $region58: #{tpu_custom_call.1} parent=47 // pred_check_branch
          %322 = sbr.rel (%p320) target = $region60
        $region59: #{tpu_custom_call.1} parent=47 // pred_region
          %323 = dma.done [#allocation9], 160
        $region60: #{tpu_custom_call.1} parent=47 // pred_fallthru
          _
        // Predicated region
        $region61: #{tpu_custom_call.1} parent=47 // pred_check
          %p324 = pneg %p117
        $region62: #{tpu_custom_call.1} parent=47 // pred_check_branch
          %326 = sbr.rel (%p324) target = $region64
        $region63: #{tpu_custom_call.1} parent=47 // pred_region
          %327 = dma.done [#allocation12], 2560
        $region64: #{tpu_custom_call.1} parent=47 // pred_fallthru
          _
        %s328 = sand.u32 %s36, 1
        %s329 = scalar_lea.sflag [#allocation6], %s328
        %s330 = sand.u32 %s36, 1
        %s331 = smul.addr %s330, 224
        %s332 = scalar_lea.vmem [#allocation5], %s331
        %p333 = pneg %p49
        %p334 = pneg %p46
        %s335 = sand.u32 %s28, 1
        %s336 = scalar_lea.sflag [#allocation9], %s335
        %s337 = sand.u32 %s62, 1
        %s338 = smul.addr %s337, 2400
        %s339 = scalar_lea.vmem [#allocation8], %s338
        %p340 = pneg %p75
        %p341 = pneg %p72
        %p342 = pneg %p96
        %p343 = pneg %p93
        %p344 = pneg %p117
        %p345 = pneg %p114
        %p346 = pneg %p138
        %p347 = pneg %p135
        %p348 = pneg %p159
        %p349 = pneg %p156
        %p350 = pneg %p180
        %p351 = pneg %p177
        %p352 = pneg %p201
        %p353 = pneg %p198
        %s354 = smul.u32 4, %s28
        %s355 = smul.u32 4, %s28
        %p357 = scmp.eq.s32.totalorder %s28, 0
        // Predicated region
        $region65: #{tpu_custom_call.1} parent=47 // pred_check
          %p358 = pneg %p357
        $region66: #{tpu_custom_call.1} parent=47 // pred_check_branch
          %360 = sbr.rel (%p358) target = $region68
        $region67: #{tpu_custom_call.1} parent=47 // pred_region
          %361 = vst [vmem:[#allocation2] sm:$0xff] 0.0
          %362 = vst [vmem:[#allocation2 + $0x8] sm:$0xff] 0.0
          %363 = vst [vmem:[#allocation2 + $0x10] sm:$0xff] 0.0
          %364 = vst [vmem:[#allocation2 + $0x18] sm:$0xff] 0.0
          %365 = vst [vmem:[#allocation2 + $0x20] sm:$0xff] 0.0
          %366 = vst [vmem:[#allocation2 + $0x28] sm:$0xff] 0.0
          %367 = vst [vmem:[#allocation2 + $0x30] sm:$0xff] 0.0
          %368 = vst [vmem:[#allocation2 + $0x38] sm:$0xff] 0.0
          %369 = vst [vmem:[#allocation2 + $0x40] sm:$0xff] 0.0
          %vm370 = vcmask 375808
          %371 = vst.msk [vmem:[#allocation2 + $0x48] sm:$0xff] %vm370, 0.0
          %372 = vst [vmem:[#allocation2 + $0x50] sm:$0xff] 0.0
          %373 = vst [vmem:[#allocation2 + $0x58] sm:$0xff] 0.0
          %374 = vst [vmem:[#allocation2 + $0x60] sm:$0xff] 0.0
          %375 = vst [vmem:[#allocation2 + $0x68] sm:$0xff] 0.0
          %376 = vst [vmem:[#allocation2 + $0x70] sm:$0xff] 0.0
          %377 = vst [vmem:[#allocation2 + $0x78] sm:$0xff] 0.0
          %378 = vst [vmem:[#allocation2 + $0x80] sm:$0xff] 0.0
          %379 = vst [vmem:[#allocation2 + $0x88] sm:$0xff] 0.0
          %380 = vst [vmem:[#allocation2 + $0x90] sm:$0xff] 0.0
          %381 = vst.msk [vmem:[#allocation2 + $0x98] sm:$0xff] %vm370, 0.0
          %382 = vst [vmem:[#allocation2 + $0xa0] sm:$0xff] 0.0
          %383 = vst [vmem:[#allocation2 + $0xa8] sm:$0xff] 0.0
          %384 = vst [vmem:[#allocation2 + $0xb0] sm:$0xff] 0.0
          %385 = vst [vmem:[#allocation2 + $0xb8] sm:$0xff] 0.0
          %386 = vst [vmem:[#allocation2 + $0xc0] sm:$0xff] 0.0
          %387 = vst [vmem:[#allocation2 + $0xc8] sm:$0xff] 0.0
          %388 = vst [vmem:[#allocation2 + $0xd0] sm:$0xff] 0.0
          %389 = vst [vmem:[#allocation2 + $0xd8] sm:$0xff] 0.0
          %390 = vst [vmem:[#allocation2 + $0xe0] sm:$0xff] 0.0
          %391 = vst.msk [vmem:[#allocation2 + $0xe8] sm:$0xff] %vm370, 0.0
          %392 = vst [vmem:[#allocation2 + $0xf0] sm:$0xff] 0.0
          %393 = vst [vmem:[#allocation2 + $0xf8] sm:$0xff] 0.0
          %394 = vst [vmem:[#allocation2 + $0x100] sm:$0xff] 0.0
          %395 = vst [vmem:[#allocation2 + $0x108] sm:$0xff] 0.0
          %396 = vst [vmem:[#allocation2 + $0x110] sm:$0xff] 0.0
          %397 = vst [vmem:[#allocation2 + $0x118] sm:$0xff] 0.0
          %398 = vst [vmem:[#allocation2 + $0x120] sm:$0xff] 0.0
          %399 = vst [vmem:[#allocation2 + $0x128] sm:$0xff] 0.0
          %400 = vst [vmem:[#allocation2 + $0x130] sm:$0xff] 0.0
          %401 = vst.msk [vmem:[#allocation2 + $0x138] sm:$0xff] %vm370, 0.0
          %402 = vst [vmem:[#allocation2 + $0x140] sm:$0xff] 0.0
          %403 = vst [vmem:[#allocation2 + $0x148] sm:$0xff] 0.0
          %404 = vst [vmem:[#allocation2 + $0x150] sm:$0xff] 0.0
          %405 = vst [vmem:[#allocation2 + $0x158] sm:$0xff] 0.0
          %406 = vst [vmem:[#allocation2 + $0x160] sm:$0xff] 0.0
          %407 = vst [vmem:[#allocation2 + $0x168] sm:$0xff] 0.0
          %408 = vst [vmem:[#allocation2 + $0x170] sm:$0xff] 0.0
          %409 = vst [vmem:[#allocation2 + $0x178] sm:$0xff] 0.0
          %410 = vst [vmem:[#allocation2 + $0x180] sm:$0xff] 0.0
          %411 = vst.msk [vmem:[#allocation2 + $0x188] sm:$0xff] %vm370, 0.0
          %412 = vst [vmem:[#allocation2 + $0x190] sm:$0xff] 0.0
          %413 = vst [vmem:[#allocation2 + $0x198] sm:$0xff] 0.0
          %414 = vst [vmem:[#allocation2 + $0x1a0] sm:$0xff] 0.0
          %415 = vst [vmem:[#allocation2 + $0x1a8] sm:$0xff] 0.0
          %416 = vst [vmem:[#allocation2 + $0x1b0] sm:$0xff] 0.0
          %417 = vst [vmem:[#allocation2 + $0x1b8] sm:$0xff] 0.0
          %418 = vst [vmem:[#allocation2 + $0x1c0] sm:$0xff] 0.0
          %419 = vst [vmem:[#allocation2 + $0x1c8] sm:$0xff] 0.0
          %420 = vst [vmem:[#allocation2 + $0x1d0] sm:$0xff] 0.0
          %421 = vst.msk [vmem:[#allocation2 + $0x1d8] sm:$0xff] %vm370, 0.0
          %422 = vst [vmem:[#allocation2 + $0x1e0] sm:$0xff] 0.0
          %423 = vst [vmem:[#allocation2 + $0x1e8] sm:$0xff] 0.0
          %424 = vst [vmem:[#allocation2 + $0x1f0] sm:$0xff] 0.0
          %425 = vst [vmem:[#allocation2 + $0x1f8] sm:$0xff] 0.0
          %426 = vst [vmem:[#allocation2 + $0x200] sm:$0xff] 0.0
          %427 = vst [vmem:[#allocation2 + $0x208] sm:$0xff] 0.0
          %428 = vst [vmem:[#allocation2 + $0x210] sm:$0xff] 0.0
          %429 = vst [vmem:[#allocation2 + $0x218] sm:$0xff] 0.0
          %430 = vst [vmem:[#allocation2 + $0x220] sm:$0xff] 0.0
          %431 = vst.msk [vmem:[#allocation2 + $0x228] sm:$0xff] %vm370, 0.0
          %432 = vst [vmem:[#allocation2 + $0x230] sm:$0xff] 0.0
          %433 = vst [vmem:[#allocation2 + $0x238] sm:$0xff] 0.0
          %434 = vst [vmem:[#allocation2 + $0x240] sm:$0xff] 0.0
          %435 = vst [vmem:[#allocation2 + $0x248] sm:$0xff] 0.0
          %436 = vst [vmem:[#allocation2 + $0x250] sm:$0xff] 0.0
          %437 = vst [vmem:[#allocation2 + $0x258] sm:$0xff] 0.0
          %438 = vst [vmem:[#allocation2 + $0x260] sm:$0xff] 0.0
          %439 = vst [vmem:[#allocation2 + $0x268] sm:$0xff] 0.0
          %440 = vst [vmem:[#allocation2 + $0x270] sm:$0xff] 0.0
          %441 = vst.msk [vmem:[#allocation2 + $0x278] sm:$0xff] %vm370, 0.0
          %442 = vst [vmem:[#allocation2 + $0x280] sm:$0xff] 0.0
          %443 = vst [vmem:[#allocation2 + $0x288] sm:$0xff] 0.0
          %444 = vst [vmem:[#allocation2 + $0x290] sm:$0xff] 0.0
          %445 = vst [vmem:[#allocation2 + $0x298] sm:$0xff] 0.0
          %446 = vst [vmem:[#allocation2 + $0x2a0] sm:$0xff] 0.0
          %447 = vst [vmem:[#allocation2 + $0x2a8] sm:$0xff] 0.0
          %448 = vst [vmem:[#allocation2 + $0x2b0] sm:$0xff] 0.0
          %449 = vst [vmem:[#allocation2 + $0x2b8] sm:$0xff] 0.0
          %450 = vst [vmem:[#allocation2 + $0x2c0] sm:$0xff] 0.0
          %451 = vst.msk [vmem:[#allocation2 + $0x2c8] sm:$0xff] %vm370, 0.0
          %452 = vst [vmem:[#allocation2 + $0x2d0] sm:$0xff] 0.0
          %453 = vst [vmem:[#allocation2 + $0x2d8] sm:$0xff] 0.0
          %454 = vst [vmem:[#allocation2 + $0x2e0] sm:$0xff] 0.0
          %455 = vst [vmem:[#allocation2 + $0x2e8] sm:$0xff] 0.0
          %456 = vst [vmem:[#allocation2 + $0x2f0] sm:$0xff] 0.0
          %457 = vst [vmem:[#allocation2 + $0x2f8] sm:$0xff] 0.0
          %458 = vst [vmem:[#allocation2 + $0x300] sm:$0xff] 0.0
          %459 = vst [vmem:[#allocation2 + $0x308] sm:$0xff] 0.0
          %460 = vst [vmem:[#allocation2 + $0x310] sm:$0xff] 0.0
          %461 = vst.msk [vmem:[#allocation2 + $0x318] sm:$0xff] %vm370, 0.0
          %462 = vst [vmem:[#allocation2 + $0x320] sm:$0xff] 0.0
          %463 = vst [vmem:[#allocation2 + $0x328] sm:$0xff] 0.0
          %464 = vst [vmem:[#allocation2 + $0x330] sm:$0xff] 0.0
          %465 = vst [vmem:[#allocation2 + $0x338] sm:$0xff] 0.0
          %466 = vst [vmem:[#allocation2 + $0x340] sm:$0xff] 0.0
          %467 = vst [vmem:[#allocation2 + $0x348] sm:$0xff] 0.0
          %468 = vst [vmem:[#allocation2 + $0x350] sm:$0xff] 0.0
          %469 = vst [vmem:[#allocation2 + $0x358] sm:$0xff] 0.0
          %470 = vst [vmem:[#allocation2 + $0x360] sm:$0xff] 0.0
          %471 = vst.msk [vmem:[#allocation2 + $0x368] sm:$0xff] %vm370, 0.0
          %472 = vst [vmem:[#allocation2 + $0x370] sm:$0xff] 0.0
          %473 = vst [vmem:[#allocation2 + $0x378] sm:$0xff] 0.0
          %474 = vst [vmem:[#allocation2 + $0x380] sm:$0xff] 0.0
          %475 = vst [vmem:[#allocation2 + $0x388] sm:$0xff] 0.0
          %476 = vst [vmem:[#allocation2 + $0x390] sm:$0xff] 0.0
          %477 = vst [vmem:[#allocation2 + $0x398] sm:$0xff] 0.0
          %478 = vst [vmem:[#allocation2 + $0x3a0] sm:$0xff] 0.0
          %479 = vst [vmem:[#allocation2 + $0x3a8] sm:$0xff] 0.0
          %480 = vst [vmem:[#allocation2 + $0x3b0] sm:$0xff] 0.0
          %481 = vst.msk [vmem:[#allocation2 + $0x3b8] sm:$0xff] %vm370, 0.0
          %482 = vst [vmem:[#allocation2 + $0x3c0] sm:$0xff] 0.0
          %483 = vst [vmem:[#allocation2 + $0x3c8] sm:$0xff] 0.0
          %484 = vst [vmem:[#allocation2 + $0x3d0] sm:$0xff] 0.0
          %485 = vst [vmem:[#allocation2 + $0x3d8] sm:$0xff] 0.0
          %486 = vst [vmem:[#allocation2 + $0x3e0] sm:$0xff] 0.0
          %487 = vst [vmem:[#allocation2 + $0x3e8] sm:$0xff] 0.0
          %488 = vst [vmem:[#allocation2 + $0x3f0] sm:$0xff] 0.0
          %489 = vst [vmem:[#allocation2 + $0x3f8] sm:$0xff] 0.0
          %490 = vst [vmem:[#allocation2 + $0x400] sm:$0xff] 0.0
          %491 = vst.msk [vmem:[#allocation2 + $0x408] sm:$0xff] %vm370, 0.0
          %492 = vst [vmem:[#allocation2 + $0x410] sm:$0xff] 0.0
          %493 = vst [vmem:[#allocation2 + $0x418] sm:$0xff] 0.0
          %494 = vst [vmem:[#allocation2 + $0x420] sm:$0xff] 0.0
          %495 = vst [vmem:[#allocation2 + $0x428] sm:$0xff] 0.0
          %496 = vst [vmem:[#allocation2 + $0x430] sm:$0xff] 0.0
          %497 = vst [vmem:[#allocation2 + $0x438] sm:$0xff] 0.0
          %498 = vst [vmem:[#allocation2 + $0x440] sm:$0xff] 0.0
          %499 = vst [vmem:[#allocation2 + $0x448] sm:$0xff] 0.0
          %500 = vst [vmem:[#allocation2 + $0x450] sm:$0xff] 0.0
          %501 = vst.msk [vmem:[#allocation2 + $0x458] sm:$0xff] %vm370, 0.0
        $region68: #{tpu_custom_call.1} parent=47 // pred_fallthru
          _
        %v502 = vld [vmem:[#allocation2] sm:$0xff]
        %v503 = vld [vmem:[#allocation2 + $0x8] sm:$0xff]
        %v504 = vld [vmem:[#allocation2 + $0x10] sm:$0xff]
        %v505 = vld [vmem:[#allocation2 + $0x18] sm:$0xff]
        %v506 = vld [vmem:[#allocation2 + $0x20] sm:$0xff]
        %v507 = vld [vmem:[#allocation2 + $0x28] sm:$0xff]
        %v508 = vld [vmem:[#allocation2 + $0x30] sm:$0xff]
        %v509 = vld [vmem:[#allocation2 + $0x38] sm:$0xff]
        %v510 = vld [vmem:[#allocation2 + $0x40] sm:$0xff]
        %v511 = vld [vmem:[#allocation2 + $0x48] sm:$0xff]
        %v512 = vld [vmem:[#allocation2 + $0x50] sm:$0xff]
        %v513 = vld [vmem:[#allocation2 + $0x58] sm:$0xff]
        %v514 = vld [vmem:[#allocation2 + $0x60] sm:$0xff]
        %v515 = vld [vmem:[#allocation2 + $0x68] sm:$0xff]
        %v516 = vld [vmem:[#allocation2 + $0x70] sm:$0xff]
        %v517 = vld [vmem:[#allocation2 + $0x78] sm:$0xff]
        %v518 = vld [vmem:[#allocation2 + $0x80] sm:$0xff]
        %v519 = vld [vmem:[#allocation2 + $0x88] sm:$0xff]
        %v520 = vld [vmem:[#allocation2 + $0x90] sm:$0xff]
        %v521 = vld [vmem:[#allocation2 + $0x98] sm:$0xff]
        %v522 = vld [vmem:[#allocation2 + $0xa0] sm:$0xff]
        %v523 = vld [vmem:[#allocation2 + $0xa8] sm:$0xff]
        %v524 = vld [vmem:[#allocation2 + $0xb0] sm:$0xff]
        %v525 = vld [vmem:[#allocation2 + $0xb8] sm:$0xff]
        %v526 = vld [vmem:[#allocation2 + $0xc0] sm:$0xff]
        %v527 = vld [vmem:[#allocation2 + $0xc8] sm:$0xff]
        %v528 = vld [vmem:[#allocation2 + $0xd0] sm:$0xff]
        %v529 = vld [vmem:[#allocation2 + $0xd8] sm:$0xff]
        %v530 = vld [vmem:[#allocation2 + $0xe0] sm:$0xff]
        %v531 = vld [vmem:[#allocation2 + $0xe8] sm:$0xff]
        %v532 = vld [vmem:[#allocation2 + $0xf0] sm:$0xff]
        %v533 = vld [vmem:[#allocation2 + $0xf8] sm:$0xff]
        %v534 = vld [vmem:[#allocation2 + $0x100] sm:$0xff]
        %v535 = vld [vmem:[#allocation2 + $0x108] sm:$0xff]
        %v536 = vld [vmem:[#allocation2 + $0x110] sm:$0xff]
        %v537 = vld [vmem:[#allocation2 + $0x118] sm:$0xff]
        %v538 = vld [vmem:[#allocation2 + $0x120] sm:$0xff]
        %v539 = vld [vmem:[#allocation2 + $0x128] sm:$0xff]
        %v540 = vld [vmem:[#allocation2 + $0x130] sm:$0xff]
        %v541 = vld [vmem:[#allocation2 + $0x138] sm:$0xff]
        %v542 = vld [vmem:[#allocation2 + $0x140] sm:$0xff]
        %v543 = vld [vmem:[#allocation2 + $0x148] sm:$0xff]
        %v544 = vld [vmem:[#allocation2 + $0x150] sm:$0xff]
        %v545 = vld [vmem:[#allocation2 + $0x158] sm:$0xff]
        %v546 = vld [vmem:[#allocation2 + $0x160] sm:$0xff]
        %v547 = vld [vmem:[#allocation2 + $0x168] sm:$0xff]
        %v548 = vld [vmem:[#allocation2 + $0x170] sm:$0xff]
        %v549 = vld [vmem:[#allocation2 + $0x178] sm:$0xff]
        %v550 = vld [vmem:[#allocation2 + $0x180] sm:$0xff]
        %v551 = vld [vmem:[#allocation2 + $0x188] sm:$0xff]
        %v552 = vld [vmem:[#allocation2 + $0x190] sm:$0xff]
        %v553 = vld [vmem:[#allocation2 + $0x198] sm:$0xff]
        %v554 = vld [vmem:[#allocation2 + $0x1a0] sm:$0xff]
        %v555 = vld [vmem:[#allocation2 + $0x1a8] sm:$0xff]
        %v556 = vld [vmem:[#allocation2 + $0x1b0] sm:$0xff]
        %v557 = vld [vmem:[#allocation2 + $0x1b8] sm:$0xff]
        %v558 = vld [vmem:[#allocation2 + $0x1c0] sm:$0xff]
        %v559 = vld [vmem:[#allocation2 + $0x1c8] sm:$0xff]
        %v560 = vld [vmem:[#allocation2 + $0x1d0] sm:$0xff]
        %v561 = vld [vmem:[#allocation2 + $0x1d8] sm:$0xff]
        %v562 = vld [vmem:[#allocation2 + $0x1e0] sm:$0xff]
        %v563 = vld [vmem:[#allocation2 + $0x1e8] sm:$0xff]
        %v564 = vld [vmem:[#allocation2 + $0x1f0] sm:$0xff]
        %v565 = vld [vmem:[#allocation2 + $0x1f8] sm:$0xff]
        %v566 = vld [vmem:[#allocation2 + $0x200] sm:$0xff]
        %v567 = vld [vmem:[#allocation2 + $0x208] sm:$0xff]
        %v568 = vld [vmem:[#allocation2 + $0x210] sm:$0xff]
        %v569 = vld [vmem:[#allocation2 + $0x218] sm:$0xff]
        %v570 = vld [vmem:[#allocation2 + $0x220] sm:$0xff]
        %v571 = vld [vmem:[#allocation2 + $0x228] sm:$0xff]
        %v572 = vld [vmem:[#allocation2 + $0x230] sm:$0xff]
        %v573 = vld [vmem:[#allocation2 + $0x238] sm:$0xff]
        %v574 = vld [vmem:[#allocation2 + $0x240] sm:$0xff]
        %v575 = vld [vmem:[#allocation2 + $0x248] sm:$0xff]
        %v576 = vld [vmem:[#allocation2 + $0x250] sm:$0xff]
        %v577 = vld [vmem:[#allocation2 + $0x258] sm:$0xff]
        %v578 = vld [vmem:[#allocation2 + $0x260] sm:$0xff]
        %v579 = vld [vmem:[#allocation2 + $0x268] sm:$0xff]
        %v580 = vld [vmem:[#allocation2 + $0x270] sm:$0xff]
        %v581 = vld [vmem:[#allocation2 + $0x278] sm:$0xff]
        %v582 = vld [vmem:[#allocation2 + $0x280] sm:$0xff]
        %v583 = vld [vmem:[#allocation2 + $0x288] sm:$0xff]
        %v584 = vld [vmem:[#allocation2 + $0x290] sm:$0xff]
        %v585 = vld [vmem:[#allocation2 + $0x298] sm:$0xff]
        %v586 = vld [vmem:[#allocation2 + $0x2a0] sm:$0xff]
        %v587 = vld [vmem:[#allocation2 + $0x2a8] sm:$0xff]
        %v588 = vld [vmem:[#allocation2 + $0x2b0] sm:$0xff]
        %v589 = vld [vmem:[#allocation2 + $0x2b8] sm:$0xff]
        %v590 = vld [vmem:[#allocation2 + $0x2c0] sm:$0xff]
        %v591 = vld [vmem:[#allocation2 + $0x2c8] sm:$0xff]
        %v592 = vld [vmem:[#allocation2 + $0x2d0] sm:$0xff]
        %v593 = vld [vmem:[#allocation2 + $0x2d8] sm:$0xff]
        %v594 = vld [vmem:[#allocation2 + $0x2e0] sm:$0xff]
        %v595 = vld [vmem:[#allocation2 + $0x2e8] sm:$0xff]
        %v596 = vld [vmem:[#allocation2 + $0x2f0] sm:$0xff]
        %v597 = vld [vmem:[#allocation2 + $0x2f8] sm:$0xff]
        %v598 = vld [vmem:[#allocation2 + $0x300] sm:$0xff]
        %v599 = vld [vmem:[#allocation2 + $0x308] sm:$0xff]
        %v600 = vld [vmem:[#allocation2 + $0x310] sm:$0xff]
        %v601 = vld [vmem:[#allocation2 + $0x318] sm:$0xff]
        %v602 = vld [vmem:[#allocation2 + $0x320] sm:$0xff]
        %v603 = vld [vmem:[#allocation2 + $0x328] sm:$0xff]
        %v604 = vld [vmem:[#allocation2 + $0x330] sm:$0xff]
        %v605 = vld [vmem:[#allocation2 + $0x338] sm:$0xff]
        %v606 = vld [vmem:[#allocation2 + $0x340] sm:$0xff]
        %v607 = vld [vmem:[#allocation2 + $0x348] sm:$0xff]
        %v608 = vld [vmem:[#allocation2 + $0x350] sm:$0xff]
        %v609 = vld [vmem:[#allocation2 + $0x358] sm:$0xff]
        %v610 = vld [vmem:[#allocation2 + $0x360] sm:$0xff]
        %v611 = vld [vmem:[#allocation2 + $0x368] sm:$0xff]
        %v612 = vld [vmem:[#allocation2 + $0x370] sm:$0xff]
        %v613 = vld [vmem:[#allocation2 + $0x378] sm:$0xff]
        %v614 = vld [vmem:[#allocation2 + $0x380] sm:$0xff]
        %v615 = vld [vmem:[#allocation2 + $0x388] sm:$0xff]
        %v616 = vld [vmem:[#allocation2 + $0x390] sm:$0xff]
        %v617 = vld [vmem:[#allocation2 + $0x398] sm:$0xff]
        %v618 = vld [vmem:[#allocation2 + $0x3a0] sm:$0xff]
        %v619 = vld [vmem:[#allocation2 + $0x3a8] sm:$0xff]
        %v620 = vld [vmem:[#allocation2 + $0x3b0] sm:$0xff]
        %v621 = vld [vmem:[#allocation2 + $0x3b8] sm:$0xff]
        %v622 = vld [vmem:[#allocation2 + $0x3c0] sm:$0xff]
        %v623 = vld [vmem:[#allocation2 + $0x3c8] sm:$0xff]
        %v624 = vld [vmem:[#allocation2 + $0x3d0] sm:$0xff]
        %v625 = vld [vmem:[#allocation2 + $0x3d8] sm:$0xff]
        %v626 = vld [vmem:[#allocation2 + $0x3e0] sm:$0xff]
        %v627 = vld [vmem:[#allocation2 + $0x3e8] sm:$0xff]
        %v628 = vld [vmem:[#allocation2 + $0x3f0] sm:$0xff]
        %v629 = vld [vmem:[#allocation2 + $0x3f8] sm:$0xff]
        %v630 = vld [vmem:[#allocation2 + $0x400] sm:$0xff]
        %v631 = vld [vmem:[#allocation2 + $0x408] sm:$0xff]
        %v632 = vld [vmem:[#allocation2 + $0x410] sm:$0xff]
        %v633 = vld [vmem:[#allocation2 + $0x418] sm:$0xff]
        %v634 = vld [vmem:[#allocation2 + $0x420] sm:$0xff]
        %v635 = vld [vmem:[#allocation2 + $0x428] sm:$0xff]
        %v636 = vld [vmem:[#allocation2 + $0x430] sm:$0xff]
        %v637 = vld [vmem:[#allocation2 + $0x438] sm:$0xff]
        %v638 = vld [vmem:[#allocation2 + $0x440] sm:$0xff]
        %v639 = vld [vmem:[#allocation2 + $0x448] sm:$0xff]
        %v640 = vld [vmem:[#allocation2 + $0x450] sm:$0xff]
        %v641 = vld [vmem:[#allocation2 + $0x458] sm:$0xff]
        %v642 = vld [vmem:[%s306] sm:$0xff]
        %v643 = vld [vmem:[%s306 + $0x8] sm:$0xff]
        %v644 = vld [vmem:[%s306 + $0x10] sm:$0xff]
        %v645 = vld [vmem:[%s306 + $0x18] sm:$0xff]
        %v646 = vld [vmem:[%s306 + $0x20] sm:$0xff]
        %v647 = vld [vmem:[%s306 + $0x28] sm:$0xff]
        %v648 = vld [vmem:[%s306 + $0x30] sm:$0xff]
        %v649 = vld [vmem:[%s306 + $0x38] sm:$0xff]
        %v650 = vld [vmem:[%s306 + $0x40] sm:$0xff]
        %v651 = vld [vmem:[%s306 + $0x48] sm:$0xff]
        %v652 = vld [vmem:[%s306 + $0x50] sm:$0xff]
        %v653 = vld [vmem:[%s306 + $0x58] sm:$0xff]
        %v654 = vld [vmem:[%s306 + $0x60] sm:$0xff]
        %v655 = vld [vmem:[%s306 + $0x68] sm:$0xff]
        %v656 = vld [vmem:[%s306 + $0x70] sm:$0xff]
        %v657 = vld [vmem:[%s306 + $0x78] sm:$0xff]
        %v658 = vld [vmem:[%s306 + $0x80] sm:$0xff]
        %v659 = vld [vmem:[%s306 + $0x88] sm:$0xff]
        %v660 = vld [vmem:[%s306 + $0x90] sm:$0xff]
        %v661 = vld [vmem:[%s306 + $0x98] sm:$0xff]
        %v662 = vld [vmem:[%s306 + $0xa0] sm:$0xff]
        %v663 = vld [vmem:[%s306 + $0xa8] sm:$0xff]
        %v664 = vld [vmem:[%s306 + $0xb0] sm:$0xff]
        %v665 = vld [vmem:[%s306 + $0xb8] sm:$0xff]
        %v666 = vld [vmem:[%s306 + $0xc0] sm:$0xff]
        %v667 = vld [vmem:[%s306 + $0xc8] sm:$0xff]
        %v668 = vld [vmem:[%s306 + $0xd0] sm:$0xff]
        %v669 = vld [vmem:[%s306 + $0xd8] sm:$0xff]
        %v670 = vld [vmem:[%s315] sm:$0xff]
        %v671 = vld [vmem:[%s315 + $0x8] sm:$0xff]
        %v672 = vld [vmem:[%s315 + $0x10] sm:$0xff]
        %v673 = vld [vmem:[%s315 + $0x18] sm:$0xff]
        %v674 = vld [vmem:[%s315 + $0x20] sm:$0xff]
        %v675 = vld [vmem:[%s315 + $0x28] sm:$0xff]
        %v676 = vld [vmem:[%s315 + $0x30] sm:$0xff]
        %v677 = vld [vmem:[%s315 + $0x38] sm:$0xff]
        %v678 = vld [vmem:[%s315 + $0x40] sm:$0xff]
        %v679 = vld [vmem:[%s315 + $0x48] sm:$0xff]
        %v680 = vld [vmem:[%s315 + $0x50] sm:$0xff]
        %v681 = vld [vmem:[%s315 + $0x58] sm:$0xff]
        %v682 = vld [vmem:[%s315 + $0x60] sm:$0xff]
        %v683 = vld [vmem:[%s315 + $0x68] sm:$0xff]
        %v684 = vld [vmem:[%s315 + $0x70] sm:$0xff]
        %v685 = vld [vmem:[%s315 + $0x78] sm:$0xff]
        %v686 = vld [vmem:[%s315 + $0x80] sm:$0xff]
        %v687 = vld [vmem:[%s315 + $0x88] sm:$0xff]
        %v688 = vld [vmem:[%s315 + $0x90] sm:$0xff]
        %v689 = vld [vmem:[%s315 + $0x98] sm:$0xff]
        %v690 = vld [vmem:[%s315 + $0xa0] sm:$0xff]
        %v691 = vld [vmem:[%s315 + $0xa8] sm:$0xff]
        %v692 = vld [vmem:[%s315 + $0xb0] sm:$0xff]
        %v693 = vld [vmem:[%s315 + $0xb8] sm:$0xff]
        %v694 = vld [vmem:[%s315 + $0xc0] sm:$0xff]
        %v695 = vld [vmem:[%s315 + $0xc8] sm:$0xff]
        %v696 = vld [vmem:[%s315 + $0xd0] sm:$0xff]
        %v697 = vld [vmem:[%s315 + $0xd8] sm:$0xff]
        %v698 = vld [vmem:[%s315 + $0xe0] sm:$0xff]
        %v699 = vld [vmem:[%s315 + $0xe8] sm:$0xff]
        %v700 = vld [vmem:[%s315 + $0xf0] sm:$0xff]
        %v701 = vld [vmem:[%s315 + $0xf8] sm:$0xff]
        %v702 = vld [vmem:[%s315 + $0x100] sm:$0xff]
        %v703 = vld [vmem:[%s315 + $0x108] sm:$0xff]
        %v704 = vld [vmem:[%s315 + $0x110] sm:$0xff]
        %v705 = vld [vmem:[%s315 + $0x118] sm:$0xff]
        %v706 = vld [vmem:[%s315 + $0x120] sm:$0xff]
        %v707 = vld [vmem:[%s315 + $0x128] sm:$0xff]
        %v708 = vld [vmem:[%s315 + $0x130] sm:$0xff]
        %v709 = vld [vmem:[%s315 + $0x138] sm:$0xff]
        %v710 = vld [vmem:[%s315 + $0x140] sm:$0xff]
        %v711 = vld [vmem:[%s315 + $0x148] sm:$0xff]
        %v712 = vld [vmem:[%s315 + $0x150] sm:$0xff]
        %v713 = vld [vmem:[%s315 + $0x158] sm:$0xff]
        %v714 = vld [vmem:[%s315 + $0x160] sm:$0xff]
        %v715 = vld [vmem:[%s315 + $0x168] sm:$0xff]
        %v716 = vld [vmem:[%s315 + $0x170] sm:$0xff]
        %v717 = vld [vmem:[%s315 + $0x178] sm:$0xff]
        %v718 = vld [vmem:[%s315 + $0x180] sm:$0xff]
        %v719 = vld [vmem:[%s315 + $0x188] sm:$0xff]
        %v720 = vld [vmem:[%s315 + $0x190] sm:$0xff]
        %v721 = vld [vmem:[%s315 + $0x198] sm:$0xff]
        %v722 = vld [vmem:[%s315 + $0x1a0] sm:$0xff]
        %v723 = vld [vmem:[%s315 + $0x1a8] sm:$0xff]
        %v724 = vld [vmem:[%s315 + $0x1b0] sm:$0xff]
        %v725 = vld [vmem:[%s315 + $0x1b8] sm:$0xff]
        %v726 = vld [vmem:[%s315 + $0x1c0] sm:$0xff]
        %v727 = vld [vmem:[%s315 + $0x1c8] sm:$0xff]
        %v728 = vld [vmem:[%s315 + $0x1d0] sm:$0xff]
        %v729 = vld [vmem:[%s315 + $0x1d8] sm:$0xff]
        %v730 = vld [vmem:[%s315 + $0x1e0] sm:$0xff]
        %v731 = vld [vmem:[%s315 + $0x1e8] sm:$0xff]
        %v732 = vld [vmem:[%s315 + $0x1f0] sm:$0xff]
        %v733 = vld [vmem:[%s315 + $0x1f8] sm:$0xff]
        %v734 = vld [vmem:[%s315 + $0x200] sm:$0xff]
        %v735 = vld [vmem:[%s315 + $0x208] sm:$0xff]
        %v736 = vld [vmem:[%s315 + $0x210] sm:$0xff]
        %v737 = vld [vmem:[%s315 + $0x218] sm:$0xff]
        %v738 = vld [vmem:[%s315 + $0x220] sm:$0xff]
        %v739 = vld [vmem:[%s315 + $0x228] sm:$0xff]
        %v740 = vld [vmem:[%s315 + $0x230] sm:$0xff]
        %v741 = vld [vmem:[%s315 + $0x238] sm:$0xff]
        %v742 = vld [vmem:[%s315 + $0x240] sm:$0xff]
        %v743 = vld [vmem:[%s315 + $0x248] sm:$0xff]
        %v744 = vld [vmem:[%s315 + $0x250] sm:$0xff]
        %v745 = vld [vmem:[%s315 + $0x258] sm:$0xff]
        %v746 = vld [vmem:[%s315 + $0x260] sm:$0xff]
        %v747 = vld [vmem:[%s315 + $0x268] sm:$0xff]
        %v748 = vld [vmem:[%s315 + $0x270] sm:$0xff]
        %v749 = vld [vmem:[%s315 + $0x278] sm:$0xff]
        %v750 = vld [vmem:[%s315 + $0x280] sm:$0xff]
        %v751 = vld [vmem:[%s315 + $0x288] sm:$0xff]
        %v752 = vld [vmem:[%s315 + $0x290] sm:$0xff]
        %v753 = vld [vmem:[%s315 + $0x298] sm:$0xff]
        %v754 = vld [vmem:[%s315 + $0x2a0] sm:$0xff]
        %v755 = vld [vmem:[%s315 + $0x2a8] sm:$0xff]
        %v756 = vld [vmem:[%s315 + $0x2b0] sm:$0xff]
        %v757 = vld [vmem:[%s315 + $0x2b8] sm:$0xff]
        %v758 = vld [vmem:[%s315 + $0x2c0] sm:$0xff]
        %v759 = vld [vmem:[%s315 + $0x2c8] sm:$0xff]
        %v760 = vld [vmem:[%s315 + $0x2d0] sm:$0xff]
        %v761 = vld [vmem:[%s315 + $0x2d8] sm:$0xff]
        %v762 = vld [vmem:[%s315 + $0x2e0] sm:$0xff]
        %v763 = vld [vmem:[%s315 + $0x2e8] sm:$0xff]
        %v764 = vld [vmem:[%s315 + $0x2f0] sm:$0xff]
        %v765 = vld [vmem:[%s315 + $0x2f8] sm:$0xff]
        %v766 = vld [vmem:[%s315 + $0x300] sm:$0xff]
        %v767 = vld [vmem:[%s315 + $0x308] sm:$0xff]
        %v768 = vld [vmem:[%s315 + $0x310] sm:$0xff]
        %v769 = vld [vmem:[%s315 + $0x318] sm:$0xff]
        %v770 = vld [vmem:[%s315 + $0x320] sm:$0xff]
        %v771 = vld [vmem:[%s315 + $0x328] sm:$0xff]
        %v772 = vld [vmem:[%s315 + $0x330] sm:$0xff]
        %v773 = vld [vmem:[%s315 + $0x338] sm:$0xff]
        %v774 = vld [vmem:[%s315 + $0x340] sm:$0xff]
        %v775 = vld [vmem:[%s315 + $0x348] sm:$0xff]
        %v776 = vld [vmem:[%s315 + $0x350] sm:$0xff]
        %v777 = vld [vmem:[%s315 + $0x358] sm:$0xff]
        %v778 = vld [vmem:[%s315 + $0x360] sm:$0xff]
        %v779 = vld [vmem:[%s315 + $0x368] sm:$0xff]
        %v780 = vld [vmem:[%s315 + $0x370] sm:$0xff]
        %v781 = vld [vmem:[%s315 + $0x378] sm:$0xff]
        %v782 = vld [vmem:[%s315 + $0x380] sm:$0xff]
        %v783 = vld [vmem:[%s315 + $0x388] sm:$0xff]
        %v784 = vld [vmem:[%s315 + $0x390] sm:$0xff]
        %v785 = vld [vmem:[%s315 + $0x398] sm:$0xff]
        %v786 = vld [vmem:[%s315 + $0x3a0] sm:$0xff]
        %v787 = vld [vmem:[%s315 + $0x3a8] sm:$0xff]
        %v788 = vld [vmem:[%s315 + $0x3b0] sm:$0xff]
        %v789 = vld [vmem:[%s315 + $0x3b8] sm:$0xff]
        %v790 = vld [vmem:[%s315 + $0x3c0] sm:$0xff]
        %v791 = vld [vmem:[%s315 + $0x3c8] sm:$0xff]
        %v792 = vld [vmem:[%s315 + $0x3d0] sm:$0xff]
        %v793 = vld [vmem:[%s315 + $0x3d8] sm:$0xff]
        %v794 = vld [vmem:[%s315 + $0x3e0] sm:$0xff]
        %v795 = vld [vmem:[%s315 + $0x3e8] sm:$0xff]
        %v796 = vld [vmem:[%s315 + $0x3f0] sm:$0xff]
        %v797 = vld [vmem:[%s315 + $0x3f8] sm:$0xff]
        %v798 = vld [vmem:[%s315 + $0x400] sm:$0xff]
        %v799 = vld [vmem:[%s315 + $0x408] sm:$0xff]
        %v800 = vld [vmem:[%s315 + $0x410] sm:$0xff]
        %v801 = vld [vmem:[%s315 + $0x418] sm:$0xff]
        %v802 = vld [vmem:[%s315 + $0x420] sm:$0xff]
        %v803 = vld [vmem:[%s315 + $0x428] sm:$0xff]
        %v804 = vld [vmem:[%s315 + $0x430] sm:$0xff]
        %v805 = vld [vmem:[%s315 + $0x438] sm:$0xff]
        %v806 = vld [vmem:[%s315 + $0x440] sm:$0xff]
        %v807 = vld [vmem:[%s315 + $0x448] sm:$0xff]
        %v808 = vld [vmem:[%s315 + $0x450] sm:$0xff]
        %v809 = vld [vmem:[%s315 + $0x458] sm:$0xff]
        %v810 = vld [vmem:[%s315 + $0x460] sm:$0xff]
        %v811 = vld [vmem:[%s315 + $0x468] sm:$0xff]
        %v812 = vld [vmem:[%s315 + $0x470] sm:$0xff]
        %v813 = vld [vmem:[%s315 + $0x478] sm:$0xff]
        %v814 = vld [vmem:[%s315 + $0x480] sm:$0xff]
        %v815 = vld [vmem:[%s315 + $0x488] sm:$0xff]
        %v816 = vld [vmem:[%s315 + $0x490] sm:$0xff]
        %v817 = vld [vmem:[%s315 + $0x498] sm:$0xff]
        %v818 = vld [vmem:[%s315 + $0x4a0] sm:$0xff]
        %v819 = vld [vmem:[%s315 + $0x4a8] sm:$0xff]
        %v820 = vld [vmem:[%s315 + $0x4b0] sm:$0xff]
        %v821 = vld [vmem:[%s315 + $0x4b8] sm:$0xff]
        %v822 = vld [vmem:[%s315 + $0x4c0] sm:$0xff]
        %v823 = vld [vmem:[%s315 + $0x4c8] sm:$0xff]
        %v824 = vld [vmem:[%s315 + $0x4d0] sm:$0xff]
        %v825 = vld [vmem:[%s315 + $0x4d8] sm:$0xff]
        %v826 = vld [vmem:[%s315 + $0x4e0] sm:$0xff]
        %v827 = vld [vmem:[%s315 + $0x4e8] sm:$0xff]
        %v828 = vld [vmem:[%s315 + $0x4f0] sm:$0xff]
        %v829 = vld [vmem:[%s315 + $0x4f8] sm:$0xff]
        %v830 = vld [vmem:[%s315 + $0x500] sm:$0xff]
        %v831 = vld [vmem:[%s315 + $0x508] sm:$0xff]
        %v832 = vld [vmem:[%s315 + $0x510] sm:$0xff]
        %v833 = vld [vmem:[%s315 + $0x518] sm:$0xff]
        %v834 = vld [vmem:[%s315 + $0x520] sm:$0xff]
        %v835 = vld [vmem:[%s315 + $0x528] sm:$0xff]
        %v836 = vld [vmem:[%s315 + $0x530] sm:$0xff]
        %v837 = vld [vmem:[%s315 + $0x538] sm:$0xff]
        %v838 = vld [vmem:[%s315 + $0x540] sm:$0xff]
        %v839 = vld [vmem:[%s315 + $0x548] sm:$0xff]
        %v840 = vld [vmem:[%s315 + $0x550] sm:$0xff]
        %v841 = vld [vmem:[%s315 + $0x558] sm:$0xff]
        %v842 = vld [vmem:[%s315 + $0x560] sm:$0xff]
        %v843 = vld [vmem:[%s315 + $0x568] sm:$0xff]
        %v844 = vld [vmem:[%s315 + $0x570] sm:$0xff]
        %v845 = vld [vmem:[%s315 + $0x578] sm:$0xff]
        %v846 = vld [vmem:[%s315 + $0x580] sm:$0xff]
        %v847 = vld [vmem:[%s315 + $0x588] sm:$0xff]
        %v848 = vld [vmem:[%s315 + $0x590] sm:$0xff]
        %v849 = vld [vmem:[%s315 + $0x598] sm:$0xff]
        %v850 = vld [vmem:[%s315 + $0x5a0] sm:$0xff]
        %v851 = vld [vmem:[%s315 + $0x5a8] sm:$0xff]
        %v852 = vld [vmem:[%s315 + $0x5b0] sm:$0xff]
        %v853 = vld [vmem:[%s315 + $0x5b8] sm:$0xff]
        %v854 = vld [vmem:[%s315 + $0x5c0] sm:$0xff]
        %v855 = vld [vmem:[%s315 + $0x5c8] sm:$0xff]
        %v856 = vld [vmem:[%s315 + $0x5d0] sm:$0xff]
        %v857 = vld [vmem:[%s315 + $0x5d8] sm:$0xff]
        %v858 = vld [vmem:[%s315 + $0x5e0] sm:$0xff]
        %v859 = vld [vmem:[%s315 + $0x5e8] sm:$0xff]
        %v860 = vld [vmem:[%s315 + $0x5f0] sm:$0xff]
        %v861 = vld [vmem:[%s315 + $0x5f8] sm:$0xff]
        %v862 = vld [vmem:[%s315 + $0x600] sm:$0xff]
        %v863 = vld [vmem:[%s315 + $0x608] sm:$0xff]
        %v864 = vld [vmem:[%s315 + $0x610] sm:$0xff]
        %v865 = vld [vmem:[%s315 + $0x618] sm:$0xff]
        %v866 = vld [vmem:[%s315 + $0x620] sm:$0xff]
        %v867 = vld [vmem:[%s315 + $0x628] sm:$0xff]
        %v868 = vld [vmem:[%s315 + $0x630] sm:$0xff]
        %v869 = vld [vmem:[%s315 + $0x638] sm:$0xff]
        %v870 = vld [vmem:[%s315 + $0x640] sm:$0xff]
        %v871 = vld [vmem:[%s315 + $0x648] sm:$0xff]
        %v872 = vld [vmem:[%s315 + $0x650] sm:$0xff]
        %v873 = vld [vmem:[%s315 + $0x658] sm:$0xff]
        %v874 = vld [vmem:[%s315 + $0x660] sm:$0xff]
        %v875 = vld [vmem:[%s315 + $0x668] sm:$0xff]
        %v876 = vld [vmem:[%s315 + $0x670] sm:$0xff]
        %v877 = vld [vmem:[%s315 + $0x678] sm:$0xff]
        %v878 = vld [vmem:[%s315 + $0x680] sm:$0xff]
        %v879 = vld [vmem:[%s315 + $0x688] sm:$0xff]
        %v880 = vld [vmem:[%s315 + $0x690] sm:$0xff]
        %v881 = vld [vmem:[%s315 + $0x698] sm:$0xff]
        %v882 = vld [vmem:[%s315 + $0x6a0] sm:$0xff]
        %v883 = vld [vmem:[%s315 + $0x6a8] sm:$0xff]
        %v884 = vld [vmem:[%s315 + $0x6b0] sm:$0xff]
        %v885 = vld [vmem:[%s315 + $0x6b8] sm:$0xff]
        %v886 = vld [vmem:[%s315 + $0x6c0] sm:$0xff]
        %v887 = vld [vmem:[%s315 + $0x6c8] sm:$0xff]
        %v888 = vld [vmem:[%s315 + $0x6d0] sm:$0xff]
        %v889 = vld [vmem:[%s315 + $0x6d8] sm:$0xff]
        %v890 = vld [vmem:[%s315 + $0x6e0] sm:$0xff]
        %v891 = vld [vmem:[%s315 + $0x6e8] sm:$0xff]
        %v892 = vld [vmem:[%s315 + $0x6f0] sm:$0xff]
        %v893 = vld [vmem:[%s315 + $0x6f8] sm:$0xff]
        %v894 = vld [vmem:[%s315 + $0x700] sm:$0xff]
        %v895 = vld [vmem:[%s315 + $0x708] sm:$0xff]
        %v896 = vld [vmem:[%s315 + $0x710] sm:$0xff]
        %v897 = vld [vmem:[%s315 + $0x718] sm:$0xff]
        %v898 = vld [vmem:[%s315 + $0x720] sm:$0xff]
        %v899 = vld [vmem:[%s315 + $0x728] sm:$0xff]
        %v900 = vld [vmem:[%s315 + $0x730] sm:$0xff]
        %v901 = vld [vmem:[%s315 + $0x738] sm:$0xff]
        %v902 = vld [vmem:[%s315 + $0x740] sm:$0xff]
        %v903 = vld [vmem:[%s315 + $0x748] sm:$0xff]
        %v904 = vld [vmem:[%s315 + $0x750] sm:$0xff]
        %v905 = vld [vmem:[%s315 + $0x758] sm:$0xff]
        %v906 = vld [vmem:[%s315 + $0x760] sm:$0xff]
        %v907 = vld [vmem:[%s315 + $0x768] sm:$0xff]
        %v908 = vld [vmem:[%s315 + $0x770] sm:$0xff]
        %v909 = vld [vmem:[%s315 + $0x778] sm:$0xff]
        %v910 = vld [vmem:[%s315 + $0x780] sm:$0xff]
        %v911 = vld [vmem:[%s315 + $0x788] sm:$0xff]
        %v912 = vld [vmem:[%s315 + $0x790] sm:$0xff]
        %v913 = vld [vmem:[%s315 + $0x798] sm:$0xff]
        %v914 = vld [vmem:[%s315 + $0x7a0] sm:$0xff]
        %v915 = vld [vmem:[%s315 + $0x7a8] sm:$0xff]
        %v916 = vld [vmem:[%s315 + $0x7b0] sm:$0xff]
        %v917 = vld [vmem:[%s315 + $0x7b8] sm:$0xff]
        %v918 = vld [vmem:[%s315 + $0x7c0] sm:$0xff]
        %v919 = vld [vmem:[%s315 + $0x7c8] sm:$0xff]
        %v920 = vld [vmem:[%s315 + $0x7d0] sm:$0xff]
        %v921 = vld [vmem:[%s315 + $0x7d8] sm:$0xff]
        %v922 = vld [vmem:[%s315 + $0x7e0] sm:$0xff]
        %v923 = vld [vmem:[%s315 + $0x7e8] sm:$0xff]
        %v924 = vld [vmem:[%s315 + $0x7f0] sm:$0xff]
        %v925 = vld [vmem:[%s315 + $0x7f8] sm:$0xff]
        %v926 = vld [vmem:[%s315 + $0x800] sm:$0xff]
        %v927 = vld [vmem:[%s315 + $0x808] sm:$0xff]
        %v928 = vld [vmem:[%s315 + $0x810] sm:$0xff]
        %v929 = vld [vmem:[%s315 + $0x818] sm:$0xff]
        %v930 = vld [vmem:[%s315 + $0x820] sm:$0xff]
        %v931 = vld [vmem:[%s315 + $0x828] sm:$0xff]
        %v932 = vld [vmem:[%s315 + $0x830] sm:$0xff]
        %v933 = vld [vmem:[%s315 + $0x838] sm:$0xff]
        %v934 = vld [vmem:[%s315 + $0x840] sm:$0xff]
        %v935 = vld [vmem:[%s315 + $0x848] sm:$0xff]
        %v936 = vld [vmem:[%s315 + $0x850] sm:$0xff]
        %v937 = vld [vmem:[%s315 + $0x858] sm:$0xff]
        %v938 = vld [vmem:[%s315 + $0x860] sm:$0xff]
        %v939 = vld [vmem:[%s315 + $0x868] sm:$0xff]
        %v940 = vld [vmem:[%s315 + $0x870] sm:$0xff]
        %v941 = vld [vmem:[%s315 + $0x878] sm:$0xff]
        %v942 = vld [vmem:[%s315 + $0x880] sm:$0xff]
        %v943 = vld [vmem:[%s315 + $0x888] sm:$0xff]
        %v944 = vld [vmem:[%s315 + $0x890] sm:$0xff]
        %v945 = vld [vmem:[%s315 + $0x898] sm:$0xff]
        %v946 = vld [vmem:[%s315 + $0x8a0] sm:$0xff]
        %v947 = vld [vmem:[%s315 + $0x8a8] sm:$0xff]
        %v948 = vld [vmem:[%s315 + $0x8b0] sm:$0xff]
        %v949 = vld [vmem:[%s315 + $0x8b8] sm:$0xff]
        %v950 = vld [vmem:[%s315 + $0x8c0] sm:$0xff]
        %v951 = vld [vmem:[%s315 + $0x8c8] sm:$0xff]
        %v952 = vld [vmem:[%s315 + $0x8d0] sm:$0xff]
        %v953 = vld [vmem:[%s315 + $0x8d8] sm:$0xff]
        %v954 = vld [vmem:[%s315 + $0x8e0] sm:$0xff]
        %v955 = vld [vmem:[%s315 + $0x8e8] sm:$0xff]
        %v956 = vld [vmem:[%s315 + $0x8f0] sm:$0xff]
        %v957 = vld [vmem:[%s315 + $0x8f8] sm:$0xff]
        %v958 = vld [vmem:[%s315 + $0x900] sm:$0xff]
        %v959 = vld [vmem:[%s315 + $0x908] sm:$0xff]
        %v960 = vld [vmem:[%s315 + $0x910] sm:$0xff]
        %v961 = vld [vmem:[%s315 + $0x918] sm:$0xff]
        %v962 = vld [vmem:[%s315 + $0x920] sm:$0xff]
        %v963 = vld [vmem:[%s315 + $0x928] sm:$0xff]
        %v964 = vld [vmem:[%s315 + $0x930] sm:$0xff]
        %v965 = vld [vmem:[%s315 + $0x938] sm:$0xff]
        %v966 = vld [vmem:[%s315 + $0x940] sm:$0xff]
        %v967 = vld [vmem:[%s315 + $0x948] sm:$0xff]
        %v968 = vld [vmem:[%s315 + $0x950] sm:$0x77]
        %v969 = vld [vmem:[%s315 + $0x958] sm:$0x77]
        %v998 = vunpack.c.l.b16 %v642
        %v999 = vunpack.c.h.b16 %v642
        %v1000 = vunpack.c.l.b16 %v643
        %v1001 = vunpack.c.h.b16 %v643
        %v1002 = vunpack.c.l.b16 %v644
        %v1003 = vunpack.c.h.b16 %v644
        %v1004 = vunpack.c.l.b16 %v645
        %v1005 = vunpack.c.h.b16 %v645
        %v1006 = vunpack.c.l.b16 %v646
        %v1007 = vunpack.c.h.b16 %v646
        %v1008 = vunpack.c.l.b16 %v647
        %v1009 = vunpack.c.h.b16 %v647
        %v1010 = vunpack.c.l.b16 %v648
        %v1011 = vunpack.c.h.b16 %v648
        %v1012 = vunpack.c.l.b16 %v649
        %v1013 = vunpack.c.h.b16 %v649
        %v1014 = vunpack.c.l.b16 %v650
        %v1015 = vunpack.c.h.b16 %v650
        %v1016 = vunpack.c.l.b16 %v651
        %v1017 = vunpack.c.h.b16 %v651
        %v1018 = vunpack.c.l.b16 %v652
        %v1019 = vunpack.c.h.b16 %v652
        %v1020 = vunpack.c.l.b16 %v653
        %v1021 = vunpack.c.h.b16 %v653
        %v1022 = vunpack.c.l.b16 %v654
        %v1023 = vunpack.c.h.b16 %v654
        %v1024 = vunpack.c.l.b16 %v655
        %v1025 = vunpack.c.h.b16 %v655
        %v1026 = vunpack.c.l.b16 %v656
        %v1027 = vunpack.c.h.b16 %v656
        %v1028 = vunpack.c.l.b16 %v657
        %v1029 = vunpack.c.h.b16 %v657
        %v1030 = vunpack.c.l.b16 %v658
        %v1031 = vunpack.c.h.b16 %v658
        %v1032 = vunpack.c.l.b16 %v659
        %v1033 = vunpack.c.h.b16 %v659
        %v1034 = vunpack.c.l.b16 %v660
        %v1035 = vunpack.c.h.b16 %v660
        %v1036 = vunpack.c.l.b16 %v661
        %v1037 = vunpack.c.h.b16 %v661
        %v1038 = vunpack.c.l.b16 %v662
        %v1039 = vunpack.c.h.b16 %v662
        %v1040 = vunpack.c.l.b16 %v663
        %v1041 = vunpack.c.h.b16 %v663
        %v1042 = vunpack.c.l.b16 %v664
        %v1043 = vunpack.c.h.b16 %v664
        %v1044 = vunpack.c.l.b16 %v665
        %v1045 = vunpack.c.h.b16 %v665
        %v1046 = vunpack.c.l.b16 %v666
        %v1047 = vunpack.c.h.b16 %v666
        %v1048 = vunpack.c.l.b16 %v667
        %v1049 = vunpack.c.h.b16 %v667
        %v1050 = vunpack.c.l.b16 %v668
        %v1051 = vunpack.c.h.b16 %v668
        %v1052 = vunpack.c.l.b16 %v669
        %v1053 = vunpack.c.h.b16 %v669
        %v1054 = vpack.c.b16 %v1002, %v998
        %v1055 = vpack.c.b16 %v1003, %v999
        %v1056 = vpack.c.b16 %v1004, %v1000
        %v1057 = vpack.c.b16 %v1005, %v1001
        %v1058 = vpack.c.b16 %v1010, %v1006
        %v1059 = vpack.c.b16 %v1011, %v1007
        %v1060 = vpack.c.b16 %v1012, %v1008
        %v1061 = vpack.c.b16 %v1013, %v1009
        %v1062 = vpack.c.b16 %v1018, %v1014
        %v1063 = vpack.c.b16 %v1019, %v1015
        %v1064 = vpack.c.b16 %v1020, %v1016
        %v1065 = vpack.c.b16 %v1021, %v1017
        %v1066 = vpack.c.b16 %v1026, %v1022
        %v1067 = vpack.c.b16 %v1027, %v1023
        %v1068 = vpack.c.b16 %v1028, %v1024
        %v1069 = vpack.c.b16 %v1029, %v1025
        %v1070 = vpack.c.b16 %v1034, %v1030
        %v1071 = vpack.c.b16 %v1035, %v1031
        %v1072 = vpack.c.b16 %v1036, %v1032
        %v1073 = vpack.c.b16 %v1037, %v1033
        %v1074 = vpack.c.b16 %v1042, %v1038
        %v1075 = vpack.c.b16 %v1043, %v1039
        %v1076 = vpack.c.b16 %v1044, %v1040
        %v1077 = vpack.c.b16 %v1045, %v1041
        %v1078 = vpack.c.b16 %v1050, %v1046
        %v1079 = vpack.c.b16 %v1051, %v1047
        %v1080 = vpack.c.b16 %v1052, %v1048
        %v1081 = vpack.c.b16 %v1053, %v1049
        %v1410 = vunpack.c.l.b16 %v670
        %v1411 = vunpack.c.h.b16 %v670
        %v1412 = vunpack.c.l.b16 %v671
        %v1413 = vunpack.c.h.b16 %v671
        %v1414 = vunpack.c.l.b16 %v672
        %v1415 = vunpack.c.h.b16 %v672
        %v1416 = vunpack.c.l.b16 %v673
        %v1417 = vunpack.c.h.b16 %v673
        %v1418 = vunpack.c.l.b16 %v674
        %v1419 = vunpack.c.h.b16 %v674
        %v1420 = vunpack.c.l.b16 %v675
        %v1421 = vunpack.c.h.b16 %v675
        %v1422 = vunpack.c.l.b16 %v676
        %v1423 = vunpack.c.h.b16 %v676
        %v1424 = vunpack.c.l.b16 %v677
        %v1425 = vunpack.c.h.b16 %v677
        %v1426 = vunpack.c.l.b16 %v678
        %v1427 = vunpack.c.h.b16 %v678
        %v1428 = vunpack.c.l.b16 %v679
        %v1429 = vunpack.c.h.b16 %v679
        %v1430 = vunpack.c.l.b16 %v680
        %v1431 = vunpack.c.h.b16 %v680
        %v1432 = vunpack.c.l.b16 %v681
        %v1433 = vunpack.c.h.b16 %v681
        %v1434 = vunpack.c.l.b16 %v682
        %v1435 = vunpack.c.h.b16 %v682
        %v1436 = vunpack.c.l.b16 %v683
        %v1437 = vunpack.c.h.b16 %v683
        %v1438 = vunpack.c.l.b16 %v684
        %v1439 = vunpack.c.h.b16 %v684
        %v1440 = vunpack.c.l.b16 %v685
        %v1441 = vunpack.c.h.b16 %v685
        %v1442 = vunpack.c.l.b16 %v686
        %v1443 = vunpack.c.h.b16 %v686
        %v1444 = vunpack.c.l.b16 %v687
        %v1445 = vunpack.c.h.b16 %v687
        %v1446 = vunpack.c.l.b16 %v688
        %v1447 = vunpack.c.h.b16 %v688
        %v1448 = vunpack.c.l.b16 %v689
        %v1449 = vunpack.c.h.b16 %v689
        %v1450 = vunpack.c.l.b16 %v690
        %v1451 = vunpack.c.h.b16 %v690
        %v1452 = vunpack.c.l.b16 %v691
        %v1453 = vunpack.c.h.b16 %v691
        %v1454 = vunpack.c.l.b16 %v692
        %v1455 = vunpack.c.h.b16 %v692
        %v1456 = vunpack.c.l.b16 %v693
        %v1457 = vunpack.c.h.b16 %v693
        %v1458 = vunpack.c.l.b16 %v694
        %v1459 = vunpack.c.h.b16 %v694
        %v1460 = vunpack.c.l.b16 %v695
        %v1461 = vunpack.c.h.b16 %v695
        %v1462 = vunpack.c.l.b16 %v696
        %v1463 = vunpack.c.h.b16 %v696
        %v1464 = vunpack.c.l.b16 %v697
        %v1465 = vunpack.c.h.b16 %v697
        %v1466 = vunpack.c.l.b16 %v698
        %v1467 = vunpack.c.h.b16 %v698
        %v1468 = vunpack.c.l.b16 %v699
        %v1469 = vunpack.c.h.b16 %v699
        %v1470 = vunpack.c.l.b16 %v700
        %v1471 = vunpack.c.h.b16 %v700
        %v1472 = vunpack.c.l.b16 %v701
        %v1473 = vunpack.c.h.b16 %v701
        %v1474 = vunpack.c.l.b16 %v702
        %v1475 = vunpack.c.h.b16 %v702
        %v1476 = vunpack.c.l.b16 %v703
        %v1477 = vunpack.c.h.b16 %v703
        %v1478 = vunpack.c.l.b16 %v704
        %v1479 = vunpack.c.h.b16 %v704
        %v1480 = vunpack.c.l.b16 %v705
        %v1481 = vunpack.c.h.b16 %v705
        %v1482 = vunpack.c.l.b16 %v706
        %v1483 = vunpack.c.h.b16 %v706
        %v1484 = vunpack.c.l.b16 %v707
        %v1485 = vunpack.c.h.b16 %v707
        %v1486 = vunpack.c.l.b16 %v708
        %v1487 = vunpack.c.h.b16 %v708
        %v1488 = vunpack.c.l.b16 %v709
        %v1489 = vunpack.c.h.b16 %v709
        %v1490 = vunpack.c.l.b16 %v710
        %v1491 = vunpack.c.h.b16 %v710
        %v1492 = vunpack.c.l.b16 %v711
        %v1493 = vunpack.c.h.b16 %v711
        %v1494 = vunpack.c.l.b16 %v712
        %v1495 = vunpack.c.h.b16 %v712
        %v1496 = vunpack.c.l.b16 %v713
        %v1497 = vunpack.c.h.b16 %v713
        %v1498 = vunpack.c.l.b16 %v714
        %v1499 = vunpack.c.h.b16 %v714
        %v1500 = vunpack.c.l.b16 %v715
        %v1501 = vunpack.c.h.b16 %v715
        %v1502 = vunpack.c.l.b16 %v716
        %v1503 = vunpack.c.h.b16 %v716
        %v1504 = vunpack.c.l.b16 %v717
        %v1505 = vunpack.c.h.b16 %v717
        %v1506 = vunpack.c.l.b16 %v718
        %v1507 = vunpack.c.h.b16 %v718
        %v1508 = vunpack.c.l.b16 %v719
        %v1509 = vunpack.c.h.b16 %v719
        %v1510 = vunpack.c.l.b16 %v720
        %v1511 = vunpack.c.h.b16 %v720
        %v1512 = vunpack.c.l.b16 %v721
        %v1513 = vunpack.c.h.b16 %v721
        %v1514 = vunpack.c.l.b16 %v722
        %v1515 = vunpack.c.h.b16 %v722
        %v1516 = vunpack.c.l.b16 %v723
        %v1517 = vunpack.c.h.b16 %v723
        %v1518 = vunpack.c.l.b16 %v724
        %v1519 = vunpack.c.h.b16 %v724
        %v1520 = vunpack.c.l.b16 %v725
        %v1521 = vunpack.c.h.b16 %v725
        %v1522 = vunpack.c.l.b16 %v726
        %v1523 = vunpack.c.h.b16 %v726
        %v1524 = vunpack.c.l.b16 %v727
        %v1525 = vunpack.c.h.b16 %v727
        %v1526 = vunpack.c.l.b16 %v728
        %v1527 = vunpack.c.h.b16 %v728
        %v1528 = vunpack.c.l.b16 %v729
        %v1529 = vunpack.c.h.b16 %v729
        %v1530 = vunpack.c.l.b16 %v730
        %v1531 = vunpack.c.h.b16 %v730
        %v1532 = vunpack.c.l.b16 %v731
        %v1533 = vunpack.c.h.b16 %v731
        %v1534 = vunpack.c.l.b16 %v732
        %v1535 = vunpack.c.h.b16 %v732
        %v1536 = vunpack.c.l.b16 %v733
        %v1537 = vunpack.c.h.b16 %v733
        %v1538 = vunpack.c.l.b16 %v734
        %v1539 = vunpack.c.h.b16 %v734
        %v1540 = vunpack.c.l.b16 %v735
        %v1541 = vunpack.c.h.b16 %v735
        %v1542 = vunpack.c.l.b16 %v736
        %v1543 = vunpack.c.h.b16 %v736
        %v1544 = vunpack.c.l.b16 %v737
        %v1545 = vunpack.c.h.b16 %v737
        %v1546 = vunpack.c.l.b16 %v738
        %v1547 = vunpack.c.h.b16 %v738
        %v1548 = vunpack.c.l.b16 %v739
        %v1549 = vunpack.c.h.b16 %v739
        %v1550 = vunpack.c.l.b16 %v740
        %v1551 = vunpack.c.h.b16 %v740
        %v1552 = vunpack.c.l.b16 %v741
        %v1553 = vunpack.c.h.b16 %v741
        %v1554 = vunpack.c.l.b16 %v742
        %v1555 = vunpack.c.h.b16 %v742
        %v1556 = vunpack.c.l.b16 %v743
        %v1557 = vunpack.c.h.b16 %v743
        %v1558 = vunpack.c.l.b16 %v744
        %v1559 = vunpack.c.h.b16 %v744
        %v1560 = vunpack.c.l.b16 %v745
        %v1561 = vunpack.c.h.b16 %v745
        %v1562 = vunpack.c.l.b16 %v746
        %v1563 = vunpack.c.h.b16 %v746
        %v1564 = vunpack.c.l.b16 %v747
        %v1565 = vunpack.c.h.b16 %v747
        %v1566 = vunpack.c.l.b16 %v748
        %v1567 = vunpack.c.h.b16 %v748
        %v1568 = vunpack.c.l.b16 %v749
        %v1569 = vunpack.c.h.b16 %v749
        %v1570 = vunpack.c.l.b16 %v750
        %v1571 = vunpack.c.h.b16 %v750
        %v1572 = vunpack.c.l.b16 %v751
        %v1573 = vunpack.c.h.b16 %v751
        %v1574 = vunpack.c.l.b16 %v752
        %v1575 = vunpack.c.h.b16 %v752
        %v1576 = vunpack.c.l.b16 %v753
        %v1577 = vunpack.c.h.b16 %v753
        %v1578 = vunpack.c.l.b16 %v754
        %v1579 = vunpack.c.h.b16 %v754
        %v1580 = vunpack.c.l.b16 %v755
        %v1581 = vunpack.c.h.b16 %v755
        %v1582 = vunpack.c.l.b16 %v756
        %v1583 = vunpack.c.h.b16 %v756
        %v1584 = vunpack.c.l.b16 %v757
        %v1585 = vunpack.c.h.b16 %v757
        %v1586 = vunpack.c.l.b16 %v758
        %v1587 = vunpack.c.h.b16 %v758
        %v1588 = vunpack.c.l.b16 %v759
        %v1589 = vunpack.c.h.b16 %v759
        %v1590 = vunpack.c.l.b16 %v760
        %v1591 = vunpack.c.h.b16 %v760
        %v1592 = vunpack.c.l.b16 %v761
        %v1593 = vunpack.c.h.b16 %v761
        %v1594 = vunpack.c.l.b16 %v762
        %v1595 = vunpack.c.h.b16 %v762
        %v1596 = vunpack.c.l.b16 %v763
        %v1597 = vunpack.c.h.b16 %v763
        %v1598 = vunpack.c.l.b16 %v764
        %v1599 = vunpack.c.h.b16 %v764
        %v1600 = vunpack.c.l.b16 %v765
        %v1601 = vunpack.c.h.b16 %v765
        %v1602 = vunpack.c.l.b16 %v766
        %v1603 = vunpack.c.h.b16 %v766
        %v1604 = vunpack.c.l.b16 %v767
        %v1605 = vunpack.c.h.b16 %v767
        %v1606 = vunpack.c.l.b16 %v768
        %v1607 = vunpack.c.h.b16 %v768
        %v1608 = vunpack.c.l.b16 %v769
        %v1609 = vunpack.c.h.b16 %v769
        %v1610 = vunpack.c.l.b16 %v770
        %v1611 = vunpack.c.h.b16 %v770
        %v1612 = vunpack.c.l.b16 %v771
        %v1613 = vunpack.c.h.b16 %v771
        %v1614 = vunpack.c.l.b16 %v772
        %v1615 = vunpack.c.h.b16 %v772
        %v1616 = vunpack.c.l.b16 %v773
        %v1617 = vunpack.c.h.b16 %v773
        %v1618 = vunpack.c.l.b16 %v774
        %v1619 = vunpack.c.h.b16 %v774
        %v1620 = vunpack.c.l.b16 %v775
        %v1621 = vunpack.c.h.b16 %v775
        %v1622 = vunpack.c.l.b16 %v776
        %v1623 = vunpack.c.h.b16 %v776
        %v1624 = vunpack.c.l.b16 %v777
        %v1625 = vunpack.c.h.b16 %v777
        %v1626 = vunpack.c.l.b16 %v778
        %v1627 = vunpack.c.h.b16 %v778
        %v1628 = vunpack.c.l.b16 %v779
        %v1629 = vunpack.c.h.b16 %v779
        %v1630 = vunpack.c.l.b16 %v780
        %v1631 = vunpack.c.h.b16 %v780
        %v1632 = vunpack.c.l.b16 %v781
        %v1633 = vunpack.c.h.b16 %v781
        %v1634 = vunpack.c.l.b16 %v782
        %v1635 = vunpack.c.h.b16 %v782
        %v1636 = vunpack.c.l.b16 %v783
        %v1637 = vunpack.c.h.b16 %v783
        %v1638 = vunpack.c.l.b16 %v784
        %v1639 = vunpack.c.h.b16 %v784
        %v1640 = vunpack.c.l.b16 %v785
        %v1641 = vunpack.c.h.b16 %v785
        %v1642 = vunpack.c.l.b16 %v786
        %v1643 = vunpack.c.h.b16 %v786
        %v1644 = vunpack.c.l.b16 %v787
        %v1645 = vunpack.c.h.b16 %v787
        %v1646 = vunpack.c.l.b16 %v788
        %v1647 = vunpack.c.h.b16 %v788
        %v1648 = vunpack.c.l.b16 %v789
        %v1649 = vunpack.c.h.b16 %v789
        %v1650 = vunpack.c.l.b16 %v790
        %v1651 = vunpack.c.h.b16 %v790
        %v1652 = vunpack.c.l.b16 %v791
        %v1653 = vunpack.c.h.b16 %v791
        %v1654 = vunpack.c.l.b16 %v792
        %v1655 = vunpack.c.h.b16 %v792
        %v1656 = vunpack.c.l.b16 %v793
        %v1657 = vunpack.c.h.b16 %v793
        %v1658 = vunpack.c.l.b16 %v794
        %v1659 = vunpack.c.h.b16 %v794
        %v1660 = vunpack.c.l.b16 %v795
        %v1661 = vunpack.c.h.b16 %v795
        %v1662 = vunpack.c.l.b16 %v796
        %v1663 = vunpack.c.h.b16 %v796
        %v1664 = vunpack.c.l.b16 %v797
        %v1665 = vunpack.c.h.b16 %v797
        %v1666 = vunpack.c.l.b16 %v798
        %v1667 = vunpack.c.h.b16 %v798
        %v1668 = vunpack.c.l.b16 %v799
        %v1669 = vunpack.c.h.b16 %v799
        %v1670 = vunpack.c.l.b16 %v800
        %v1671 = vunpack.c.h.b16 %v800
        %v1672 = vunpack.c.l.b16 %v801
        %v1673 = vunpack.c.h.b16 %v801
        %v1674 = vunpack.c.l.b16 %v802
        %v1675 = vunpack.c.h.b16 %v802
        %v1676 = vunpack.c.l.b16 %v803
        %v1677 = vunpack.c.h.b16 %v803
        %v1678 = vunpack.c.l.b16 %v804
        %v1679 = vunpack.c.h.b16 %v804
        %v1680 = vunpack.c.l.b16 %v805
        %v1681 = vunpack.c.h.b16 %v805
        %v1682 = vunpack.c.l.b16 %v806
        %v1683 = vunpack.c.h.b16 %v806
        %v1684 = vunpack.c.l.b16 %v807
        %v1685 = vunpack.c.h.b16 %v807
        %v1686 = vunpack.c.l.b16 %v808
        %v1687 = vunpack.c.h.b16 %v808
        %v1688 = vunpack.c.l.b16 %v809
        %v1689 = vunpack.c.h.b16 %v809
        %v1690 = vunpack.c.l.b16 %v810
        %v1691 = vunpack.c.h.b16 %v810
        %v1692 = vunpack.c.l.b16 %v811
        %v1693 = vunpack.c.h.b16 %v811
        %v1694 = vunpack.c.l.b16 %v812
        %v1695 = vunpack.c.h.b16 %v812
        %v1696 = vunpack.c.l.b16 %v813
        %v1697 = vunpack.c.h.b16 %v813
        %v1698 = vunpack.c.l.b16 %v814
        %v1699 = vunpack.c.h.b16 %v814
        %v1700 = vunpack.c.l.b16 %v815
        %v1701 = vunpack.c.h.b16 %v815
        %v1702 = vunpack.c.l.b16 %v816
        %v1703 = vunpack.c.h.b16 %v816
        %v1704 = vunpack.c.l.b16 %v817
        %v1705 = vunpack.c.h.b16 %v817
        %v1706 = vunpack.c.l.b16 %v818
        %v1707 = vunpack.c.h.b16 %v818
        %v1708 = vunpack.c.l.b16 %v819
        %v1709 = vunpack.c.h.b16 %v819
        %v1710 = vunpack.c.l.b16 %v820
        %v1711 = vunpack.c.h.b16 %v820
        %v1712 = vunpack.c.l.b16 %v821
        %v1713 = vunpack.c.h.b16 %v821
        %v1714 = vunpack.c.l.b16 %v822
        %v1715 = vunpack.c.h.b16 %v822
        %v1716 = vunpack.c.l.b16 %v823
        %v1717 = vunpack.c.h.b16 %v823
        %v1718 = vunpack.c.l.b16 %v824
        %v1719 = vunpack.c.h.b16 %v824
        %v1720 = vunpack.c.l.b16 %v825
        %v1721 = vunpack.c.h.b16 %v825
        %v1722 = vunpack.c.l.b16 %v826
        %v1723 = vunpack.c.h.b16 %v826
        %v1724 = vunpack.c.l.b16 %v827
        %v1725 = vunpack.c.h.b16 %v827
        %v1726 = vunpack.c.l.b16 %v828
        %v1727 = vunpack.c.h.b16 %v828
        %v1728 = vunpack.c.l.b16 %v829
        %v1729 = vunpack.c.h.b16 %v829
        %v1730 = vunpack.c.l.b16 %v830
        %v1731 = vunpack.c.h.b16 %v830
        %v1732 = vunpack.c.l.b16 %v831
        %v1733 = vunpack.c.h.b16 %v831
        %v1734 = vunpack.c.l.b16 %v832
        %v1735 = vunpack.c.h.b16 %v832
        %v1736 = vunpack.c.l.b16 %v833
        %v1737 = vunpack.c.h.b16 %v833
        %v1738 = vunpack.c.l.b16 %v834
        %v1739 = vunpack.c.h.b16 %v834
        %v1740 = vunpack.c.l.b16 %v835
        %v1741 = vunpack.c.h.b16 %v835
        %v1742 = vunpack.c.l.b16 %v836
        %v1743 = vunpack.c.h.b16 %v836
        %v1744 = vunpack.c.l.b16 %v837
        %v1745 = vunpack.c.h.b16 %v837
        %v1746 = vunpack.c.l.b16 %v838
        %v1747 = vunpack.c.h.b16 %v838
        %v1748 = vunpack.c.l.b16 %v839
        %v1749 = vunpack.c.h.b16 %v839
        %v1750 = vunpack.c.l.b16 %v840
        %v1751 = vunpack.c.h.b16 %v840
        %v1752 = vunpack.c.l.b16 %v841
        %v1753 = vunpack.c.h.b16 %v841
        %v1754 = vunpack.c.l.b16 %v842
        %v1755 = vunpack.c.h.b16 %v842
        %v1756 = vunpack.c.l.b16 %v843
        %v1757 = vunpack.c.h.b16 %v843
        %v1758 = vunpack.c.l.b16 %v844
        %v1759 = vunpack.c.h.b16 %v844
        %v1760 = vunpack.c.l.b16 %v845
        %v1761 = vunpack.c.h.b16 %v845
        %v1762 = vunpack.c.l.b16 %v846
        %v1763 = vunpack.c.h.b16 %v846
        %v1764 = vunpack.c.l.b16 %v847
        %v1765 = vunpack.c.h.b16 %v847
        %v1766 = vunpack.c.l.b16 %v848
        %v1767 = vunpack.c.h.b16 %v848
        %v1768 = vunpack.c.l.b16 %v849
        %v1769 = vunpack.c.h.b16 %v849
        %v1770 = vunpack.c.l.b16 %v850
        %v1771 = vunpack.c.h.b16 %v850
        %v1772 = vunpack.c.l.b16 %v851
        %v1773 = vunpack.c.h.b16 %v851
        %v1774 = vunpack.c.l.b16 %v852
        %v1775 = vunpack.c.h.b16 %v852
        %v1776 = vunpack.c.l.b16 %v853
        %v1777 = vunpack.c.h.b16 %v853
        %v1778 = vunpack.c.l.b16 %v854
        %v1779 = vunpack.c.h.b16 %v854
        %v1780 = vunpack.c.l.b16 %v855
        %v1781 = vunpack.c.h.b16 %v855
        %v1782 = vunpack.c.l.b16 %v856
        %v1783 = vunpack.c.h.b16 %v856
        %v1784 = vunpack.c.l.b16 %v857
        %v1785 = vunpack.c.h.b16 %v857
        %v1786 = vunpack.c.l.b16 %v858
        %v1787 = vunpack.c.h.b16 %v858
        %v1788 = vunpack.c.l.b16 %v859
        %v1789 = vunpack.c.h.b16 %v859
        %v1790 = vunpack.c.l.b16 %v860
        %v1791 = vunpack.c.h.b16 %v860
        %v1792 = vunpack.c.l.b16 %v861
        %v1793 = vunpack.c.h.b16 %v861
        %v1794 = vunpack.c.l.b16 %v862
        %v1795 = vunpack.c.h.b16 %v862
        %v1796 = vunpack.c.l.b16 %v863
        %v1797 = vunpack.c.h.b16 %v863
        %v1798 = vunpack.c.l.b16 %v864
        %v1799 = vunpack.c.h.b16 %v864
        %v1800 = vunpack.c.l.b16 %v865
        %v1801 = vunpack.c.h.b16 %v865
        %v1802 = vunpack.c.l.b16 %v866
        %v1803 = vunpack.c.h.b16 %v866
        %v1804 = vunpack.c.l.b16 %v867
        %v1805 = vunpack.c.h.b16 %v867
        %v1806 = vunpack.c.l.b16 %v868
        %v1807 = vunpack.c.h.b16 %v868
        %v1808 = vunpack.c.l.b16 %v869
        %v1809 = vunpack.c.h.b16 %v869
        %v1810 = vunpack.c.l.b16 %v870
        %v1811 = vunpack.c.h.b16 %v870
        %v1812 = vunpack.c.l.b16 %v871
        %v1813 = vunpack.c.h.b16 %v871
        %v1814 = vunpack.c.l.b16 %v872
        %v1815 = vunpack.c.h.b16 %v872
        %v1816 = vunpack.c.l.b16 %v873
        %v1817 = vunpack.c.h.b16 %v873
        %v1818 = vunpack.c.l.b16 %v874
        %v1819 = vunpack.c.h.b16 %v874
        %v1820 = vunpack.c.l.b16 %v875
        %v1821 = vunpack.c.h.b16 %v875
        %v1822 = vunpack.c.l.b16 %v876
        %v1823 = vunpack.c.h.b16 %v876
        %v1824 = vunpack.c.l.b16 %v877
        %v1825 = vunpack.c.h.b16 %v877
        %v1826 = vunpack.c.l.b16 %v878
        %v1827 = vunpack.c.h.b16 %v878
        %v1828 = vunpack.c.l.b16 %v879
        %v1829 = vunpack.c.h.b16 %v879
        %v1830 = vunpack.c.l.b16 %v880
        %v1831 = vunpack.c.h.b16 %v880
        %v1832 = vunpack.c.l.b16 %v881
        %v1833 = vunpack.c.h.b16 %v881
        %v1834 = vunpack.c.l.b16 %v882
        %v1835 = vunpack.c.h.b16 %v882
        %v1836 = vunpack.c.l.b16 %v883
        %v1837 = vunpack.c.h.b16 %v883
        %v1838 = vunpack.c.l.b16 %v884
        %v1839 = vunpack.c.h.b16 %v884
        %v1840 = vunpack.c.l.b16 %v885
        %v1841 = vunpack.c.h.b16 %v885
        %v1842 = vunpack.c.l.b16 %v886
        %v1843 = vunpack.c.h.b16 %v886
        %v1844 = vunpack.c.l.b16 %v887
        %v1845 = vunpack.c.h.b16 %v887
        %v1846 = vunpack.c.l.b16 %v888
        %v1847 = vunpack.c.h.b16 %v888
        %v1848 = vunpack.c.l.b16 %v889
        %v1849 = vunpack.c.h.b16 %v889
        %v1850 = vunpack.c.l.b16 %v890
        %v1851 = vunpack.c.h.b16 %v890
        %v1852 = vunpack.c.l.b16 %v891
        %v1853 = vunpack.c.h.b16 %v891
        %v1854 = vunpack.c.l.b16 %v892
        %v1855 = vunpack.c.h.b16 %v892
        %v1856 = vunpack.c.l.b16 %v893
        %v1857 = vunpack.c.h.b16 %v893
        %v1858 = vunpack.c.l.b16 %v894
        %v1859 = vunpack.c.h.b16 %v894
        %v1860 = vunpack.c.l.b16 %v895
        %v1861 = vunpack.c.h.b16 %v895
        %v1862 = vunpack.c.l.b16 %v896
        %v1863 = vunpack.c.h.b16 %v896
        %v1864 = vunpack.c.l.b16 %v897
        %v1865 = vunpack.c.h.b16 %v897
        %v1866 = vunpack.c.l.b16 %v898
        %v1867 = vunpack.c.h.b16 %v898
        %v1868 = vunpack.c.l.b16 %v899
        %v1869 = vunpack.c.h.b16 %v899
        %v1870 = vunpack.c.l.b16 %v900
        %v1871 = vunpack.c.h.b16 %v900
        %v1872 = vunpack.c.l.b16 %v901
        %v1873 = vunpack.c.h.b16 %v901
        %v1874 = vunpack.c.l.b16 %v902
        %v1875 = vunpack.c.h.b16 %v902
        %v1876 = vunpack.c.l.b16 %v903
        %v1877 = vunpack.c.h.b16 %v903
        %v1878 = vunpack.c.l.b16 %v904
        %v1879 = vunpack.c.h.b16 %v904
        %v1880 = vunpack.c.l.b16 %v905
        %v1881 = vunpack.c.h.b16 %v905
        %v1882 = vunpack.c.l.b16 %v906
        %v1883 = vunpack.c.h.b16 %v906
        %v1884 = vunpack.c.l.b16 %v907
        %v1885 = vunpack.c.h.b16 %v907
        %v1886 = vunpack.c.l.b16 %v908
        %v1887 = vunpack.c.h.b16 %v908
        %v1888 = vunpack.c.l.b16 %v909
        %v1889 = vunpack.c.h.b16 %v909
        %v1890 = vunpack.c.l.b16 %v910
        %v1891 = vunpack.c.h.b16 %v910
        %v1892 = vunpack.c.l.b16 %v911
        %v1893 = vunpack.c.h.b16 %v911
        %v1894 = vunpack.c.l.b16 %v912
        %v1895 = vunpack.c.h.b16 %v912
        %v1896 = vunpack.c.l.b16 %v913
        %v1897 = vunpack.c.h.b16 %v913
        %v1898 = vunpack.c.l.b16 %v914
        %v1899 = vunpack.c.h.b16 %v914
        %v1900 = vunpack.c.l.b16 %v915
        %v1901 = vunpack.c.h.b16 %v915
        %v1902 = vunpack.c.l.b16 %v916
        %v1903 = vunpack.c.h.b16 %v916
        %v1904 = vunpack.c.l.b16 %v917
        %v1905 = vunpack.c.h.b16 %v917
        %v1906 = vunpack.c.l.b16 %v918
        %v1907 = vunpack.c.h.b16 %v918
        %v1908 = vunpack.c.l.b16 %v919
        %v1909 = vunpack.c.h.b16 %v919
        %v1910 = vunpack.c.l.b16 %v920
        %v1911 = vunpack.c.h.b16 %v920
        %v1912 = vunpack.c.l.b16 %v921
        %v1913 = vunpack.c.h.b16 %v921
        %v1914 = vunpack.c.l.b16 %v922
        %v1915 = vunpack.c.h.b16 %v922
        %v1916 = vunpack.c.l.b16 %v923
        %v1917 = vunpack.c.h.b16 %v923
        %v1918 = vunpack.c.l.b16 %v924
        %v1919 = vunpack.c.h.b16 %v924
        %v1920 = vunpack.c.l.b16 %v925
        %v1921 = vunpack.c.h.b16 %v925
        %v1922 = vunpack.c.l.b16 %v926
        %v1923 = vunpack.c.h.b16 %v926
        %v1924 = vunpack.c.l.b16 %v927
        %v1925 = vunpack.c.h.b16 %v927
        %v1926 = vunpack.c.l.b16 %v928
        %v1927 = vunpack.c.h.b16 %v928
        %v1928 = vunpack.c.l.b16 %v929
        %v1929 = vunpack.c.h.b16 %v929
        %v1930 = vunpack.c.l.b16 %v930
        %v1931 = vunpack.c.h.b16 %v930
        %v1932 = vunpack.c.l.b16 %v931
        %v1933 = vunpack.c.h.b16 %v931
        %v1934 = vunpack.c.l.b16 %v932
        %v1935 = vunpack.c.h.b16 %v932
        %v1936 = vunpack.c.l.b16 %v933
        %v1937 = vunpack.c.h.b16 %v933
        %v1938 = vunpack.c.l.b16 %v934
        %v1939 = vunpack.c.h.b16 %v934
        %v1940 = vunpack.c.l.b16 %v935
        %v1941 = vunpack.c.h.b16 %v935
        %v1942 = vunpack.c.l.b16 %v936
        %v1943 = vunpack.c.h.b16 %v936
        %v1944 = vunpack.c.l.b16 %v937
        %v1945 = vunpack.c.h.b16 %v937
        %v1946 = vunpack.c.l.b16 %v938
        %v1947 = vunpack.c.h.b16 %v938
        %v1948 = vunpack.c.l.b16 %v939
        %v1949 = vunpack.c.h.b16 %v939
        %v1950 = vunpack.c.l.b16 %v940
        %v1951 = vunpack.c.h.b16 %v940
        %v1952 = vunpack.c.l.b16 %v941
        %v1953 = vunpack.c.h.b16 %v941
        %v1954 = vunpack.c.l.b16 %v942
        %v1955 = vunpack.c.h.b16 %v942
        %v1956 = vunpack.c.l.b16 %v943
        %v1957 = vunpack.c.h.b16 %v943
        %v1958 = vunpack.c.l.b16 %v944
        %v1959 = vunpack.c.h.b16 %v944
        %v1960 = vunpack.c.l.b16 %v945
        %v1961 = vunpack.c.h.b16 %v945
        %v1962 = vunpack.c.l.b16 %v946
        %v1963 = vunpack.c.h.b16 %v946
        %v1964 = vunpack.c.l.b16 %v947
        %v1965 = vunpack.c.h.b16 %v947
        %v1966 = vunpack.c.l.b16 %v948
        %v1967 = vunpack.c.h.b16 %v948
        %v1968 = vunpack.c.l.b16 %v949
        %v1969 = vunpack.c.h.b16 %v949
        %v1970 = vunpack.c.l.b16 %v950
        %v1971 = vunpack.c.h.b16 %v950
        %v1972 = vunpack.c.l.b16 %v951
        %v1973 = vunpack.c.h.b16 %v951
        %v1974 = vunpack.c.l.b16 %v952
        %v1975 = vunpack.c.h.b16 %v952
        %v1976 = vunpack.c.l.b16 %v953
        %v1977 = vunpack.c.h.b16 %v953
        %v1978 = vunpack.c.l.b16 %v954
        %v1979 = vunpack.c.h.b16 %v954
        %v1980 = vunpack.c.l.b16 %v955
        %v1981 = vunpack.c.h.b16 %v955
        %v1982 = vunpack.c.l.b16 %v956
        %v1983 = vunpack.c.h.b16 %v956
        %v1984 = vunpack.c.l.b16 %v957
        %v1985 = vunpack.c.h.b16 %v957
        %v1986 = vunpack.c.l.b16 %v958
        %v1987 = vunpack.c.h.b16 %v958
        %v1988 = vunpack.c.l.b16 %v959
        %v1989 = vunpack.c.h.b16 %v959
        %v1990 = vunpack.c.l.b16 %v960
        %v1991 = vunpack.c.h.b16 %v960
        %v1992 = vunpack.c.l.b16 %v961
        %v1993 = vunpack.c.h.b16 %v961
        %v1994 = vunpack.c.l.b16 %v962
        %v1995 = vunpack.c.h.b16 %v962
        %v1996 = vunpack.c.l.b16 %v963
        %v1997 = vunpack.c.h.b16 %v963
        %v1998 = vunpack.c.l.b16 %v964
        %v1999 = vunpack.c.h.b16 %v964
        %v2000 = vunpack.c.l.b16 %v965
        %v2001 = vunpack.c.h.b16 %v965
        %v2002 = vunpack.c.l.b16 %v966
        %v2003 = vunpack.c.h.b16 %v966
        %v2004 = vunpack.c.l.b16 %v967
        %v2005 = vunpack.c.h.b16 %v967
        %v2006 = vunpack.c.l.b16 %v968
        %v2007 = vunpack.c.h.b16 %v968
        %v2008 = vunpack.c.l.b16 %v969
        %v2009 = vunpack.c.h.b16 %v969
        %v2010 = vpack.c.b16 %v1414, %v1410
        %v2011 = vpack.c.b16 %v1415, %v1411
        %v2012 = vpack.c.b16 %v1416, %v1412
        %v2013 = vpack.c.b16 %v1417, %v1413
        %v2014 = vpack.c.b16 %v1422, %v1418
        %v2015 = vpack.c.b16 %v1423, %v1419
        %v2016 = vpack.c.b16 %v1424, %v1420
        %v2017 = vpack.c.b16 %v1425, %v1421
        %v2018 = vpack.c.b16 %v1430, %v1426
        %v2019 = vpack.c.b16 %v1431, %v1427
        %v2020 = vpack.c.b16 %v1432, %v1428
        %v2021 = vpack.c.b16 %v1433, %v1429
        %v2022 = vpack.c.b16 %v1438, %v1434
        %v2023 = vpack.c.b16 %v1439, %v1435
        %v2024 = vpack.c.b16 %v1440, %v1436
        %v2025 = vpack.c.b16 %v1441, %v1437
        %v2026 = vpack.c.b16 %v1446, %v1442
        %v2027 = vpack.c.b16 %v1447, %v1443
        %v2028 = vpack.c.b16 %v1448, %v1444
        %v2029 = vpack.c.b16 %v1449, %v1445
        %v2030 = vpack.c.b16 %v1454, %v1450
        %v2031 = vpack.c.b16 %v1455, %v1451
        %v2032 = vpack.c.b16 %v1456, %v1452
        %v2033 = vpack.c.b16 %v1457, %v1453
        %v2034 = vpack.c.b16 %v1462, %v1458
        %v2035 = vpack.c.b16 %v1463, %v1459
        %v2036 = vpack.c.b16 %v1464, %v1460
        %v2037 = vpack.c.b16 %v1465, %v1461
        %v2038 = vpack.c.b16 %v1470, %v1466
        %v2039 = vpack.c.b16 %v1471, %v1467
        %v2040 = vpack.c.b16 %v1472, %v1468
        %v2041 = vpack.c.b16 %v1473, %v1469
        %v2042 = vpack.c.b16 %v1478, %v1474
        %v2043 = vpack.c.b16 %v1479, %v1475
        %v2044 = vpack.c.b16 %v1480, %v1476
        %v2045 = vpack.c.b16 %v1481, %v1477
        %v2046 = vpack.c.b16 %v1486, %v1482
        %v2047 = vpack.c.b16 %v1487, %v1483
        %v2048 = vpack.c.b16 %v1488, %v1484
        %v2049 = vpack.c.b16 %v1489, %v1485
        %v2050 = vpack.c.b16 %v1494, %v1490
        %v2051 = vpack.c.b16 %v1495, %v1491
        %v2052 = vpack.c.b16 %v1496, %v1492
        %v2053 = vpack.c.b16 %v1497, %v1493
        %v2054 = vpack.c.b16 %v1502, %v1498
        %v2055 = vpack.c.b16 %v1503, %v1499
        %v2056 = vpack.c.b16 %v1504, %v1500
        %v2057 = vpack.c.b16 %v1505, %v1501
        %v2058 = vpack.c.b16 %v1510, %v1506
        %v2059 = vpack.c.b16 %v1511, %v1507
        %v2060 = vpack.c.b16 %v1512, %v1508
        %v2061 = vpack.c.b16 %v1513, %v1509
        %v2062 = vpack.c.b16 %v1518, %v1514
        %v2063 = vpack.c.b16 %v1519, %v1515
        %v2064 = vpack.c.b16 %v1520, %v1516
        %v2065 = vpack.c.b16 %v1521, %v1517
        %v2066 = vpack.c.b16 %v1526, %v1522
        %v2067 = vpack.c.b16 %v1527, %v1523
        %v2068 = vpack.c.b16 %v1528, %v1524
        %v2069 = vpack.c.b16 %v1529, %v1525
        %v2070 = vpack.c.b16 %v1534, %v1530
        %v2071 = vpack.c.b16 %v1535, %v1531
        %v2072 = vpack.c.b16 %v1536, %v1532
        %v2073 = vpack.c.b16 %v1537, %v1533
        %v2074 = vpack.c.b16 %v1542, %v1538
        %v2075 = vpack.c.b16 %v1543, %v1539
        %v2076 = vpack.c.b16 %v1544, %v1540
        %v2077 = vpack.c.b16 %v1545, %v1541
        %v2078 = vpack.c.b16 %v1550, %v1546
        %v2079 = vpack.c.b16 %v1551, %v1547
        %v2080 = vpack.c.b16 %v1552, %v1548
        %v2081 = vpack.c.b16 %v1553, %v1549
        %v2082 = vpack.c.b16 %v1558, %v1554
        %v2083 = vpack.c.b16 %v1559, %v1555
        %v2084 = vpack.c.b16 %v1560, %v1556
        %v2085 = vpack.c.b16 %v1561, %v1557
        %v2086 = vpack.c.b16 %v1566, %v1562
        %v2087 = vpack.c.b16 %v1567, %v1563
        %v2088 = vpack.c.b16 %v1568, %v1564
        %v2089 = vpack.c.b16 %v1569, %v1565
        %v2090 = vpack.c.b16 %v1574, %v1570
        %v2091 = vpack.c.b16 %v1575, %v1571
        %v2092 = vpack.c.b16 %v1576, %v1572
        %v2093 = vpack.c.b16 %v1577, %v1573
        %v2094 = vpack.c.b16 %v1582, %v1578
        %v2095 = vpack.c.b16 %v1583, %v1579
        %v2096 = vpack.c.b16 %v1584, %v1580
        %v2097 = vpack.c.b16 %v1585, %v1581
        %v2098 = vpack.c.b16 %v1590, %v1586
        %v2099 = vpack.c.b16 %v1591, %v1587
        %v2100 = vpack.c.b16 %v1592, %v1588
        %v2101 = vpack.c.b16 %v1593, %v1589
        %v2102 = vpack.c.b16 %v1598, %v1594
        %v2103 = vpack.c.b16 %v1599, %v1595
        %v2104 = vpack.c.b16 %v1600, %v1596
        %v2105 = vpack.c.b16 %v1601, %v1597
        %v2106 = vpack.c.b16 %v1606, %v1602
        %v2107 = vpack.c.b16 %v1607, %v1603
        %v2108 = vpack.c.b16 %v1608, %v1604
        %v2109 = vpack.c.b16 %v1609, %v1605
        %v2110 = vpack.c.b16 %v1614, %v1610
        %v2111 = vpack.c.b16 %v1615, %v1611
        %v2112 = vpack.c.b16 %v1616, %v1612
        %v2113 = vpack.c.b16 %v1617, %v1613
        %v2114 = vpack.c.b16 %v1622, %v1618
        %v2115 = vpack.c.b16 %v1623, %v1619
        %v2116 = vpack.c.b16 %v1624, %v1620
        %v2117 = vpack.c.b16 %v1625, %v1621
        %v2118 = vpack.c.b16 %v1630, %v1626
        %v2119 = vpack.c.b16 %v1631, %v1627
        %v2120 = vpack.c.b16 %v1632, %v1628
        %v2121 = vpack.c.b16 %v1633, %v1629
        %v2122 = vpack.c.b16 %v1638, %v1634
        %v2123 = vpack.c.b16 %v1639, %v1635
        %v2124 = vpack.c.b16 %v1640, %v1636
        %v2125 = vpack.c.b16 %v1641, %v1637
        %v2126 = vpack.c.b16 %v1646, %v1642
        %v2127 = vpack.c.b16 %v1647, %v1643
        %v2128 = vpack.c.b16 %v1648, %v1644
        %v2129 = vpack.c.b16 %v1649, %v1645
        %v2130 = vpack.c.b16 %v1654, %v1650
        %v2131 = vpack.c.b16 %v1655, %v1651
        %v2132 = vpack.c.b16 %v1656, %v1652
        %v2133 = vpack.c.b16 %v1657, %v1653
        %v2134 = vpack.c.b16 %v1662, %v1658
        %v2135 = vpack.c.b16 %v1663, %v1659
        %v2136 = vpack.c.b16 %v1664, %v1660
        %v2137 = vpack.c.b16 %v1665, %v1661
        %v2138 = vpack.c.b16 %v1670, %v1666
        %v2139 = vpack.c.b16 %v1671, %v1667
        %v2140 = vpack.c.b16 %v1672, %v1668
        %v2141 = vpack.c.b16 %v1673, %v1669
        %v2142 = vpack.c.b16 %v1678, %v1674
        %v2143 = vpack.c.b16 %v1679, %v1675
        %v2144 = vpack.c.b16 %v1680, %v1676
        %v2145 = vpack.c.b16 %v1681, %v1677
        %v2146 = vpack.c.b16 %v1686, %v1682
        %v2147 = vpack.c.b16 %v1687, %v1683
        %v2148 = vpack.c.b16 %v1688, %v1684
        %v2149 = vpack.c.b16 %v1689, %v1685
        %v2150 = vpack.c.b16 %v1694, %v1690
        %v2151 = vpack.c.b16 %v1695, %v1691
        %v2152 = vpack.c.b16 %v1696, %v1692
        %v2153 = vpack.c.b16 %v1697, %v1693
        %v2154 = vpack.c.b16 %v1702, %v1698
        %v2155 = vpack.c.b16 %v1703, %v1699
        %v2156 = vpack.c.b16 %v1704, %v1700
        %v2157 = vpack.c.b16 %v1705, %v1701
        %v2158 = vpack.c.b16 %v1710, %v1706
        %v2159 = vpack.c.b16 %v1711, %v1707
        %v2160 = vpack.c.b16 %v1712, %v1708
        %v2161 = vpack.c.b16 %v1713, %v1709
        %v2162 = vpack.c.b16 %v1718, %v1714
        %v2163 = vpack.c.b16 %v1719, %v1715
        %v2164 = vpack.c.b16 %v1720, %v1716
        %v2165 = vpack.c.b16 %v1721, %v1717
        %v2166 = vpack.c.b16 %v1726, %v1722
        %v2167 = vpack.c.b16 %v1727, %v1723
        %v2168 = vpack.c.b16 %v1728, %v1724
        %v2169 = vpack.c.b16 %v1729, %v1725
        %v2170 = vpack.c.b16 %v1734, %v1730
        %v2171 = vpack.c.b16 %v1735, %v1731
        %v2172 = vpack.c.b16 %v1736, %v1732
        %v2173 = vpack.c.b16 %v1737, %v1733
        %v2174 = vpack.c.b16 %v1742, %v1738
        %v2175 = vpack.c.b16 %v1743, %v1739
        %v2176 = vpack.c.b16 %v1744, %v1740
        %v2177 = vpack.c.b16 %v1745, %v1741
        %v2178 = vpack.c.b16 %v1750, %v1746
        %v2179 = vpack.c.b16 %v1751, %v1747
        %v2180 = vpack.c.b16 %v1752, %v1748
        %v2181 = vpack.c.b16 %v1753, %v1749
        %v2182 = vpack.c.b16 %v1758, %v1754
        %v2183 = vpack.c.b16 %v1759, %v1755
        %v2184 = vpack.c.b16 %v1760, %v1756
        %v2185 = vpack.c.b16 %v1761, %v1757
        %v2186 = vpack.c.b16 %v1766, %v1762
        %v2187 = vpack.c.b16 %v1767, %v1763
        %v2188 = vpack.c.b16 %v1768, %v1764
        %v2189 = vpack.c.b16 %v1769, %v1765
        %v2190 = vpack.c.b16 %v1774, %v1770
        %v2191 = vpack.c.b16 %v1775, %v1771
        %v2192 = vpack.c.b16 %v1776, %v1772
        %v2193 = vpack.c.b16 %v1777, %v1773
        %v2194 = vpack.c.b16 %v1782, %v1778
        %v2195 = vpack.c.b16 %v1783, %v1779
        %v2196 = vpack.c.b16 %v1784, %v1780
        %v2197 = vpack.c.b16 %v1785, %v1781
        %v2198 = vpack.c.b16 %v1790, %v1786
        %v2199 = vpack.c.b16 %v1791, %v1787
        %v2200 = vpack.c.b16 %v1792, %v1788
        %v2201 = vpack.c.b16 %v1793, %v1789
        %v2202 = vpack.c.b16 %v1798, %v1794
        %v2203 = vpack.c.b16 %v1799, %v1795
        %v2204 = vpack.c.b16 %v1800, %v1796
        %v2205 = vpack.c.b16 %v1801, %v1797
        %v2206 = vpack.c.b16 %v1806, %v1802
        %v2207 = vpack.c.b16 %v1807, %v1803
        %v2208 = vpack.c.b16 %v1808, %v1804
        %v2209 = vpack.c.b16 %v1809, %v1805
        %v2210 = vpack.c.b16 %v1814, %v1810
        %v2211 = vpack.c.b16 %v1815, %v1811
        %v2212 = vpack.c.b16 %v1816, %v1812
        %v2213 = vpack.c.b16 %v1817, %v1813
        %v2214 = vpack.c.b16 %v1822, %v1818
        %v2215 = vpack.c.b16 %v1823, %v1819
        %v2216 = vpack.c.b16 %v1824, %v1820
        %v2217 = vpack.c.b16 %v1825, %v1821
        %v2218 = vpack.c.b16 %v1830, %v1826
        %v2219 = vpack.c.b16 %v1831, %v1827
        %v2220 = vpack.c.b16 %v1832, %v1828
        %v2221 = vpack.c.b16 %v1833, %v1829
        %v2222 = vpack.c.b16 %v1838, %v1834
        %v2223 = vpack.c.b16 %v1839, %v1835
        %v2224 = vpack.c.b16 %v1840, %v1836
        %v2225 = vpack.c.b16 %v1841, %v1837
        %v2226 = vpack.c.b16 %v1846, %v1842
        %v2227 = vpack.c.b16 %v1847, %v1843
        %v2228 = vpack.c.b16 %v1848, %v1844
        %v2229 = vpack.c.b16 %v1849, %v1845
        %v2230 = vpack.c.b16 %v1854, %v1850
        %v2231 = vpack.c.b16 %v1855, %v1851
        %v2232 = vpack.c.b16 %v1856, %v1852
        %v2233 = vpack.c.b16 %v1857, %v1853
        %v2234 = vpack.c.b16 %v1862, %v1858
        %v2235 = vpack.c.b16 %v1863, %v1859
        %v2236 = vpack.c.b16 %v1864, %v1860
        %v2237 = vpack.c.b16 %v1865, %v1861
        %v2238 = vpack.c.b16 %v1870, %v1866
        %v2239 = vpack.c.b16 %v1871, %v1867
        %v2240 = vpack.c.b16 %v1872, %v1868
        %v2241 = vpack.c.b16 %v1873, %v1869
        %v2242 = vpack.c.b16 %v1878, %v1874
        %v2243 = vpack.c.b16 %v1879, %v1875
        %v2244 = vpack.c.b16 %v1880, %v1876
        %v2245 = vpack.c.b16 %v1881, %v1877
        %v2246 = vpack.c.b16 %v1886, %v1882
        %v2247 = vpack.c.b16 %v1887, %v1883
        %v2248 = vpack.c.b16 %v1888, %v1884
        %v2249 = vpack.c.b16 %v1889, %v1885
        %v2250 = vpack.c.b16 %v1894, %v1890
        %v2251 = vpack.c.b16 %v1895, %v1891
        %v2252 = vpack.c.b16 %v1896, %v1892
        %v2253 = vpack.c.b16 %v1897, %v1893
        %v2254 = vpack.c.b16 %v1902, %v1898
        %v2255 = vpack.c.b16 %v1903, %v1899
        %v2256 = vpack.c.b16 %v1904, %v1900
        %v2257 = vpack.c.b16 %v1905, %v1901
        %v2258 = vpack.c.b16 %v1910, %v1906
        %v2259 = vpack.c.b16 %v1911, %v1907
        %v2260 = vpack.c.b16 %v1912, %v1908
        %v2261 = vpack.c.b16 %v1913, %v1909
        %v2262 = vpack.c.b16 %v1918, %v1914
        %v2263 = vpack.c.b16 %v1919, %v1915
        %v2264 = vpack.c.b16 %v1920, %v1916
        %v2265 = vpack.c.b16 %v1921, %v1917
        %v2266 = vpack.c.b16 %v1926, %v1922
        %v2267 = vpack.c.b16 %v1927, %v1923
        %v2268 = vpack.c.b16 %v1928, %v1924
        %v2269 = vpack.c.b16 %v1929, %v1925
        %v2270 = vpack.c.b16 %v1934, %v1930
        %v2271 = vpack.c.b16 %v1935, %v1931
        %v2272 = vpack.c.b16 %v1936, %v1932
        %v2273 = vpack.c.b16 %v1937, %v1933
        %v2274 = vpack.c.b16 %v1942, %v1938
        %v2275 = vpack.c.b16 %v1943, %v1939
        %v2276 = vpack.c.b16 %v1944, %v1940
        %v2277 = vpack.c.b16 %v1945, %v1941
        %v2278 = vpack.c.b16 %v1950, %v1946
        %v2279 = vpack.c.b16 %v1951, %v1947
        %v2280 = vpack.c.b16 %v1952, %v1948
        %v2281 = vpack.c.b16 %v1953, %v1949
        %v2282 = vpack.c.b16 %v1958, %v1954
        %v2283 = vpack.c.b16 %v1959, %v1955
        %v2284 = vpack.c.b16 %v1960, %v1956
        %v2285 = vpack.c.b16 %v1961, %v1957
        %v2286 = vpack.c.b16 %v1966, %v1962
        %v2287 = vpack.c.b16 %v1967, %v1963
        %v2288 = vpack.c.b16 %v1968, %v1964
        %v2289 = vpack.c.b16 %v1969, %v1965
        %v2290 = vpack.c.b16 %v1974, %v1970
        %v2291 = vpack.c.b16 %v1975, %v1971
        %v2292 = vpack.c.b16 %v1976, %v1972
        %v2293 = vpack.c.b16 %v1977, %v1973
        %v2294 = vpack.c.b16 %v1982, %v1978
        %v2295 = vpack.c.b16 %v1983, %v1979
        %v2296 = vpack.c.b16 %v1984, %v1980
        %v2297 = vpack.c.b16 %v1985, %v1981
        %v2298 = vpack.c.b16 %v1990, %v1986
        %v2299 = vpack.c.b16 %v1991, %v1987
        %v2300 = vpack.c.b16 %v1992, %v1988
        %v2301 = vpack.c.b16 %v1993, %v1989
        %v2302 = vpack.c.b16 %v1998, %v1994
        %v2303 = vpack.c.b16 %v1999, %v1995
        %v2304 = vpack.c.b16 %v2000, %v1996
        %v2305 = vpack.c.b16 %v2001, %v1997
        %v2306 = vpack.c.b16 %v2006, %v2002
        %v2307 = vpack.c.b16 %v2007, %v2003
        %v2308 = vpack.c.b16 %v2008, %v2004
        %v2309 = vpack.c.b16 %v2009, %v2005
        %2610 = vmatprep.subr.bf16.mxu0 %v2039
        %2611 = vmatpush1.bf16.xpose.msra.mxu0 %v2038
        %2612 = vmatprep.subr.bf16.mxu0 %v2035
        %2613 = vmatpush1.bf16.xpose.msra.mxu0 %v2034
        %2614 = vmatprep.subr.bf16.mxu0 %v2031
        %2615 = vmatpush1.bf16.xpose.msra.mxu0 %v2030
        %2616 = vmatprep.subr.bf16.mxu0 %v2027
        %2617 = vmatpush1.bf16.xpose.msra.mxu0 %v2026
        %2618 = vmatprep.subr.bf16.mxu0 %v2023
        %2619 = vmatpush1.bf16.xpose.msra.mxu0 %v2022
        %2620 = vmatprep.subr.bf16.mxu0 %v2019
        %2621 = vmatpush1.bf16.xpose.msra.mxu0 %v2018
        %2622 = vmatprep.subr.bf16.mxu0 %v2015
        %2623 = vmatpush1.bf16.xpose.msra.mxu0 %v2014
        %2624 = vmatprep.subr.bf16.mxu0 %v2011
        %2625 = vmatpush1.bf16.xpose.msra.mxu0 %v2010
        %2626 = vmatprep.subr.bf16.mxu0 %v2071
        %2627 = vmatpush2.bf16.xpose.msra.mxu0 %v2070
        %2628 = vmatprep.subr.bf16.mxu0 %v2067
        %2629 = vmatpush2.bf16.xpose.msra.mxu0 %v2066
        %2630 = vmatprep.subr.bf16.mxu0 %v2063
        %2631 = vmatpush2.bf16.xpose.msra.mxu0 %v2062
        %2632 = vmatprep.subr.bf16.mxu0 %v2059
        %2633 = vmatpush2.bf16.xpose.msra.mxu0 %v2058
        %2634 = vmatprep.subr.bf16.mxu0 %v2055
        %2635 = vmatpush2.bf16.xpose.msra.mxu0 %v2054
        %2636 = vmatprep.subr.bf16.mxu0 %v2051
        %2637 = vmatpush2.bf16.xpose.msra.mxu0 %v2050
        %2638 = vmatprep.subr.bf16.mxu0 %v2047
        %2639 = vmatpush2.bf16.xpose.msra.mxu0 %v2046
        %2640 = vmatprep.subr.bf16.mxu0 %v2043
        %2641 = vmatpush2.bf16.xpose.msra.mxu0 %v2042
        %2642 = vmatprep.mubr.bf16.mxu0 %v1055
        %2643 = vmatmul.mubr.bf16.gmra.mxu0 %v1054
        %v2644 = vpop.f32.mrf.mxu0
        %v2645 = vadd.f32 0.0, %v2644
        %v2646 = vpop.f32.mrf.mxu0
        %v2647 = vadd.f32 0.0, %v2646
        %v2648 = vpop.f32.mrf.mxu0
        %v2649 = vadd.f32 0.0, %v2648
        %v2650 = vpop.f32.mrf.mxu0
        %v2651 = vadd.f32 0.0, %v2650
        %2652 = vmatprep.mubr.bf16.mxu0 %v1059
        %2653 = vmatmul.mubr.bf16.gmra.mxu0 %v1058
        %v2654 = vpop.f32.mrf.mxu0
        %v2655 = vadd.f32 0.0, %v2654
        %v2656 = vpop.f32.mrf.mxu0
        %v2657 = vadd.f32 0.0, %v2656
        %v2658 = vpop.f32.mrf.mxu0
        %v2659 = vadd.f32 0.0, %v2658
        %v2660 = vpop.f32.mrf.mxu0
        %v2661 = vadd.f32 0.0, %v2660
        %2662 = vmatprep.mubr.bf16.mxu0 %v1063
        %2663 = vmatmul.mubr.bf16.gmra.mxu0 %v1062
        %v2664 = vpop.f32.mrf.mxu0
        %v2665 = vadd.f32 0.0, %v2664
        %v2666 = vpop.f32.mrf.mxu0
        %v2667 = vadd.f32 0.0, %v2666
        %v2668 = vpop.f32.mrf.mxu0
        %v2669 = vadd.f32 0.0, %v2668
        %v2670 = vpop.f32.mrf.mxu0
        %v2671 = vadd.f32 0.0, %v2670
        %2672 = vmatprep.mubr.bf16.mxu0 %v1067
        %2673 = vmatmul.mubr.bf16.gmra.mxu0 %v1066
        %v2674 = vpop.f32.mrf.mxu0
        %v2675 = vadd.f32 0.0, %v2674
        %v2676 = vpop.f32.mrf.mxu0
        %v2677 = vadd.f32 0.0, %v2676
        %v2678 = vpop.f32.mrf.mxu0
        %v2679 = vadd.f32 0.0, %v2678
        %v2680 = vpop.f32.mrf.mxu0
        %v2681 = vadd.f32 0.0, %v2680
        %2682 = vmatprep.mubr.bf16.mxu0 %v1071
        %2683 = vmatmul.mubr.bf16.gmra.mxu0 %v1070
        %v2684 = vpop.f32.mrf.mxu0
        %v2685 = vadd.f32 0.0, %v2684
        %v2686 = vpop.f32.mrf.mxu0
        %v2687 = vadd.f32 0.0, %v2686
        %v2688 = vpop.f32.mrf.mxu0
        %v2689 = vadd.f32 0.0, %v2688
        %v2690 = vpop.f32.mrf.mxu0
        %v2691 = vadd.f32 0.0, %v2690
        %2692 = vmatprep.mubr.bf16.mxu0 %v1075
        %2693 = vmatmul.mubr.bf16.gmra.mxu0 %v1074
        %v2694 = vpop.f32.mrf.mxu0
        %v2695 = vadd.f32 0.0, %v2694
        %v2696 = vpop.f32.mrf.mxu0
        %v2697 = vadd.f32 0.0, %v2696
        %v2698 = vpop.f32.mrf.mxu0
        %v2699 = vadd.f32 0.0, %v2698
        %v2700 = vpop.f32.mrf.mxu0
        %v2701 = vadd.f32 0.0, %v2700
        %2702 = vmatprep.mubr.bf16.mxu0 %v1079
        %2703 = vmatmul.mubr.bf16.gmra.mxu0 %v1078
        %v2704 = vpop.f32.mrf.mxu0
        %v2705 = vadd.f32 0.0, %v2704
        %v2706 = vpop.f32.mrf.mxu0
        %v2707 = vadd.f32 0.0, %v2706
        %v2708 = vpop.f32.mrf.mxu0
        %v2709 = vadd.f32 0.0, %v2708
        %v2710 = vpop.f32.mrf.mxu0
        %v2711 = vadd.f32 0.0, %v2710
        %2712 = vdwg.mxu0
        %2713 = vmatprep.subr.bf16.mxu0 %v2041
        %2714 = vmatpush1.bf16.xpose.msra.mxu0 %v2040
        %2715 = vmatprep.subr.bf16.mxu0 %v2037
        %2716 = vmatpush1.bf16.xpose.msra.mxu0 %v2036
        %2717 = vmatprep.subr.bf16.mxu0 %v2033
        %2718 = vmatpush1.bf16.xpose.msra.mxu0 %v2032
        %2719 = vmatprep.subr.bf16.mxu0 %v2029
        %2720 = vmatpush1.bf16.xpose.msra.mxu0 %v2028
        %2721 = vmatprep.subr.bf16.mxu0 %v2025
        %2722 = vmatpush1.bf16.xpose.msra.mxu0 %v2024
        %2723 = vmatprep.subr.bf16.mxu0 %v2021
        %2724 = vmatpush1.bf16.xpose.msra.mxu0 %v2020
        %2725 = vmatprep.subr.bf16.mxu0 %v2017
        %2726 = vmatpush1.bf16.xpose.msra.mxu0 %v2016
        %2727 = vmatprep.subr.bf16.mxu0 %v2013
        %2728 = vmatpush1.bf16.xpose.msra.mxu0 %v2012
        %2729 = vmatprep.subr.bf16.mxu0 %v2073
        %2730 = vmatpush2.bf16.xpose.msra.mxu0 %v2072
        %2731 = vmatprep.subr.bf16.mxu0 %v2069
        %2732 = vmatpush2.bf16.xpose.msra.mxu0 %v2068
        %2733 = vmatprep.subr.bf16.mxu0 %v2065
        %2734 = vmatpush2.bf16.xpose.msra.mxu0 %v2064
        %2735 = vmatprep.subr.bf16.mxu0 %v2061
        %2736 = vmatpush2.bf16.xpose.msra.mxu0 %v2060
        %2737 = vmatprep.subr.bf16.mxu0 %v2057
        %2738 = vmatpush2.bf16.xpose.msra.mxu0 %v2056
        %2739 = vmatprep.subr.bf16.mxu0 %v2053
        %2740 = vmatpush2.bf16.xpose.msra.mxu0 %v2052
        %2741 = vmatprep.subr.bf16.mxu0 %v2049
        %2742 = vmatpush2.bf16.xpose.msra.mxu0 %v2048
        %2743 = vmatprep.subr.bf16.mxu0 %v2045
        %2744 = vmatpush2.bf16.xpose.msra.mxu0 %v2044
        %2745 = vmatprep.mubr.bf16.mxu0 %v1057
        %2746 = vmatmul.mubr.bf16.gmra.mxu0 %v1056
        %v2747 = vpop.f32.mrf.mxu0
        %v2748 = vadd.f32 %v2645, %v2747
        %v2749 = vpop.f32.mrf.mxu0
        %v2750 = vadd.f32 %v2647, %v2749
        %v2751 = vpop.f32.mrf.mxu0
        %v2752 = vadd.f32 %v2649, %v2751
        %v2753 = vpop.f32.mrf.mxu0
        %v2754 = vadd.f32 %v2651, %v2753
        %2755 = vmatprep.mubr.bf16.mxu0 %v1061
        %2756 = vmatmul.mubr.bf16.gmra.mxu0 %v1060
        %v2757 = vpop.f32.mrf.mxu0
        %v2758 = vadd.f32 %v2655, %v2757
        %v2759 = vpop.f32.mrf.mxu0
        %v2760 = vadd.f32 %v2657, %v2759
        %v2761 = vpop.f32.mrf.mxu0
        %v2762 = vadd.f32 %v2659, %v2761
        %v2763 = vpop.f32.mrf.mxu0
        %v2764 = vadd.f32 %v2661, %v2763
        %2765 = vmatprep.mubr.bf16.mxu0 %v1065
        %2766 = vmatmul.mubr.bf16.gmra.mxu0 %v1064
        %v2767 = vpop.f32.mrf.mxu0
        %v2768 = vadd.f32 %v2665, %v2767
        %v2769 = vpop.f32.mrf.mxu0
        %v2770 = vadd.f32 %v2667, %v2769
        %v2771 = vpop.f32.mrf.mxu0
        %v2772 = vadd.f32 %v2669, %v2771
        %v2773 = vpop.f32.mrf.mxu0
        %v2774 = vadd.f32 %v2671, %v2773
        %2775 = vmatprep.mubr.bf16.mxu0 %v1069
        %2776 = vmatmul.mubr.bf16.gmra.mxu0 %v1068
        %v2777 = vpop.f32.mrf.mxu0
        %v2778 = vadd.f32 %v2675, %v2777
        %v2779 = vpop.f32.mrf.mxu0
        %v2780 = vadd.f32 %v2677, %v2779
        %v2781 = vpop.f32.mrf.mxu0
        %v2782 = vadd.f32 %v2679, %v2781
        %v2783 = vpop.f32.mrf.mxu0
        %v2784 = vadd.f32 %v2681, %v2783
        %2785 = vmatprep.mubr.bf16.mxu0 %v1073
        %2786 = vmatmul.mubr.bf16.gmra.mxu0 %v1072
        %v2787 = vpop.f32.mrf.mxu0
        %v2788 = vadd.f32 %v2685, %v2787
        %v2789 = vpop.f32.mrf.mxu0
        %v2790 = vadd.f32 %v2687, %v2789
        %v2791 = vpop.f32.mrf.mxu0
        %v2792 = vadd.f32 %v2689, %v2791
        %v2793 = vpop.f32.mrf.mxu0
        %v2794 = vadd.f32 %v2691, %v2793
        %2795 = vmatprep.mubr.bf16.mxu0 %v1077
        %2796 = vmatmul.mubr.bf16.gmra.mxu0 %v1076
        %v2797 = vpop.f32.mrf.mxu0
        %v2798 = vadd.f32 %v2695, %v2797
        %v2799 = vpop.f32.mrf.mxu0
        %v2800 = vadd.f32 %v2697, %v2799
        %v2801 = vpop.f32.mrf.mxu0
        %v2802 = vadd.f32 %v2699, %v2801
        %v2803 = vpop.f32.mrf.mxu0
        %v2804 = vadd.f32 %v2701, %v2803
        %2805 = vmatprep.mubr.bf16.mxu0 %v1081
        %2806 = vmatmul.mubr.bf16.gmra.mxu0 %v1080
        %v2807 = vpop.f32.mrf.mxu0
        %v2808 = vadd.f32 %v2705, %v2807
        %v2809 = vpop.f32.mrf.mxu0
        %v2810 = vadd.f32 %v2707, %v2809
        %v2811 = vpop.f32.mrf.mxu0
        %v2812 = vadd.f32 %v2709, %v2811
        %v2813 = vpop.f32.mrf.mxu0
        %v2814 = vadd.f32 %v2711, %v2813
        %2815 = vdwg.mxu0
        %2816 = vmatprep.subr.bf16.mxu0 %v2103
        %2817 = vmatpush1.bf16.xpose.msra.mxu0 %v2102
        %2818 = vmatprep.subr.bf16.mxu0 %v2099
        %2819 = vmatpush1.bf16.xpose.msra.mxu0 %v2098
        %2820 = vmatprep.subr.bf16.mxu0 %v2095
        %2821 = vmatpush1.bf16.xpose.msra.mxu0 %v2094
        %2822 = vmatprep.subr.bf16.mxu0 %v2091
        %2823 = vmatpush1.bf16.xpose.msra.mxu0 %v2090
        %2824 = vmatprep.subr.bf16.mxu0 %v2087
        %2825 = vmatpush1.bf16.xpose.msra.mxu0 %v2086
        %2826 = vmatprep.subr.bf16.mxu0 %v2083
        %2827 = vmatpush1.bf16.xpose.msra.mxu0 %v2082
        %2828 = vmatprep.subr.bf16.mxu0 %v2079
        %2829 = vmatpush1.bf16.xpose.msra.mxu0 %v2078
        %2830 = vmatprep.subr.bf16.mxu0 %v2075
        %2831 = vmatpush1.bf16.xpose.msra.mxu0 %v2074
        %2832 = vmatprep.subr.bf16.mxu0 %v2135
        %2833 = vmatpush2.bf16.xpose.msra.mxu0 %v2134
        %2834 = vmatprep.subr.bf16.mxu0 %v2131
        %2835 = vmatpush2.bf16.xpose.msra.mxu0 %v2130
        %2836 = vmatprep.subr.bf16.mxu0 %v2127
        %2837 = vmatpush2.bf16.xpose.msra.mxu0 %v2126
        %2838 = vmatprep.subr.bf16.mxu0 %v2123
        %2839 = vmatpush2.bf16.xpose.msra.mxu0 %v2122
        %2840 = vmatprep.subr.bf16.mxu0 %v2119
        %2841 = vmatpush2.bf16.xpose.msra.mxu0 %v2118
        %2842 = vmatprep.subr.bf16.mxu0 %v2115
        %2843 = vmatpush2.bf16.xpose.msra.mxu0 %v2114
        %2844 = vmatprep.subr.bf16.mxu0 %v2111
        %2845 = vmatpush2.bf16.xpose.msra.mxu0 %v2110
        %2846 = vmatprep.subr.bf16.mxu0 %v2107
        %2847 = vmatpush2.bf16.xpose.msra.mxu0 %v2106
        %2848 = vmatprep.mubr.bf16.mxu0 %v1055
        %2849 = vmatmul.mubr.bf16.gmra.mxu0 %v1054
        %v2850 = vpop.f32.mrf.mxu0
        %v2851 = vadd.f32 0.0, %v2850
        %v2852 = vpop.f32.mrf.mxu0
        %v2853 = vadd.f32 0.0, %v2852
        %v2854 = vpop.f32.mrf.mxu0
        %v2855 = vadd.f32 0.0, %v2854
        %v2856 = vpop.f32.mrf.mxu0
        %v2857 = vadd.f32 0.0, %v2856
        %2858 = vmatprep.mubr.bf16.mxu0 %v1059
        %2859 = vmatmul.mubr.bf16.gmra.mxu0 %v1058
        %v2860 = vpop.f32.mrf.mxu0
        %v2861 = vadd.f32 0.0, %v2860
        %v2862 = vpop.f32.mrf.mxu0
        %v2863 = vadd.f32 0.0, %v2862
        %v2864 = vpop.f32.mrf.mxu0
        %v2865 = vadd.f32 0.0, %v2864
        %v2866 = vpop.f32.mrf.mxu0
        %v2867 = vadd.f32 0.0, %v2866
        %2868 = vmatprep.mubr.bf16.mxu0 %v1063
        %2869 = vmatmul.mubr.bf16.gmra.mxu0 %v1062
        %v2870 = vpop.f32.mrf.mxu0
        %v2871 = vadd.f32 0.0, %v2870
        %v2872 = vpop.f32.mrf.mxu0
        %v2873 = vadd.f32 0.0, %v2872
        %v2874 = vpop.f32.mrf.mxu0
        %v2875 = vadd.f32 0.0, %v2874
        %v2876 = vpop.f32.mrf.mxu0
        %v2877 = vadd.f32 0.0, %v2876
        %2878 = vmatprep.mubr.bf16.mxu0 %v1067
        %2879 = vmatmul.mubr.bf16.gmra.mxu0 %v1066
        %v2880 = vpop.f32.mrf.mxu0
        %v2881 = vadd.f32 0.0, %v2880
        %v2882 = vpop.f32.mrf.mxu0
        %v2883 = vadd.f32 0.0, %v2882
        %v2884 = vpop.f32.mrf.mxu0
        %v2885 = vadd.f32 0.0, %v2884
        %v2886 = vpop.f32.mrf.mxu0
        %v2887 = vadd.f32 0.0, %v2886
        %2888 = vmatprep.mubr.bf16.mxu0 %v1071
        %2889 = vmatmul.mubr.bf16.gmra.mxu0 %v1070
        %v2890 = vpop.f32.mrf.mxu0
        %v2891 = vadd.f32 0.0, %v2890
        %v2892 = vpop.f32.mrf.mxu0
        %v2893 = vadd.f32 0.0, %v2892
        %v2894 = vpop.f32.mrf.mxu0
        %v2895 = vadd.f32 0.0, %v2894
        %v2896 = vpop.f32.mrf.mxu0
        %v2897 = vadd.f32 0.0, %v2896
        %2898 = vmatprep.mubr.bf16.mxu0 %v1075
        %2899 = vmatmul.mubr.bf16.gmra.mxu0 %v1074
        %v2900 = vpop.f32.mrf.mxu0
        %v2901 = vadd.f32 0.0, %v2900
        %v2902 = vpop.f32.mrf.mxu0
        %v2903 = vadd.f32 0.0, %v2902
        %v2904 = vpop.f32.mrf.mxu0
        %v2905 = vadd.f32 0.0, %v2904
        %v2906 = vpop.f32.mrf.mxu0
        %v2907 = vadd.f32 0.0, %v2906
        %2908 = vmatprep.mubr.bf16.mxu0 %v1079
        %2909 = vmatmul.mubr.bf16.gmra.mxu0 %v1078
        %v2910 = vpop.f32.mrf.mxu0
        %v2911 = vadd.f32 0.0, %v2910
        %v2912 = vpop.f32.mrf.mxu0
        %v2913 = vadd.f32 0.0, %v2912
        %v2914 = vpop.f32.mrf.mxu0
        %v2915 = vadd.f32 0.0, %v2914
        %v2916 = vpop.f32.mrf.mxu0
        %v2917 = vadd.f32 0.0, %v2916
        %2918 = vdwg.mxu0
        %2919 = vmatprep.subr.bf16.mxu0 %v2105
        %2920 = vmatpush1.bf16.xpose.msra.mxu0 %v2104
        %2921 = vmatprep.subr.bf16.mxu0 %v2101
        %2922 = vmatpush1.bf16.xpose.msra.mxu0 %v2100
        %2923 = vmatprep.subr.bf16.mxu0 %v2097
        %2924 = vmatpush1.bf16.xpose.msra.mxu0 %v2096
        %2925 = vmatprep.subr.bf16.mxu0 %v2093
        %2926 = vmatpush1.bf16.xpose.msra.mxu0 %v2092
        %2927 = vmatprep.subr.bf16.mxu0 %v2089
        %2928 = vmatpush1.bf16.xpose.msra.mxu0 %v2088
        %2929 = vmatprep.subr.bf16.mxu0 %v2085
        %2930 = vmatpush1.bf16.xpose.msra.mxu0 %v2084
        %2931 = vmatprep.subr.bf16.mxu0 %v2081
        %2932 = vmatpush1.bf16.xpose.msra.mxu0 %v2080
        %2933 = vmatprep.subr.bf16.mxu0 %v2077
        %2934 = vmatpush1.bf16.xpose.msra.mxu0 %v2076
        %2935 = vmatprep.subr.bf16.mxu0 %v2137
        %2936 = vmatpush2.bf16.xpose.msra.mxu0 %v2136
        %2937 = vmatprep.subr.bf16.mxu0 %v2133
        %2938 = vmatpush2.bf16.xpose.msra.mxu0 %v2132
        %2939 = vmatprep.subr.bf16.mxu0 %v2129
        %2940 = vmatpush2.bf16.xpose.msra.mxu0 %v2128
        %2941 = vmatprep.subr.bf16.mxu0 %v2125
        %2942 = vmatpush2.bf16.xpose.msra.mxu0 %v2124
        %2943 = vmatprep.subr.bf16.mxu0 %v2121
        %2944 = vmatpush2.bf16.xpose.msra.mxu0 %v2120
        %2945 = vmatprep.subr.bf16.mxu0 %v2117
        %2946 = vmatpush2.bf16.xpose.msra.mxu0 %v2116
        %2947 = vmatprep.subr.bf16.mxu0 %v2113
        %2948 = vmatpush2.bf16.xpose.msra.mxu0 %v2112
        %2949 = vmatprep.subr.bf16.mxu0 %v2109
        %2950 = vmatpush2.bf16.xpose.msra.mxu0 %v2108
        %2951 = vmatprep.mubr.bf16.mxu0 %v1057
        %2952 = vmatmul.mubr.bf16.gmra.mxu0 %v1056
        %v2953 = vpop.f32.mrf.mxu0
        %v2954 = vadd.f32 %v2851, %v2953
        %v2955 = vpop.f32.mrf.mxu0
        %v2956 = vadd.f32 %v2853, %v2955
        %v2957 = vpop.f32.mrf.mxu0
        %v2958 = vadd.f32 %v2855, %v2957
        %v2959 = vpop.f32.mrf.mxu0
        %v2960 = vadd.f32 %v2857, %v2959
        %2961 = vmatprep.mubr.bf16.mxu0 %v1061
        %2962 = vmatmul.mubr.bf16.gmra.mxu0 %v1060
        %v2963 = vpop.f32.mrf.mxu0
        %v2964 = vadd.f32 %v2861, %v2963
        %v2965 = vpop.f32.mrf.mxu0
        %v2966 = vadd.f32 %v2863, %v2965
        %v2967 = vpop.f32.mrf.mxu0
        %v2968 = vadd.f32 %v2865, %v2967
        %v2969 = vpop.f32.mrf.mxu0
        %v2970 = vadd.f32 %v2867, %v2969
        %2971 = vmatprep.mubr.bf16.mxu0 %v1065
        %2972 = vmatmul.mubr.bf16.gmra.mxu0 %v1064
        %v2973 = vpop.f32.mrf.mxu0
        %v2974 = vadd.f32 %v2871, %v2973
        %v2975 = vpop.f32.mrf.mxu0
        %v2976 = vadd.f32 %v2873, %v2975
        %v2977 = vpop.f32.mrf.mxu0
        %v2978 = vadd.f32 %v2875, %v2977
        %v2979 = vpop.f32.mrf.mxu0
        %v2980 = vadd.f32 %v2877, %v2979
        %2981 = vmatprep.mubr.bf16.mxu0 %v1069
        %2982 = vmatmul.mubr.bf16.gmra.mxu0 %v1068
        %v2983 = vpop.f32.mrf.mxu0
        %v2984 = vadd.f32 %v2881, %v2983
        %v2985 = vpop.f32.mrf.mxu0
        %v2986 = vadd.f32 %v2883, %v2985
        %v2987 = vpop.f32.mrf.mxu0
        %v2988 = vadd.f32 %v2885, %v2987
        %v2989 = vpop.f32.mrf.mxu0
        %v2990 = vadd.f32 %v2887, %v2989
        %2991 = vmatprep.mubr.bf16.mxu0 %v1073
        %2992 = vmatmul.mubr.bf16.gmra.mxu0 %v1072
        %v2993 = vpop.f32.mrf.mxu0
        %v2994 = vadd.f32 %v2891, %v2993
        %v2995 = vpop.f32.mrf.mxu0
        %v2996 = vadd.f32 %v2893, %v2995
        %v2997 = vpop.f32.mrf.mxu0
        %v2998 = vadd.f32 %v2895, %v2997
        %v2999 = vpop.f32.mrf.mxu0
        %v3000 = vadd.f32 %v2897, %v2999
        %3001 = vmatprep.mubr.bf16.mxu0 %v1077
        %3002 = vmatmul.mubr.bf16.gmra.mxu0 %v1076
        %v3003 = vpop.f32.mrf.mxu0
        %v3004 = vadd.f32 %v2901, %v3003
        %v3005 = vpop.f32.mrf.mxu0
        %v3006 = vadd.f32 %v2903, %v3005
        %v3007 = vpop.f32.mrf.mxu0
        %v3008 = vadd.f32 %v2905, %v3007
        %v3009 = vpop.f32.mrf.mxu0
        %v3010 = vadd.f32 %v2907, %v3009
        %3011 = vmatprep.mubr.bf16.mxu0 %v1081
        %3012 = vmatmul.mubr.bf16.gmra.mxu0 %v1080
        %v3013 = vpop.f32.mrf.mxu0
        %v3014 = vadd.f32 %v2911, %v3013
        %v3015 = vpop.f32.mrf.mxu0
        %v3016 = vadd.f32 %v2913, %v3015
        %v3017 = vpop.f32.mrf.mxu0
        %v3018 = vadd.f32 %v2915, %v3017
        %v3019 = vpop.f32.mrf.mxu0
        %v3020 = vadd.f32 %v2917, %v3019
        %3021 = vdwg.mxu0
        %3022 = vmatprep.subr.bf16.mxu0 %v2167
        %3023 = vmatpush1.bf16.xpose.msra.mxu0 %v2166
        %3024 = vmatprep.subr.bf16.mxu0 %v2163
        %3025 = vmatpush1.bf16.xpose.msra.mxu0 %v2162
        %3026 = vmatprep.subr.bf16.mxu0 %v2159
        %3027 = vmatpush1.bf16.xpose.msra.mxu0 %v2158
        %3028 = vmatprep.subr.bf16.mxu0 %v2155
        %3029 = vmatpush1.bf16.xpose.msra.mxu0 %v2154
        %3030 = vmatprep.subr.bf16.mxu0 %v2151
        %3031 = vmatpush1.bf16.xpose.msra.mxu0 %v2150
        %3032 = vmatprep.subr.bf16.mxu0 %v2147
        %3033 = vmatpush1.bf16.xpose.msra.mxu0 %v2146
        %3034 = vmatprep.subr.bf16.mxu0 %v2143
        %3035 = vmatpush1.bf16.xpose.msra.mxu0 %v2142
        %3036 = vmatprep.subr.bf16.mxu0 %v2139
        %3037 = vmatpush1.bf16.xpose.msra.mxu0 %v2138
        %3038 = vmatprep.subr.bf16.mxu0 %v2199
        %3039 = vmatpush2.bf16.xpose.msra.mxu0 %v2198
        %3040 = vmatprep.subr.bf16.mxu0 %v2195
        %3041 = vmatpush2.bf16.xpose.msra.mxu0 %v2194
        %3042 = vmatprep.subr.bf16.mxu0 %v2191
        %3043 = vmatpush2.bf16.xpose.msra.mxu0 %v2190
        %3044 = vmatprep.subr.bf16.mxu0 %v2187
        %3045 = vmatpush2.bf16.xpose.msra.mxu0 %v2186
        %3046 = vmatprep.subr.bf16.mxu0 %v2183
        %3047 = vmatpush2.bf16.xpose.msra.mxu0 %v2182
        %3048 = vmatprep.subr.bf16.mxu0 %v2179
        %3049 = vmatpush2.bf16.xpose.msra.mxu0 %v2178
        %3050 = vmatprep.subr.bf16.mxu0 %v2175
        %3051 = vmatpush2.bf16.xpose.msra.mxu0 %v2174
        %3052 = vmatprep.subr.bf16.mxu0 %v2171
        %3053 = vmatpush2.bf16.xpose.msra.mxu0 %v2170
        %3054 = vmatprep.mubr.bf16.mxu0 %v1055
        %3055 = vmatmul.mubr.bf16.gmra.mxu0 %v1054
        %v3056 = vpop.f32.mrf.mxu0
        %v3057 = vadd.f32 0.0, %v3056
        %v3058 = vpop.f32.mrf.mxu0
        %v3059 = vadd.f32 0.0, %v3058
        %v3060 = vpop.f32.mrf.mxu0
        %v3061 = vadd.f32 0.0, %v3060
        %v3062 = vpop.f32.mrf.mxu0
        %v3063 = vadd.f32 0.0, %v3062
        %3064 = vmatprep.mubr.bf16.mxu0 %v1059
        %3065 = vmatmul.mubr.bf16.gmra.mxu0 %v1058
        %v3066 = vpop.f32.mrf.mxu0
        %v3067 = vadd.f32 0.0, %v3066
        %v3068 = vpop.f32.mrf.mxu0
        %v3069 = vadd.f32 0.0, %v3068
        %v3070 = vpop.f32.mrf.mxu0
        %v3071 = vadd.f32 0.0, %v3070
        %v3072 = vpop.f32.mrf.mxu0
        %v3073 = vadd.f32 0.0, %v3072
        %3074 = vmatprep.mubr.bf16.mxu0 %v1063
        %3075 = vmatmul.mubr.bf16.gmra.mxu0 %v1062
        %v3076 = vpop.f32.mrf.mxu0
        %v3077 = vadd.f32 0.0, %v3076
        %v3078 = vpop.f32.mrf.mxu0
        %v3079 = vadd.f32 0.0, %v3078
        %v3080 = vpop.f32.mrf.mxu0
        %v3081 = vadd.f32 0.0, %v3080
        %v3082 = vpop.f32.mrf.mxu0
        %v3083 = vadd.f32 0.0, %v3082
        %3084 = vmatprep.mubr.bf16.mxu0 %v1067
        %3085 = vmatmul.mubr.bf16.gmra.mxu0 %v1066
        %v3086 = vpop.f32.mrf.mxu0
        %v3087 = vadd.f32 0.0, %v3086
        %v3088 = vpop.f32.mrf.mxu0
        %v3089 = vadd.f32 0.0, %v3088
        %v3090 = vpop.f32.mrf.mxu0
        %v3091 = vadd.f32 0.0, %v3090
        %v3092 = vpop.f32.mrf.mxu0
        %v3093 = vadd.f32 0.0, %v3092
        %3094 = vmatprep.mubr.bf16.mxu0 %v1071
        %3095 = vmatmul.mubr.bf16.gmra.mxu0 %v1070
        %v3096 = vpop.f32.mrf.mxu0
        %v3097 = vadd.f32 0.0, %v3096
        %v3098 = vpop.f32.mrf.mxu0
        %v3099 = vadd.f32 0.0, %v3098
        %v3100 = vpop.f32.mrf.mxu0
        %v3101 = vadd.f32 0.0, %v3100
        %v3102 = vpop.f32.mrf.mxu0
        %v3103 = vadd.f32 0.0, %v3102
        %3104 = vmatprep.mubr.bf16.mxu0 %v1075
        %3105 = vmatmul.mubr.bf16.gmra.mxu0 %v1074
        %v3106 = vpop.f32.mrf.mxu0
        %v3107 = vadd.f32 0.0, %v3106
        %v3108 = vpop.f32.mrf.mxu0
        %v3109 = vadd.f32 0.0, %v3108
        %v3110 = vpop.f32.mrf.mxu0
        %v3111 = vadd.f32 0.0, %v3110
        %v3112 = vpop.f32.mrf.mxu0
        %v3113 = vadd.f32 0.0, %v3112
        %3114 = vmatprep.mubr.bf16.mxu0 %v1079
        %3115 = vmatmul.mubr.bf16.gmra.mxu0 %v1078
        %v3116 = vpop.f32.mrf.mxu0
        %v3117 = vadd.f32 0.0, %v3116
        %v3118 = vpop.f32.mrf.mxu0
        %v3119 = vadd.f32 0.0, %v3118
        %v3120 = vpop.f32.mrf.mxu0
        %v3121 = vadd.f32 0.0, %v3120
        %v3122 = vpop.f32.mrf.mxu0
        %v3123 = vadd.f32 0.0, %v3122
        %3124 = vdwg.mxu0
        %3125 = vmatprep.subr.bf16.mxu0 %v2169
        %3126 = vmatpush1.bf16.xpose.msra.mxu0 %v2168
        %3127 = vmatprep.subr.bf16.mxu0 %v2165
        %3128 = vmatpush1.bf16.xpose.msra.mxu0 %v2164
        %3129 = vmatprep.subr.bf16.mxu0 %v2161
        %3130 = vmatpush1.bf16.xpose.msra.mxu0 %v2160
        %3131 = vmatprep.subr.bf16.mxu0 %v2157
        %3132 = vmatpush1.bf16.xpose.msra.mxu0 %v2156
        %3133 = vmatprep.subr.bf16.mxu0 %v2153
        %3134 = vmatpush1.bf16.xpose.msra.mxu0 %v2152
        %3135 = vmatprep.subr.bf16.mxu0 %v2149
        %3136 = vmatpush1.bf16.xpose.msra.mxu0 %v2148
        %3137 = vmatprep.subr.bf16.mxu0 %v2145
        %3138 = vmatpush1.bf16.xpose.msra.mxu0 %v2144
        %3139 = vmatprep.subr.bf16.mxu0 %v2141
        %3140 = vmatpush1.bf16.xpose.msra.mxu0 %v2140
        %3141 = vmatprep.subr.bf16.mxu0 %v2201
        %3142 = vmatpush2.bf16.xpose.msra.mxu0 %v2200
        %3143 = vmatprep.subr.bf16.mxu0 %v2197
        %3144 = vmatpush2.bf16.xpose.msra.mxu0 %v2196
        %3145 = vmatprep.subr.bf16.mxu0 %v2193
        %3146 = vmatpush2.bf16.xpose.msra.mxu0 %v2192
        %3147 = vmatprep.subr.bf16.mxu0 %v2189
        %3148 = vmatpush2.bf16.xpose.msra.mxu0 %v2188
        %3149 = vmatprep.subr.bf16.mxu0 %v2185
        %3150 = vmatpush2.bf16.xpose.msra.mxu0 %v2184
        %3151 = vmatprep.subr.bf16.mxu0 %v2181
        %3152 = vmatpush2.bf16.xpose.msra.mxu0 %v2180
        %3153 = vmatprep.subr.bf16.mxu0 %v2177
        %3154 = vmatpush2.bf16.xpose.msra.mxu0 %v2176
        %3155 = vmatprep.subr.bf16.mxu0 %v2173
        %3156 = vmatpush2.bf16.xpose.msra.mxu0 %v2172
        %3157 = vmatprep.mubr.bf16.mxu0 %v1057
        %3158 = vmatmul.mubr.bf16.gmra.mxu0 %v1056
        %v3159 = vpop.f32.mrf.mxu0
        %v3160 = vadd.f32 %v3057, %v3159
        %v3161 = vpop.f32.mrf.mxu0
        %v3162 = vadd.f32 %v3059, %v3161
        %v3163 = vpop.f32.mrf.mxu0
        %v3164 = vadd.f32 %v3061, %v3163
        %v3165 = vpop.f32.mrf.mxu0
        %v3166 = vadd.f32 %v3063, %v3165
        %3167 = vmatprep.mubr.bf16.mxu0 %v1061
        %3168 = vmatmul.mubr.bf16.gmra.mxu0 %v1060
        %v3169 = vpop.f32.mrf.mxu0
        %v3170 = vadd.f32 %v3067, %v3169
        %v3171 = vpop.f32.mrf.mxu0
        %v3172 = vadd.f32 %v3069, %v3171
        %v3173 = vpop.f32.mrf.mxu0
        %v3174 = vadd.f32 %v3071, %v3173
        %v3175 = vpop.f32.mrf.mxu0
        %v3176 = vadd.f32 %v3073, %v3175
        %3177 = vmatprep.mubr.bf16.mxu0 %v1065
        %3178 = vmatmul.mubr.bf16.gmra.mxu0 %v1064
        %v3179 = vpop.f32.mrf.mxu0
        %v3180 = vadd.f32 %v3077, %v3179
        %v3181 = vpop.f32.mrf.mxu0
        %v3182 = vadd.f32 %v3079, %v3181
        %v3183 = vpop.f32.mrf.mxu0
        %v3184 = vadd.f32 %v3081, %v3183
        %v3185 = vpop.f32.mrf.mxu0
        %v3186 = vadd.f32 %v3083, %v3185
        %3187 = vmatprep.mubr.bf16.mxu0 %v1069
        %3188 = vmatmul.mubr.bf16.gmra.mxu0 %v1068
        %v3189 = vpop.f32.mrf.mxu0
        %v3190 = vadd.f32 %v3087, %v3189
        %v3191 = vpop.f32.mrf.mxu0
        %v3192 = vadd.f32 %v3089, %v3191
        %v3193 = vpop.f32.mrf.mxu0
        %v3194 = vadd.f32 %v3091, %v3193
        %v3195 = vpop.f32.mrf.mxu0
        %v3196 = vadd.f32 %v3093, %v3195
        %3197 = vmatprep.mubr.bf16.mxu0 %v1073
        %3198 = vmatmul.mubr.bf16.gmra.mxu0 %v1072
        %v3199 = vpop.f32.mrf.mxu0
        %v3200 = vadd.f32 %v3097, %v3199
        %v3201 = vpop.f32.mrf.mxu0
        %v3202 = vadd.f32 %v3099, %v3201
        %v3203 = vpop.f32.mrf.mxu0
        %v3204 = vadd.f32 %v3101, %v3203
        %v3205 = vpop.f32.mrf.mxu0
        %v3206 = vadd.f32 %v3103, %v3205
        %3207 = vmatprep.mubr.bf16.mxu0 %v1077
        %3208 = vmatmul.mubr.bf16.gmra.mxu0 %v1076
        %v3209 = vpop.f32.mrf.mxu0
        %v3210 = vadd.f32 %v3107, %v3209
        %v3211 = vpop.f32.mrf.mxu0
        %v3212 = vadd.f32 %v3109, %v3211
        %v3213 = vpop.f32.mrf.mxu0
        %v3214 = vadd.f32 %v3111, %v3213
        %v3215 = vpop.f32.mrf.mxu0
        %v3216 = vadd.f32 %v3113, %v3215
        %3217 = vmatprep.mubr.bf16.mxu0 %v1081
        %3218 = vmatmul.mubr.bf16.gmra.mxu0 %v1080
        %v3219 = vpop.f32.mrf.mxu0
        %v3220 = vadd.f32 %v3117, %v3219
        %v3221 = vpop.f32.mrf.mxu0
        %v3222 = vadd.f32 %v3119, %v3221
        %v3223 = vpop.f32.mrf.mxu0
        %v3224 = vadd.f32 %v3121, %v3223
        %v3225 = vpop.f32.mrf.mxu0
        %v3226 = vadd.f32 %v3123, %v3225
        %3227 = vdwg.mxu0
        %3228 = vmatprep.subr.bf16.mxu0 %v2231
        %3229 = vmatpush1.bf16.xpose.msra.mxu0 %v2230
        %3230 = vmatprep.subr.bf16.mxu0 %v2227
        %3231 = vmatpush1.bf16.xpose.msra.mxu0 %v2226
        %3232 = vmatprep.subr.bf16.mxu0 %v2223
        %3233 = vmatpush1.bf16.xpose.msra.mxu0 %v2222
        %3234 = vmatprep.subr.bf16.mxu0 %v2219
        %3235 = vmatpush1.bf16.xpose.msra.mxu0 %v2218
        %3236 = vmatprep.subr.bf16.mxu0 %v2215
        %3237 = vmatpush1.bf16.xpose.msra.mxu0 %v2214
        %3238 = vmatprep.subr.bf16.mxu0 %v2211
        %3239 = vmatpush1.bf16.xpose.msra.mxu0 %v2210
        %3240 = vmatprep.subr.bf16.mxu0 %v2207
        %3241 = vmatpush1.bf16.xpose.msra.mxu0 %v2206
        %3242 = vmatprep.subr.bf16.mxu0 %v2203
        %3243 = vmatpush1.bf16.xpose.msra.mxu0 %v2202
        %3244 = vmatprep.subr.bf16.mxu0 %v2263
        %3245 = vmatpush2.bf16.xpose.msra.mxu0 %v2262
        %3246 = vmatprep.subr.bf16.mxu0 %v2259
        %3247 = vmatpush2.bf16.xpose.msra.mxu0 %v2258
        %3248 = vmatprep.subr.bf16.mxu0 %v2255
        %3249 = vmatpush2.bf16.xpose.msra.mxu0 %v2254
        %3250 = vmatprep.subr.bf16.mxu0 %v2251
        %3251 = vmatpush2.bf16.xpose.msra.mxu0 %v2250
        %3252 = vmatprep.subr.bf16.mxu0 %v2247
        %3253 = vmatpush2.bf16.xpose.msra.mxu0 %v2246
        %3254 = vmatprep.subr.bf16.mxu0 %v2243
        %3255 = vmatpush2.bf16.xpose.msra.mxu0 %v2242
        %3256 = vmatprep.subr.bf16.mxu0 %v2239
        %3257 = vmatpush2.bf16.xpose.msra.mxu0 %v2238
        %3258 = vmatprep.subr.bf16.mxu0 %v2235
        %3259 = vmatpush2.bf16.xpose.msra.mxu0 %v2234
        %3260 = vmatprep.mubr.bf16.mxu0 %v1055
        %3261 = vmatmul.mubr.bf16.gmra.mxu0 %v1054
        %v3262 = vpop.f32.mrf.mxu0
        %v3263 = vadd.f32 0.0, %v3262
        %v3264 = vpop.f32.mrf.mxu0
        %v3265 = vadd.f32 0.0, %v3264
        %v3266 = vpop.f32.mrf.mxu0
        %v3267 = vadd.f32 0.0, %v3266
        %v3268 = vpop.f32.mrf.mxu0
        %v3269 = vadd.f32 0.0, %v3268
        %3270 = vmatprep.mubr.bf16.mxu0 %v1059
        %3271 = vmatmul.mubr.bf16.gmra.mxu0 %v1058
        %v3272 = vpop.f32.mrf.mxu0
        %v3273 = vadd.f32 0.0, %v3272
        %v3274 = vpop.f32.mrf.mxu0
        %v3275 = vadd.f32 0.0, %v3274
        %v3276 = vpop.f32.mrf.mxu0
        %v3277 = vadd.f32 0.0, %v3276
        %v3278 = vpop.f32.mrf.mxu0
        %v3279 = vadd.f32 0.0, %v3278
        %3280 = vmatprep.mubr.bf16.mxu0 %v1063
        %3281 = vmatmul.mubr.bf16.gmra.mxu0 %v1062
        %v3282 = vpop.f32.mrf.mxu0
        %v3283 = vadd.f32 0.0, %v3282
        %v3284 = vpop.f32.mrf.mxu0
        %v3285 = vadd.f32 0.0, %v3284
        %v3286 = vpop.f32.mrf.mxu0
        %v3287 = vadd.f32 0.0, %v3286
        %v3288 = vpop.f32.mrf.mxu0
        %v3289 = vadd.f32 0.0, %v3288
        %3290 = vmatprep.mubr.bf16.mxu0 %v1067
        %3291 = vmatmul.mubr.bf16.gmra.mxu0 %v1066
        %v3292 = vpop.f32.mrf.mxu0
        %v3293 = vadd.f32 0.0, %v3292
        %v3294 = vpop.f32.mrf.mxu0
        %v3295 = vadd.f32 0.0, %v3294
        %v3296 = vpop.f32.mrf.mxu0
        %v3297 = vadd.f32 0.0, %v3296
        %v3298 = vpop.f32.mrf.mxu0
        %v3299 = vadd.f32 0.0, %v3298
        %3300 = vmatprep.mubr.bf16.mxu0 %v1071
        %3301 = vmatmul.mubr.bf16.gmra.mxu0 %v1070
        %v3302 = vpop.f32.mrf.mxu0
        %v3303 = vadd.f32 0.0, %v3302
        %v3304 = vpop.f32.mrf.mxu0
        %v3305 = vadd.f32 0.0, %v3304
        %v3306 = vpop.f32.mrf.mxu0
        %v3307 = vadd.f32 0.0, %v3306
        %v3308 = vpop.f32.mrf.mxu0
        %v3309 = vadd.f32 0.0, %v3308
        %3310 = vmatprep.mubr.bf16.mxu0 %v1075
        %3311 = vmatmul.mubr.bf16.gmra.mxu0 %v1074
        %v3312 = vpop.f32.mrf.mxu0
        %v3313 = vadd.f32 0.0, %v3312
        %v3314 = vpop.f32.mrf.mxu0
        %v3315 = vadd.f32 0.0, %v3314
        %v3316 = vpop.f32.mrf.mxu0
        %v3317 = vadd.f32 0.0, %v3316
        %v3318 = vpop.f32.mrf.mxu0
        %v3319 = vadd.f32 0.0, %v3318
        %3320 = vmatprep.mubr.bf16.mxu0 %v1079
        %3321 = vmatmul.mubr.bf16.gmra.mxu0 %v1078
        %v3322 = vpop.f32.mrf.mxu0
        %v3323 = vadd.f32 0.0, %v3322
        %v3324 = vpop.f32.mrf.mxu0
        %v3325 = vadd.f32 0.0, %v3324
        %v3326 = vpop.f32.mrf.mxu0
        %v3327 = vadd.f32 0.0, %v3326
        %v3328 = vpop.f32.mrf.mxu0
        %v3329 = vadd.f32 0.0, %v3328
        %3330 = vdwg.mxu0
        %3331 = vmatprep.subr.bf16.mxu0 %v2233
        %3332 = vmatpush1.bf16.xpose.msra.mxu0 %v2232
        %3333 = vmatprep.subr.bf16.mxu0 %v2229
        %3334 = vmatpush1.bf16.xpose.msra.mxu0 %v2228
        %3335 = vmatprep.subr.bf16.mxu0 %v2225
        %3336 = vmatpush1.bf16.xpose.msra.mxu0 %v2224
        %3337 = vmatprep.subr.bf16.mxu0 %v2221
        %3338 = vmatpush1.bf16.xpose.msra.mxu0 %v2220
        %3339 = vmatprep.subr.bf16.mxu0 %v2217
        %3340 = vmatpush1.bf16.xpose.msra.mxu0 %v2216
        %3341 = vmatprep.subr.bf16.mxu0 %v2213
        %3342 = vmatpush1.bf16.xpose.msra.mxu0 %v2212
        %3343 = vmatprep.subr.bf16.mxu0 %v2209
        %3344 = vmatpush1.bf16.xpose.msra.mxu0 %v2208
        %3345 = vmatprep.subr.bf16.mxu0 %v2205
        %3346 = vmatpush1.bf16.xpose.msra.mxu0 %v2204
        %3347 = vmatprep.subr.bf16.mxu0 %v2265
        %3348 = vmatpush2.bf16.xpose.msra.mxu0 %v2264
        %3349 = vmatprep.subr.bf16.mxu0 %v2261
        %3350 = vmatpush2.bf16.xpose.msra.mxu0 %v2260
        %3351 = vmatprep.subr.bf16.mxu0 %v2257
        %3352 = vmatpush2.bf16.xpose.msra.mxu0 %v2256
        %3353 = vmatprep.subr.bf16.mxu0 %v2253
        %3354 = vmatpush2.bf16.xpose.msra.mxu0 %v2252
        %3355 = vmatprep.subr.bf16.mxu0 %v2249
        %3356 = vmatpush2.bf16.xpose.msra.mxu0 %v2248
        %3357 = vmatprep.subr.bf16.mxu0 %v2245
        %3358 = vmatpush2.bf16.xpose.msra.mxu0 %v2244
        %3359 = vmatprep.subr.bf16.mxu0 %v2241
        %3360 = vmatpush2.bf16.xpose.msra.mxu0 %v2240
        %3361 = vmatprep.subr.bf16.mxu0 %v2237
        %3362 = vmatpush2.bf16.xpose.msra.mxu0 %v2236
        %3363 = vmatprep.mubr.bf16.mxu0 %v1057
        %3364 = vmatmul.mubr.bf16.gmra.mxu0 %v1056
        %v3365 = vpop.f32.mrf.mxu0
        %v3366 = vadd.f32 %v3263, %v3365
        %v3367 = vpop.f32.mrf.mxu0
        %v3368 = vadd.f32 %v3265, %v3367
        %v3369 = vpop.f32.mrf.mxu0
        %v3370 = vadd.f32 %v3267, %v3369
        %v3371 = vpop.f32.mrf.mxu0
        %v3372 = vadd.f32 %v3269, %v3371
        %3373 = vmatprep.mubr.bf16.mxu0 %v1061
        %3374 = vmatmul.mubr.bf16.gmra.mxu0 %v1060
        %v3375 = vpop.f32.mrf.mxu0
        %v3376 = vadd.f32 %v3273, %v3375
        %v3377 = vpop.f32.mrf.mxu0
        %v3378 = vadd.f32 %v3275, %v3377
        %v3379 = vpop.f32.mrf.mxu0
        %v3380 = vadd.f32 %v3277, %v3379
        %v3381 = vpop.f32.mrf.mxu0
        %v3382 = vadd.f32 %v3279, %v3381
        %3383 = vmatprep.mubr.bf16.mxu0 %v1065
        %3384 = vmatmul.mubr.bf16.gmra.mxu0 %v1064
        %v3385 = vpop.f32.mrf.mxu0
        %v3386 = vadd.f32 %v3283, %v3385
        %v3387 = vpop.f32.mrf.mxu0
        %v3388 = vadd.f32 %v3285, %v3387
        %v3389 = vpop.f32.mrf.mxu0
        %v3390 = vadd.f32 %v3287, %v3389
        %v3391 = vpop.f32.mrf.mxu0
        %v3392 = vadd.f32 %v3289, %v3391
        %3393 = vmatprep.mubr.bf16.mxu0 %v1069
        %3394 = vmatmul.mubr.bf16.gmra.mxu0 %v1068
        %v3395 = vpop.f32.mrf.mxu0
        %v3396 = vadd.f32 %v3293, %v3395
        %v3397 = vpop.f32.mrf.mxu0
        %v3398 = vadd.f32 %v3295, %v3397
        %v3399 = vpop.f32.mrf.mxu0
        %v3400 = vadd.f32 %v3297, %v3399
        %v3401 = vpop.f32.mrf.mxu0
        %v3402 = vadd.f32 %v3299, %v3401
        %3403 = vmatprep.mubr.bf16.mxu0 %v1073
        %3404 = vmatmul.mubr.bf16.gmra.mxu0 %v1072
        %v3405 = vpop.f32.mrf.mxu0
        %v3406 = vadd.f32 %v3303, %v3405
        %v3407 = vpop.f32.mrf.mxu0
        %v3408 = vadd.f32 %v3305, %v3407
        %v3409 = vpop.f32.mrf.mxu0
        %v3410 = vadd.f32 %v3307, %v3409
        %v3411 = vpop.f32.mrf.mxu0
        %v3412 = vadd.f32 %v3309, %v3411
        %3413 = vmatprep.mubr.bf16.mxu0 %v1077
        %3414 = vmatmul.mubr.bf16.gmra.mxu0 %v1076
        %v3415 = vpop.f32.mrf.mxu0
        %v3416 = vadd.f32 %v3313, %v3415
        %v3417 = vpop.f32.mrf.mxu0
        %v3418 = vadd.f32 %v3315, %v3417
        %v3419 = vpop.f32.mrf.mxu0
        %v3420 = vadd.f32 %v3317, %v3419
        %v3421 = vpop.f32.mrf.mxu0
        %v3422 = vadd.f32 %v3319, %v3421
        %3423 = vmatprep.mubr.bf16.mxu0 %v1081
        %3424 = vmatmul.mubr.bf16.gmra.mxu0 %v1080
        %v3425 = vpop.f32.mrf.mxu0
        %v3426 = vadd.f32 %v3323, %v3425
        %v3427 = vpop.f32.mrf.mxu0
        %v3428 = vadd.f32 %v3325, %v3427
        %v3429 = vpop.f32.mrf.mxu0
        %v3430 = vadd.f32 %v3327, %v3429
        %v3431 = vpop.f32.mrf.mxu0
        %v3432 = vadd.f32 %v3329, %v3431
        %3433 = vdwg.mxu0
        %3434 = vmatprep.subr.bf16.mxu0 %v2295
        %3435 = vmatpush1.bf16.xpose.msra.mxu0 %v2294
        %3436 = vmatprep.subr.bf16.mxu0 %v2291
        %3437 = vmatpush1.bf16.xpose.msra.mxu0 %v2290
        %3438 = vmatprep.subr.bf16.mxu0 %v2287
        %3439 = vmatpush1.bf16.xpose.msra.mxu0 %v2286
        %3440 = vmatprep.subr.bf16.mxu0 %v2283
        %3441 = vmatpush1.bf16.xpose.msra.mxu0 %v2282
        %3442 = vmatprep.subr.bf16.mxu0 %v2279
        %3443 = vmatpush1.bf16.xpose.msra.mxu0 %v2278
        %3444 = vmatprep.subr.bf16.mxu0 %v2275
        %3445 = vmatpush1.bf16.xpose.msra.mxu0 %v2274
        %3446 = vmatprep.subr.bf16.mxu0 %v2271
        %3447 = vmatpush1.bf16.xpose.msra.mxu0 %v2270
        %3448 = vmatprep.subr.bf16.mxu0 %v2267
        %3449 = vmatpush1.bf16.xpose.msra.mxu0 %v2266
        %3450 = vmatprep.subr.bf16.mxu0 0
        %3451 = vmatpush2.bf16.xpose.msra.mxu0 0
        %3452 = vmatprep.subr.bf16.mxu0 0
        %3453 = vmatpush2.bf16.xpose.msra.mxu0 0
        %3454 = vmatprep.subr.bf16.mxu0 0
        %3455 = vmatpush2.bf16.xpose.msra.mxu0 0
        %3456 = vmatprep.subr.bf16.mxu0 0
        %3457 = vmatpush2.bf16.xpose.msra.mxu0 0
        %3458 = vmatprep.subr.bf16.mxu0 0
        %3459 = vmatpush2.bf16.xpose.msra.mxu0 0
        %3460 = vmatprep.subr.bf16.mxu0 %v2307
        %3461 = vmatpush2.bf16.xpose.msra.mxu0 %v2306
        %3462 = vmatprep.subr.bf16.mxu0 %v2303
        %3463 = vmatpush2.bf16.xpose.msra.mxu0 %v2302
        %3464 = vmatprep.subr.bf16.mxu0 %v2299
        %3465 = vmatpush2.bf16.xpose.msra.mxu0 %v2298
        %3466 = vmatprep.mubr.bf16.mxu0 %v1055
        %3467 = vmatmul.mubr.bf16.gmra.mxu0 %v1054
        %v3468 = vpop.f32.mrf.mxu0
        %v3469 = vadd.f32 0.0, %v3468
        %v3470 = vpop.f32.mrf.mxu0
        %v3471 = vadd.f32 0.0, %v3470
        %v3472 = vpop.f32.mrf.mxu0
        %v3473 = vadd.f32 0.0, %v3472
        %v3474 = vpop.f32.mrf.mxu0
        %v3475 = vadd.f32 0.0, %v3474
        %3476 = vmatprep.mubr.bf16.mxu0 %v1059
        %3477 = vmatmul.mubr.bf16.gmra.mxu0 %v1058
        %v3478 = vpop.f32.mrf.mxu0
        %v3479 = vadd.f32 0.0, %v3478
        %v3480 = vpop.f32.mrf.mxu0
        %v3481 = vadd.f32 0.0, %v3480
        %v3482 = vpop.f32.mrf.mxu0
        %v3483 = vadd.f32 0.0, %v3482
        %v3484 = vpop.f32.mrf.mxu0
        %v3485 = vadd.f32 0.0, %v3484
        %3486 = vmatprep.mubr.bf16.mxu0 %v1063
        %3487 = vmatmul.mubr.bf16.gmra.mxu0 %v1062
        %v3488 = vpop.f32.mrf.mxu0
        %v3489 = vadd.f32 0.0, %v3488
        %v3490 = vpop.f32.mrf.mxu0
        %v3491 = vadd.f32 0.0, %v3490
        %v3492 = vpop.f32.mrf.mxu0
        %v3493 = vadd.f32 0.0, %v3492
        %v3494 = vpop.f32.mrf.mxu0
        %v3495 = vadd.f32 0.0, %v3494
        %3496 = vmatprep.mubr.bf16.mxu0 %v1067
        %3497 = vmatmul.mubr.bf16.gmra.mxu0 %v1066
        %v3498 = vpop.f32.mrf.mxu0
        %v3499 = vadd.f32 0.0, %v3498
        %v3500 = vpop.f32.mrf.mxu0
        %v3501 = vadd.f32 0.0, %v3500
        %v3502 = vpop.f32.mrf.mxu0
        %v3503 = vadd.f32 0.0, %v3502
        %v3504 = vpop.f32.mrf.mxu0
        %v3505 = vadd.f32 0.0, %v3504
        %3506 = vmatprep.mubr.bf16.mxu0 %v1071
        %3507 = vmatmul.mubr.bf16.gmra.mxu0 %v1070
        %v3508 = vpop.f32.mrf.mxu0
        %v3509 = vadd.f32 0.0, %v3508
        %v3510 = vpop.f32.mrf.mxu0
        %v3511 = vadd.f32 0.0, %v3510
        %v3512 = vpop.f32.mrf.mxu0
        %v3513 = vadd.f32 0.0, %v3512
        %v3514 = vpop.f32.mrf.mxu0
        %v3515 = vadd.f32 0.0, %v3514
        %3516 = vmatprep.mubr.bf16.mxu0 %v1075
        %3517 = vmatmul.mubr.bf16.gmra.mxu0 %v1074
        %v3518 = vpop.f32.mrf.mxu0
        %v3519 = vadd.f32 0.0, %v3518
        %v3520 = vpop.f32.mrf.mxu0
        %v3521 = vadd.f32 0.0, %v3520
        %v3522 = vpop.f32.mrf.mxu0
        %v3523 = vadd.f32 0.0, %v3522
        %v3524 = vpop.f32.mrf.mxu0
        %v3525 = vadd.f32 0.0, %v3524
        %3526 = vmatprep.mubr.bf16.mxu0 %v1079
        %3527 = vmatmul.mubr.bf16.gmra.mxu0 %v1078
        %v3528 = vpop.f32.mrf.mxu0
        %v3529 = vadd.f32 0.0, %v3528
        %v3530 = vpop.f32.mrf.mxu0
        %v3531 = vadd.f32 0.0, %v3530
        %v3532 = vpop.f32.mrf.mxu0
        %v3533 = vadd.f32 0.0, %v3532
        %v3534 = vpop.f32.mrf.mxu0
        %v3535 = vadd.f32 0.0, %v3534
        %3536 = vdwg.mxu0
        %3537 = vmatprep.subr.bf16.mxu0 %v2297
        %3538 = vmatpush1.bf16.xpose.msra.mxu0 %v2296
        %3539 = vmatprep.subr.bf16.mxu0 %v2293
        %3540 = vmatpush1.bf16.xpose.msra.mxu0 %v2292
        %3541 = vmatprep.subr.bf16.mxu0 %v2289
        %3542 = vmatpush1.bf16.xpose.msra.mxu0 %v2288
        %3543 = vmatprep.subr.bf16.mxu0 %v2285
        %3544 = vmatpush1.bf16.xpose.msra.mxu0 %v2284
        %3545 = vmatprep.subr.bf16.mxu0 %v2281
        %3546 = vmatpush1.bf16.xpose.msra.mxu0 %v2280
        %3547 = vmatprep.subr.bf16.mxu0 %v2277
        %3548 = vmatpush1.bf16.xpose.msra.mxu0 %v2276
        %3549 = vmatprep.subr.bf16.mxu0 %v2273
        %3550 = vmatpush1.bf16.xpose.msra.mxu0 %v2272
        %3551 = vmatprep.subr.bf16.mxu0 %v2269
        %3552 = vmatpush1.bf16.xpose.msra.mxu0 %v2268
        %3553 = vmatprep.subr.bf16.mxu0 0
        %3554 = vmatpush2.bf16.xpose.msra.mxu0 0
        %3555 = vmatprep.subr.bf16.mxu0 0
        %3556 = vmatpush2.bf16.xpose.msra.mxu0 0
        %3557 = vmatprep.subr.bf16.mxu0 0
        %3558 = vmatpush2.bf16.xpose.msra.mxu0 0
        %3559 = vmatprep.subr.bf16.mxu0 0
        %3560 = vmatpush2.bf16.xpose.msra.mxu0 0
        %3561 = vmatprep.subr.bf16.mxu0 0
        %3562 = vmatpush2.bf16.xpose.msra.mxu0 0
        %3563 = vmatprep.subr.bf16.mxu0 %v2309
        %3564 = vmatpush2.bf16.xpose.msra.mxu0 %v2308
        %3565 = vmatprep.subr.bf16.mxu0 %v2305
        %3566 = vmatpush2.bf16.xpose.msra.mxu0 %v2304
        %3567 = vmatprep.subr.bf16.mxu0 %v2301
        %3568 = vmatpush2.bf16.xpose.msra.mxu0 %v2300
        %3569 = vmatprep.mubr.bf16.mxu0 %v1057
        %3570 = vmatmul.mubr.bf16.gmra.mxu0 %v1056
        %v3571 = vpop.f32.mrf.mxu0
        %v3572 = vadd.f32 %v3469, %v3571
        %v3573 = vpop.f32.mrf.mxu0
        %v3574 = vadd.f32 %v3471, %v3573
        %v3575 = vpop.f32.mrf.mxu0
        %v3576 = vadd.f32 %v3473, %v3575
        %v3577 = vpop.f32.mrf.mxu0
        %v3578 = vadd.f32 %v3475, %v3577
        %3579 = vmatprep.mubr.bf16.mxu0 %v1061
        %3580 = vmatmul.mubr.bf16.gmra.mxu0 %v1060
        %v3581 = vpop.f32.mrf.mxu0
        %v3582 = vadd.f32 %v3479, %v3581
        %v3583 = vpop.f32.mrf.mxu0
        %v3584 = vadd.f32 %v3481, %v3583
        %v3585 = vpop.f32.mrf.mxu0
        %v3586 = vadd.f32 %v3483, %v3585
        %v3587 = vpop.f32.mrf.mxu0
        %v3588 = vadd.f32 %v3485, %v3587
        %3589 = vmatprep.mubr.bf16.mxu0 %v1065
        %3590 = vmatmul.mubr.bf16.gmra.mxu0 %v1064
        %v3591 = vpop.f32.mrf.mxu0
        %v3592 = vadd.f32 %v3489, %v3591
        %v3593 = vpop.f32.mrf.mxu0
        %v3594 = vadd.f32 %v3491, %v3593
        %v3595 = vpop.f32.mrf.mxu0
        %v3596 = vadd.f32 %v3493, %v3595
        %v3597 = vpop.f32.mrf.mxu0
        %v3598 = vadd.f32 %v3495, %v3597
        %3599 = vmatprep.mubr.bf16.mxu0 %v1069
        %3600 = vmatmul.mubr.bf16.gmra.mxu0 %v1068
        %v3601 = vpop.f32.mrf.mxu0
        %v3602 = vadd.f32 %v3499, %v3601
        %v3603 = vpop.f32.mrf.mxu0
        %v3604 = vadd.f32 %v3501, %v3603
        %v3605 = vpop.f32.mrf.mxu0
        %v3606 = vadd.f32 %v3503, %v3605
        %v3607 = vpop.f32.mrf.mxu0
        %v3608 = vadd.f32 %v3505, %v3607
        %3609 = vmatprep.mubr.bf16.mxu0 %v1073
        %3610 = vmatmul.mubr.bf16.gmra.mxu0 %v1072
        %v3611 = vpop.f32.mrf.mxu0
        %v3612 = vadd.f32 %v3509, %v3611
        %v3613 = vpop.f32.mrf.mxu0
        %v3614 = vadd.f32 %v3511, %v3613
        %v3615 = vpop.f32.mrf.mxu0
        %v3616 = vadd.f32 %v3513, %v3615
        %v3617 = vpop.f32.mrf.mxu0
        %v3618 = vadd.f32 %v3515, %v3617
        %3619 = vmatprep.mubr.bf16.mxu0 %v1077
        %3620 = vmatmul.mubr.bf16.gmra.mxu0 %v1076
        %v3621 = vpop.f32.mrf.mxu0
        %v3622 = vadd.f32 %v3519, %v3621
        %v3623 = vpop.f32.mrf.mxu0
        %v3624 = vadd.f32 %v3521, %v3623
        %v3625 = vpop.f32.mrf.mxu0
        %v3626 = vadd.f32 %v3523, %v3625
        %v3627 = vpop.f32.mrf.mxu0
        %v3628 = vadd.f32 %v3525, %v3627
        %3629 = vmatprep.mubr.bf16.mxu0 %v1081
        %3630 = vmatmul.mubr.bf16.gmra.mxu0 %v1080
        %v3631 = vpop.f32.mrf.mxu0
        %v3632 = vadd.f32 %v3529, %v3631
        %v3633 = vpop.f32.mrf.mxu0
        %v3634 = vadd.f32 %v3531, %v3633
        %v3635 = vpop.f32.mrf.mxu0
        %v3636 = vadd.f32 %v3533, %v3635
        %v3637 = vpop.f32.mrf.mxu0
        %v3638 = vadd.f32 %v3535, %v3637
        %3639 = vdwg.mxu0
        %v3640 = vadd.f32 %v502, %v2748
        %v3641 = vadd.f32 %v503, %v2750
        %v3642 = vadd.f32 %v504, %v2954
        %v3643 = vadd.f32 %v505, %v2956
        %v3644 = vadd.f32 %v506, %v3160
        %v3645 = vadd.f32 %v507, %v3162
        %v3646 = vadd.f32 %v508, %v3366
        %v3647 = vadd.f32 %v509, %v3368
        %v3648 = vadd.f32 %v510, %v3572
        %v3649 = vadd.f32 %v511, %v3574
        %v3650 = vadd.f32 %v512, %v2752
        %v3651 = vadd.f32 %v513, %v2754
        %v3652 = vadd.f32 %v514, %v2958
        %v3653 = vadd.f32 %v515, %v2960
        %v3654 = vadd.f32 %v516, %v3164
        %v3655 = vadd.f32 %v517, %v3166
        %v3656 = vadd.f32 %v518, %v3370
        %v3657 = vadd.f32 %v519, %v3372
        %v3658 = vadd.f32 %v520, %v3576
        %v3659 = vadd.f32 %v521, %v3578
        %v3660 = vadd.f32 %v522, %v2758
        %v3661 = vadd.f32 %v523, %v2760
        %v3662 = vadd.f32 %v524, %v2964
        %v3663 = vadd.f32 %v525, %v2966
        %v3664 = vadd.f32 %v526, %v3170
        %v3665 = vadd.f32 %v527, %v3172
        %v3666 = vadd.f32 %v528, %v3376
        %v3667 = vadd.f32 %v529, %v3378
        %v3668 = vadd.f32 %v530, %v3582
        %v3669 = vadd.f32 %v531, %v3584
        %v3670 = vadd.f32 %v532, %v2762
        %v3671 = vadd.f32 %v533, %v2764
        %v3672 = vadd.f32 %v534, %v2968
        %v3673 = vadd.f32 %v535, %v2970
        %v3674 = vadd.f32 %v536, %v3174
        %v3675 = vadd.f32 %v537, %v3176
        %v3676 = vadd.f32 %v538, %v3380
        %v3677 = vadd.f32 %v539, %v3382
        %v3678 = vadd.f32 %v540, %v3586
        %v3679 = vadd.f32 %v541, %v3588
        %v3680 = vadd.f32 %v542, %v2768
        %v3681 = vadd.f32 %v543, %v2770
        %v3682 = vadd.f32 %v544, %v2974
        %v3683 = vadd.f32 %v545, %v2976
        %v3684 = vadd.f32 %v546, %v3180
        %v3685 = vadd.f32 %v547, %v3182
        %v3686 = vadd.f32 %v548, %v3386
        %v3687 = vadd.f32 %v549, %v3388
        %v3688 = vadd.f32 %v550, %v3592
        %v3689 = vadd.f32 %v551, %v3594
        %v3690 = vadd.f32 %v552, %v2772
        %v3691 = vadd.f32 %v553, %v2774
        %v3692 = vadd.f32 %v554, %v2978
        %v3693 = vadd.f32 %v555, %v2980
        %v3694 = vadd.f32 %v556, %v3184
        %v3695 = vadd.f32 %v557, %v3186
        %v3696 = vadd.f32 %v558, %v3390
        %v3697 = vadd.f32 %v559, %v3392
        %v3698 = vadd.f32 %v560, %v3596
        %v3699 = vadd.f32 %v561, %v3598
        %v3700 = vadd.f32 %v562, %v2778
        %v3701 = vadd.f32 %v563, %v2780
        %v3702 = vadd.f32 %v564, %v2984
        %v3703 = vadd.f32 %v565, %v2986
        %v3704 = vadd.f32 %v566, %v3190
        %v3705 = vadd.f32 %v567, %v3192
        %v3706 = vadd.f32 %v568, %v3396
        %v3707 = vadd.f32 %v569, %v3398
        %v3708 = vadd.f32 %v570, %v3602
        %v3709 = vadd.f32 %v571, %v3604
        %v3710 = vadd.f32 %v572, %v2782
        %v3711 = vadd.f32 %v573, %v2784
        %v3712 = vadd.f32 %v574, %v2988
        %v3713 = vadd.f32 %v575, %v2990
        %v3714 = vadd.f32 %v576, %v3194
        %v3715 = vadd.f32 %v577, %v3196
        %v3716 = vadd.f32 %v578, %v3400
        %v3717 = vadd.f32 %v579, %v3402
        %v3718 = vadd.f32 %v580, %v3606
        %v3719 = vadd.f32 %v581, %v3608
        %v3720 = vadd.f32 %v582, %v2788
        %v3721 = vadd.f32 %v583, %v2790
        %v3722 = vadd.f32 %v584, %v2994
        %v3723 = vadd.f32 %v585, %v2996
        %v3724 = vadd.f32 %v586, %v3200
        %v3725 = vadd.f32 %v587, %v3202
        %v3726 = vadd.f32 %v588, %v3406
        %v3727 = vadd.f32 %v589, %v3408
        %v3728 = vadd.f32 %v590, %v3612
        %v3729 = vadd.f32 %v591, %v3614
        %v3730 = vadd.f32 %v592, %v2792
        %v3731 = vadd.f32 %v593, %v2794
        %v3732 = vadd.f32 %v594, %v2998
        %v3733 = vadd.f32 %v595, %v3000
        %v3734 = vadd.f32 %v596, %v3204
        %v3735 = vadd.f32 %v597, %v3206
        %v3736 = vadd.f32 %v598, %v3410
        %v3737 = vadd.f32 %v599, %v3412
        %v3738 = vadd.f32 %v600, %v3616
        %v3739 = vadd.f32 %v601, %v3618
        %v3740 = vadd.f32 %v602, %v2798
        %v3741 = vadd.f32 %v603, %v2800
        %v3742 = vadd.f32 %v604, %v3004
        %v3743 = vadd.f32 %v605, %v3006
        %v3744 = vadd.f32 %v606, %v3210
        %v3745 = vadd.f32 %v607, %v3212
        %v3746 = vadd.f32 %v608, %v3416
        %v3747 = vadd.f32 %v609, %v3418
        %v3748 = vadd.f32 %v610, %v3622
        %v3749 = vadd.f32 %v611, %v3624
        %v3750 = vadd.f32 %v612, %v2802
        %v3751 = vadd.f32 %v613, %v2804
        %v3752 = vadd.f32 %v614, %v3008
        %v3753 = vadd.f32 %v615, %v3010
        %v3754 = vadd.f32 %v616, %v3214
        %v3755 = vadd.f32 %v617, %v3216
        %v3756 = vadd.f32 %v618, %v3420
        %v3757 = vadd.f32 %v619, %v3422
        %v3758 = vadd.f32 %v620, %v3626
        %v3759 = vadd.f32 %v621, %v3628
        %v3760 = vadd.f32 %v622, %v2808
        %v3761 = vadd.f32 %v623, %v2810
        %v3762 = vadd.f32 %v624, %v3014
        %v3763 = vadd.f32 %v625, %v3016
        %v3764 = vadd.f32 %v626, %v3220
        %v3765 = vadd.f32 %v627, %v3222
        %v3766 = vadd.f32 %v628, %v3426
        %v3767 = vadd.f32 %v629, %v3428
        %v3768 = vadd.f32 %v630, %v3632
        %v3769 = vadd.f32 %v631, %v3634
        %v3770 = vadd.f32 %v632, %v2812
        %v3771 = vadd.f32 %v633, %v2814
        %v3772 = vadd.f32 %v634, %v3018
        %v3773 = vadd.f32 %v635, %v3020
        %v3774 = vadd.f32 %v636, %v3224
        %v3775 = vadd.f32 %v637, %v3226
        %v3776 = vadd.f32 %v638, %v3430
        %v3777 = vadd.f32 %v639, %v3432
        %v3778 = vadd.f32 %v640, %v3636
        %v3779 = vadd.f32 %v641, %v3638
        %3780 = vst [vmem:[#allocation2] sm:$0xff] %v3640
        %3781 = vst [vmem:[#allocation2 + $0x8] sm:$0xff] %v3641
        %3782 = vst [vmem:[#allocation2 + $0x10] sm:$0xff] %v3642
        %3783 = vst [vmem:[#allocation2 + $0x18] sm:$0xff] %v3643
        %3784 = vst [vmem:[#allocation2 + $0x20] sm:$0xff] %v3644
        %3785 = vst [vmem:[#allocation2 + $0x28] sm:$0xff] %v3645
        %3786 = vst [vmem:[#allocation2 + $0x30] sm:$0xff] %v3646
        %3787 = vst [vmem:[#allocation2 + $0x38] sm:$0xff] %v3647
        %3788 = vst [vmem:[#allocation2 + $0x40] sm:$0xff] %v3648
        %vm3789 = vcmask 375808
        %3790 = vst.msk [vmem:[#allocation2 + $0x48] sm:$0xff] %vm3789, %v3649
        %3791 = vst [vmem:[#allocation2 + $0x50] sm:$0xff] %v3650
        %3792 = vst [vmem:[#allocation2 + $0x58] sm:$0xff] %v3651
        %3793 = vst [vmem:[#allocation2 + $0x60] sm:$0xff] %v3652
        %3794 = vst [vmem:[#allocation2 + $0x68] sm:$0xff] %v3653
        %3795 = vst [vmem:[#allocation2 + $0x70] sm:$0xff] %v3654
        %3796 = vst [vmem:[#allocation2 + $0x78] sm:$0xff] %v3655
        %3797 = vst [vmem:[#allocation2 + $0x80] sm:$0xff] %v3656
        %3798 = vst [vmem:[#allocation2 + $0x88] sm:$0xff] %v3657
        %3799 = vst [vmem:[#allocation2 + $0x90] sm:$0xff] %v3658
        %3800 = vst.msk [vmem:[#allocation2 + $0x98] sm:$0xff] %vm3789, %v3659
        %3801 = vst [vmem:[#allocation2 + $0xa0] sm:$0xff] %v3660
        %3802 = vst [vmem:[#allocation2 + $0xa8] sm:$0xff] %v3661
        %3803 = vst [vmem:[#allocation2 + $0xb0] sm:$0xff] %v3662
        %3804 = vst [vmem:[#allocation2 + $0xb8] sm:$0xff] %v3663
        %3805 = vst [vmem:[#allocation2 + $0xc0] sm:$0xff] %v3664
        %3806 = vst [vmem:[#allocation2 + $0xc8] sm:$0xff] %v3665
        %3807 = vst [vmem:[#allocation2 + $0xd0] sm:$0xff] %v3666
        %3808 = vst [vmem:[#allocation2 + $0xd8] sm:$0xff] %v3667
        %3809 = vst [vmem:[#allocation2 + $0xe0] sm:$0xff] %v3668
        %3810 = vst.msk [vmem:[#allocation2 + $0xe8] sm:$0xff] %vm3789, %v3669
        %3811 = vst [vmem:[#allocation2 + $0xf0] sm:$0xff] %v3670
        %3812 = vst [vmem:[#allocation2 + $0xf8] sm:$0xff] %v3671
        %3813 = vst [vmem:[#allocation2 + $0x100] sm:$0xff] %v3672
        %3814 = vst [vmem:[#allocation2 + $0x108] sm:$0xff] %v3673
        %3815 = vst [vmem:[#allocation2 + $0x110] sm:$0xff] %v3674
        %3816 = vst [vmem:[#allocation2 + $0x118] sm:$0xff] %v3675
        %3817 = vst [vmem:[#allocation2 + $0x120] sm:$0xff] %v3676
        %3818 = vst [vmem:[#allocation2 + $0x128] sm:$0xff] %v3677
        %3819 = vst [vmem:[#allocation2 + $0x130] sm:$0xff] %v3678
        %3820 = vst.msk [vmem:[#allocation2 + $0x138] sm:$0xff] %vm3789, %v3679
        %3821 = vst [vmem:[#allocation2 + $0x140] sm:$0xff] %v3680
        %3822 = vst [vmem:[#allocation2 + $0x148] sm:$0xff] %v3681
        %3823 = vst [vmem:[#allocation2 + $0x150] sm:$0xff] %v3682
        %3824 = vst [vmem:[#allocation2 + $0x158] sm:$0xff] %v3683
        %3825 = vst [vmem:[#allocation2 + $0x160] sm:$0xff] %v3684
        %3826 = vst [vmem:[#allocation2 + $0x168] sm:$0xff] %v3685
        %3827 = vst [vmem:[#allocation2 + $0x170] sm:$0xff] %v3686
        %3828 = vst [vmem:[#allocation2 + $0x178] sm:$0xff] %v3687
        %3829 = vst [vmem:[#allocation2 + $0x180] sm:$0xff] %v3688
        %3830 = vst.msk [vmem:[#allocation2 + $0x188] sm:$0xff] %vm3789, %v3689
        %3831 = vst [vmem:[#allocation2 + $0x190] sm:$0xff] %v3690
        %3832 = vst [vmem:[#allocation2 + $0x198] sm:$0xff] %v3691
        %3833 = vst [vmem:[#allocation2 + $0x1a0] sm:$0xff] %v3692
        %3834 = vst [vmem:[#allocation2 + $0x1a8] sm:$0xff] %v3693
        %3835 = vst [vmem:[#allocation2 + $0x1b0] sm:$0xff] %v3694
        %3836 = vst [vmem:[#allocation2 + $0x1b8] sm:$0xff] %v3695
        %3837 = vst [vmem:[#allocation2 + $0x1c0] sm:$0xff] %v3696
        %3838 = vst [vmem:[#allocation2 + $0x1c8] sm:$0xff] %v3697
        %3839 = vst [vmem:[#allocation2 + $0x1d0] sm:$0xff] %v3698
        %3840 = vst.msk [vmem:[#allocation2 + $0x1d8] sm:$0xff] %vm3789, %v3699
        %3841 = vst [vmem:[#allocation2 + $0x1e0] sm:$0xff] %v3700
        %3842 = vst [vmem:[#allocation2 + $0x1e8] sm:$0xff] %v3701
        %3843 = vst [vmem:[#allocation2 + $0x1f0] sm:$0xff] %v3702
        %3844 = vst [vmem:[#allocation2 + $0x1f8] sm:$0xff] %v3703
        %3845 = vst [vmem:[#allocation2 + $0x200] sm:$0xff] %v3704
        %3846 = vst [vmem:[#allocation2 + $0x208] sm:$0xff] %v3705
        %3847 = vst [vmem:[#allocation2 + $0x210] sm:$0xff] %v3706
        %3848 = vst [vmem:[#allocation2 + $0x218] sm:$0xff] %v3707
        %3849 = vst [vmem:[#allocation2 + $0x220] sm:$0xff] %v3708
        %3850 = vst.msk [vmem:[#allocation2 + $0x228] sm:$0xff] %vm3789, %v3709
        %3851 = vst [vmem:[#allocation2 + $0x230] sm:$0xff] %v3710
        %3852 = vst [vmem:[#allocation2 + $0x238] sm:$0xff] %v3711
        %3853 = vst [vmem:[#allocation2 + $0x240] sm:$0xff] %v3712
        %3854 = vst [vmem:[#allocation2 + $0x248] sm:$0xff] %v3713
        %3855 = vst [vmem:[#allocation2 + $0x250] sm:$0xff] %v3714
        %3856 = vst [vmem:[#allocation2 + $0x258] sm:$0xff] %v3715
        %3857 = vst [vmem:[#allocation2 + $0x260] sm:$0xff] %v3716
        %3858 = vst [vmem:[#allocation2 + $0x268] sm:$0xff] %v3717
        %3859 = vst [vmem:[#allocation2 + $0x270] sm:$0xff] %v3718
        %3860 = vst.msk [vmem:[#allocation2 + $0x278] sm:$0xff] %vm3789, %v3719
        %3861 = vst [vmem:[#allocation2 + $0x280] sm:$0xff] %v3720
        %3862 = vst [vmem:[#allocation2 + $0x288] sm:$0xff] %v3721
        %3863 = vst [vmem:[#allocation2 + $0x290] sm:$0xff] %v3722
        %3864 = vst [vmem:[#allocation2 + $0x298] sm:$0xff] %v3723
        %3865 = vst [vmem:[#allocation2 + $0x2a0] sm:$0xff] %v3724
        %3866 = vst [vmem:[#allocation2 + $0x2a8] sm:$0xff] %v3725
        %3867 = vst [vmem:[#allocation2 + $0x2b0] sm:$0xff] %v3726
        %3868 = vst [vmem:[#allocation2 + $0x2b8] sm:$0xff] %v3727
        %3869 = vst [vmem:[#allocation2 + $0x2c0] sm:$0xff] %v3728
        %3870 = vst.msk [vmem:[#allocation2 + $0x2c8] sm:$0xff] %vm3789, %v3729
        %3871 = vst [vmem:[#allocation2 + $0x2d0] sm:$0xff] %v3730
        %3872 = vst [vmem:[#allocation2 + $0x2d8] sm:$0xff] %v3731
        %3873 = vst [vmem:[#allocation2 + $0x2e0] sm:$0xff] %v3732
        %3874 = vst [vmem:[#allocation2 + $0x2e8] sm:$0xff] %v3733
        %3875 = vst [vmem:[#allocation2 + $0x2f0] sm:$0xff] %v3734
        %3876 = vst [vmem:[#allocation2 + $0x2f8] sm:$0xff] %v3735
        %3877 = vst [vmem:[#allocation2 + $0x300] sm:$0xff] %v3736
        %3878 = vst [vmem:[#allocation2 + $0x308] sm:$0xff] %v3737
        %3879 = vst [vmem:[#allocation2 + $0x310] sm:$0xff] %v3738
        %3880 = vst.msk [vmem:[#allocation2 + $0x318] sm:$0xff] %vm3789, %v3739
        %3881 = vst [vmem:[#allocation2 + $0x320] sm:$0xff] %v3740
        %3882 = vst [vmem:[#allocation2 + $0x328] sm:$0xff] %v3741
        %3883 = vst [vmem:[#allocation2 + $0x330] sm:$0xff] %v3742
        %3884 = vst [vmem:[#allocation2 + $0x338] sm:$0xff] %v3743
        %3885 = vst [vmem:[#allocation2 + $0x340] sm:$0xff] %v3744
        %3886 = vst [vmem:[#allocation2 + $0x348] sm:$0xff] %v3745
        %3887 = vst [vmem:[#allocation2 + $0x350] sm:$0xff] %v3746
        %3888 = vst [vmem:[#allocation2 + $0x358] sm:$0xff] %v3747
        %3889 = vst [vmem:[#allocation2 + $0x360] sm:$0xff] %v3748
        %3890 = vst.msk [vmem:[#allocation2 + $0x368] sm:$0xff] %vm3789, %v3749
        %3891 = vst [vmem:[#allocation2 + $0x370] sm:$0xff] %v3750
        %3892 = vst [vmem:[#allocation2 + $0x378] sm:$0xff] %v3751
        %3893 = vst [vmem:[#allocation2 + $0x380] sm:$0xff] %v3752
        %3894 = vst [vmem:[#allocation2 + $0x388] sm:$0xff] %v3753
        %3895 = vst [vmem:[#allocation2 + $0x390] sm:$0xff] %v3754
        %3896 = vst [vmem:[#allocation2 + $0x398] sm:$0xff] %v3755
        %3897 = vst [vmem:[#allocation2 + $0x3a0] sm:$0xff] %v3756
        %3898 = vst [vmem:[#allocation2 + $0x3a8] sm:$0xff] %v3757
        %3899 = vst [vmem:[#allocation2 + $0x3b0] sm:$0xff] %v3758
        %3900 = vst.msk [vmem:[#allocation2 + $0x3b8] sm:$0xff] %vm3789, %v3759
        %3901 = vst [vmem:[#allocation2 + $0x3c0] sm:$0xff] %v3760
        %3902 = vst [vmem:[#allocation2 + $0x3c8] sm:$0xff] %v3761
        %3903 = vst [vmem:[#allocation2 + $0x3d0] sm:$0xff] %v3762
        %3904 = vst [vmem:[#allocation2 + $0x3d8] sm:$0xff] %v3763
        %3905 = vst [vmem:[#allocation2 + $0x3e0] sm:$0xff] %v3764
        %3906 = vst [vmem:[#allocation2 + $0x3e8] sm:$0xff] %v3765
        %3907 = vst [vmem:[#allocation2 + $0x3f0] sm:$0xff] %v3766
        %3908 = vst [vmem:[#allocation2 + $0x3f8] sm:$0xff] %v3767
        %3909 = vst [vmem:[#allocation2 + $0x400] sm:$0xff] %v3768
        %3910 = vst.msk [vmem:[#allocation2 + $0x408] sm:$0xff] %vm3789, %v3769
        %3911 = vst [vmem:[#allocation2 + $0x410] sm:$0xff] %v3770
        %3912 = vst [vmem:[#allocation2 + $0x418] sm:$0xff] %v3771
        %3913 = vst [vmem:[#allocation2 + $0x420] sm:$0xff] %v3772
        %3914 = vst [vmem:[#allocation2 + $0x428] sm:$0xff] %v3773
        %3915 = vst [vmem:[#allocation2 + $0x430] sm:$0xff] %v3774
        %3916 = vst [vmem:[#allocation2 + $0x438] sm:$0xff] %v3775
        %3917 = vst [vmem:[#allocation2 + $0x440] sm:$0xff] %v3776
        %3918 = vst [vmem:[#allocation2 + $0x448] sm:$0xff] %v3777
        %3919 = vst [vmem:[#allocation2 + $0x450] sm:$0xff] %v3778
        %3920 = vst.msk [vmem:[#allocation2 + $0x458] sm:$0xff] %vm3789, %v3779
        %p3921 = scmp.eq.s32.totalorder %s28, 3
        // Predicated region
        $region69: #{tpu_custom_call.1} parent=47 // pred_check
          %p3922 = pneg %p3921
        $region70: #{tpu_custom_call.1} parent=47 // pred_check_branch
          %3924 = sbr.rel (%p3922) target = $region72
        $region71: #{tpu_custom_call.1} parent=47 // pred_region
          %v3925 = vld [vmem:[#allocation2] sm:$0xff]
          %v3926 = vld [vmem:[#allocation2 + $0x8] sm:$0xff]
          %v3927 = vld [vmem:[#allocation2 + $0x10] sm:$0xff]
          %v3928 = vld [vmem:[#allocation2 + $0x18] sm:$0xff]
          %v3929 = vld [vmem:[#allocation2 + $0x20] sm:$0xff]
          %v3930 = vld [vmem:[#allocation2 + $0x28] sm:$0xff]
          %v3931 = vld [vmem:[#allocation2 + $0x30] sm:$0xff]
          %v3932 = vld [vmem:[#allocation2 + $0x38] sm:$0xff]
          %v3933 = vld [vmem:[#allocation2 + $0x40] sm:$0xff]
          %v3934 = vld [vmem:[#allocation2 + $0x48] sm:$0xff]
          %v3935 = vld [vmem:[#allocation2 + $0x50] sm:$0xff]
          %v3936 = vld [vmem:[#allocation2 + $0x58] sm:$0xff]
          %v3937 = vld [vmem:[#allocation2 + $0x60] sm:$0xff]
          %v3938 = vld [vmem:[#allocation2 + $0x68] sm:$0xff]
          %v3939 = vld [vmem:[#allocation2 + $0x70] sm:$0xff]
          %v3940 = vld [vmem:[#allocation2 + $0x78] sm:$0xff]
          %v3941 = vld [vmem:[#allocation2 + $0x80] sm:$0xff]
          %v3942 = vld [vmem:[#allocation2 + $0x88] sm:$0xff]
          %v3943 = vld [vmem:[#allocation2 + $0x90] sm:$0xff]
          %v3944 = vld [vmem:[#allocation2 + $0x98] sm:$0xff]
          %v3945 = vld [vmem:[#allocation2 + $0xa0] sm:$0xff]
          %v3946 = vld [vmem:[#allocation2 + $0xa8] sm:$0xff]
          %v3947 = vld [vmem:[#allocation2 + $0xb0] sm:$0xff]
          %v3948 = vld [vmem:[#allocation2 + $0xb8] sm:$0xff]
          %v3949 = vld [vmem:[#allocation2 + $0xc0] sm:$0xff]
          %v3950 = vld [vmem:[#allocation2 + $0xc8] sm:$0xff]
          %v3951 = vld [vmem:[#allocation2 + $0xd0] sm:$0xff]
          %v3952 = vld [vmem:[#allocation2 + $0xd8] sm:$0xff]
          %v3953 = vld [vmem:[#allocation2 + $0xe0] sm:$0xff]
          %v3954 = vld [vmem:[#allocation2 + $0xe8] sm:$0xff]
          %v3955 = vld [vmem:[#allocation2 + $0xf0] sm:$0xff]
          %v3956 = vld [vmem:[#allocation2 + $0xf8] sm:$0xff]
          %v3957 = vld [vmem:[#allocation2 + $0x100] sm:$0xff]
          %v3958 = vld [vmem:[#allocation2 + $0x108] sm:$0xff]
          %v3959 = vld [vmem:[#allocation2 + $0x110] sm:$0xff]
          %v3960 = vld [vmem:[#allocation2 + $0x118] sm:$0xff]
          %v3961 = vld [vmem:[#allocation2 + $0x120] sm:$0xff]
          %v3962 = vld [vmem:[#allocation2 + $0x128] sm:$0xff]
          %v3963 = vld [vmem:[#allocation2 + $0x130] sm:$0xff]
          %v3964 = vld [vmem:[#allocation2 + $0x138] sm:$0xff]
          %v3965 = vld [vmem:[#allocation2 + $0x140] sm:$0xff]
          %v3966 = vld [vmem:[#allocation2 + $0x148] sm:$0xff]
          %v3967 = vld [vmem:[#allocation2 + $0x150] sm:$0xff]
          %v3968 = vld [vmem:[#allocation2 + $0x158] sm:$0xff]
          %v3969 = vld [vmem:[#allocation2 + $0x160] sm:$0xff]
          %v3970 = vld [vmem:[#allocation2 + $0x168] sm:$0xff]
          %v3971 = vld [vmem:[#allocation2 + $0x170] sm:$0xff]
          %v3972 = vld [vmem:[#allocation2 + $0x178] sm:$0xff]
          %v3973 = vld [vmem:[#allocation2 + $0x180] sm:$0xff]
          %v3974 = vld [vmem:[#allocation2 + $0x188] sm:$0xff]
          %v3975 = vld [vmem:[#allocation2 + $0x190] sm:$0xff]
          %v3976 = vld [vmem:[#allocation2 + $0x198] sm:$0xff]
          %v3977 = vld [vmem:[#allocation2 + $0x1a0] sm:$0xff]
          %v3978 = vld [vmem:[#allocation2 + $0x1a8] sm:$0xff]
          %v3979 = vld [vmem:[#allocation2 + $0x1b0] sm:$0xff]
          %v3980 = vld [vmem:[#allocation2 + $0x1b8] sm:$0xff]
          %v3981 = vld [vmem:[#allocation2 + $0x1c0] sm:$0xff]
          %v3982 = vld [vmem:[#allocation2 + $0x1c8] sm:$0xff]
          %v3983 = vld [vmem:[#allocation2 + $0x1d0] sm:$0xff]
          %v3984 = vld [vmem:[#allocation2 + $0x1d8] sm:$0xff]
          %v3985 = vld [vmem:[#allocation2 + $0x1e0] sm:$0xff]
          %v3986 = vld [vmem:[#allocation2 + $0x1e8] sm:$0xff]
          %v3987 = vld [vmem:[#allocation2 + $0x1f0] sm:$0xff]
          %v3988 = vld [vmem:[#allocation2 + $0x1f8] sm:$0xff]
          %v3989 = vld [vmem:[#allocation2 + $0x200] sm:$0xff]
          %v3990 = vld [vmem:[#allocation2 + $0x208] sm:$0xff]
          %v3991 = vld [vmem:[#allocation2 + $0x210] sm:$0xff]
          %v3992 = vld [vmem:[#allocation2 + $0x218] sm:$0xff]
          %v3993 = vld [vmem:[#allocation2 + $0x220] sm:$0xff]
          %v3994 = vld [vmem:[#allocation2 + $0x228] sm:$0xff]
          %v3995 = vld [vmem:[#allocation2 + $0x230] sm:$0xff]
          %v3996 = vld [vmem:[#allocation2 + $0x238] sm:$0xff]
          %v3997 = vld [vmem:[#allocation2 + $0x240] sm:$0xff]
          %v3998 = vld [vmem:[#allocation2 + $0x248] sm:$0xff]
          %v3999 = vld [vmem:[#allocation2 + $0x250] sm:$0xff]
          %v4000 = vld [vmem:[#allocation2 + $0x258] sm:$0xff]
          %v4001 = vld [vmem:[#allocation2 + $0x260] sm:$0xff]
          %v4002 = vld [vmem:[#allocation2 + $0x268] sm:$0xff]
          %v4003 = vld [vmem:[#allocation2 + $0x270] sm:$0xff]
          %v4004 = vld [vmem:[#allocation2 + $0x278] sm:$0xff]
          %v4005 = vld [vmem:[#allocation2 + $0x280] sm:$0xff]
          %v4006 = vld [vmem:[#allocation2 + $0x288] sm:$0xff]
          %v4007 = vld [vmem:[#allocation2 + $0x290] sm:$0xff]
          %v4008 = vld [vmem:[#allocation2 + $0x298] sm:$0xff]
          %v4009 = vld [vmem:[#allocation2 + $0x2a0] sm:$0xff]
          %v4010 = vld [vmem:[#allocation2 + $0x2a8] sm:$0xff]
          %v4011 = vld [vmem:[#allocation2 + $0x2b0] sm:$0xff]
          %v4012 = vld [vmem:[#allocation2 + $0x2b8] sm:$0xff]
          %v4013 = vld [vmem:[#allocation2 + $0x2c0] sm:$0xff]
          %v4014 = vld [vmem:[#allocation2 + $0x2c8] sm:$0xff]
          %v4015 = vld [vmem:[#allocation2 + $0x2d0] sm:$0xff]
          %v4016 = vld [vmem:[#allocation2 + $0x2d8] sm:$0xff]
          %v4017 = vld [vmem:[#allocation2 + $0x2e0] sm:$0xff]
          %v4018 = vld [vmem:[#allocation2 + $0x2e8] sm:$0xff]
          %v4019 = vld [vmem:[#allocation2 + $0x2f0] sm:$0xff]
          %v4020 = vld [vmem:[#allocation2 + $0x2f8] sm:$0xff]
          %v4021 = vld [vmem:[#allocation2 + $0x300] sm:$0xff]
          %v4022 = vld [vmem:[#allocation2 + $0x308] sm:$0xff]
          %v4023 = vld [vmem:[#allocation2 + $0x310] sm:$0xff]
          %v4024 = vld [vmem:[#allocation2 + $0x318] sm:$0xff]
          %v4025 = vld [vmem:[#allocation2 + $0x320] sm:$0xff]
          %v4026 = vld [vmem:[#allocation2 + $0x328] sm:$0xff]
          %v4027 = vld [vmem:[#allocation2 + $0x330] sm:$0xff]
          %v4028 = vld [vmem:[#allocation2 + $0x338] sm:$0xff]
          %v4029 = vld [vmem:[#allocation2 + $0x340] sm:$0xff]
          %v4030 = vld [vmem:[#allocation2 + $0x348] sm:$0xff]
          %v4031 = vld [vmem:[#allocation2 + $0x350] sm:$0xff]
          %v4032 = vld [vmem:[#allocation2 + $0x358] sm:$0xff]
          %v4033 = vld [vmem:[#allocation2 + $0x360] sm:$0xff]
          %v4034 = vld [vmem:[#allocation2 + $0x368] sm:$0xff]
          %v4035 = vld [vmem:[#allocation2 + $0x370] sm:$0xff]
          %v4036 = vld [vmem:[#allocation2 + $0x378] sm:$0xff]
          %v4037 = vld [vmem:[#allocation2 + $0x380] sm:$0xff]
          %v4038 = vld [vmem:[#allocation2 + $0x388] sm:$0xff]
          %v4039 = vld [vmem:[#allocation2 + $0x390] sm:$0xff]
          %v4040 = vld [vmem:[#allocation2 + $0x398] sm:$0xff]
          %v4041 = vld [vmem:[#allocation2 + $0x3a0] sm:$0xff]
          %v4042 = vld [vmem:[#allocation2 + $0x3a8] sm:$0xff]
          %v4043 = vld [vmem:[#allocation2 + $0x3b0] sm:$0xff]
          %v4044 = vld [vmem:[#allocation2 + $0x3b8] sm:$0xff]
          %v4045 = vld [vmem:[#allocation2 + $0x3c0] sm:$0xff]
          %v4046 = vld [vmem:[#allocation2 + $0x3c8] sm:$0xff]
          %v4047 = vld [vmem:[#allocation2 + $0x3d0] sm:$0xff]
          %v4048 = vld [vmem:[#allocation2 + $0x3d8] sm:$0xff]
          %v4049 = vld [vmem:[#allocation2 + $0x3e0] sm:$0xff]
          %v4050 = vld [vmem:[#allocation2 + $0x3e8] sm:$0xff]
          %v4051 = vld [vmem:[#allocation2 + $0x3f0] sm:$0xff]
          %v4052 = vld [vmem:[#allocation2 + $0x3f8] sm:$0xff]
          %v4053 = vld [vmem:[#allocation2 + $0x400] sm:$0xff]
          %v4054 = vld [vmem:[#allocation2 + $0x408] sm:$0xff]
          %v4055 = vld [vmem:[#allocation2 + $0x410] sm:$0xff]
          %v4056 = vld [vmem:[#allocation2 + $0x418] sm:$0xff]
          %v4057 = vld [vmem:[#allocation2 + $0x420] sm:$0xff]
          %v4058 = vld [vmem:[#allocation2 + $0x428] sm:$0xff]
          %v4059 = vld [vmem:[#allocation2 + $0x430] sm:$0xff]
          %v4060 = vld [vmem:[#allocation2 + $0x438] sm:$0xff]
          %v4061 = vld [vmem:[#allocation2 + $0x440] sm:$0xff]
          %v4062 = vld [vmem:[#allocation2 + $0x448] sm:$0xff]
          %v4063 = vld [vmem:[#allocation2 + $0x450] sm:$0xff]
          %v4064 = vld [vmem:[#allocation2 + $0x458] sm:$0xff]
          %v4065 = vld [vmem:[#allocation10] sm:$0xff]
          %v4066 = vld [vmem:[#allocation10 + $0x8] sm:$0x3]
          %v4069 = vlaneseq
          %v4070 = vshrl.u32 %v4069, 7
          %v4071 = vsub.s32 0, %v4070
          %v4072 = vrot.slane %v4065, %v4071
          %v4073 = vlaneseq
          %v4074 = vshrl.u32 %v4073, 7
          %v4075 = vsub.s32 1, %v4074
          %v4076 = vrot.slane %v4065, %v4075
          %v4077 = vlaneseq
          %v4078 = vshrl.u32 %v4077, 7
          %v4079 = vsub.s32 2, %v4078
          %v4080 = vrot.slane %v4065, %v4079
          %v4081 = vlaneseq
          %v4082 = vshrl.u32 %v4081, 7
          %v4083 = vsub.s32 3, %v4082
          %v4084 = vrot.slane %v4065, %v4083
          %v4085 = vlaneseq
          %v4086 = vshrl.u32 %v4085, 7
          %v4087 = vsub.s32 4, %v4086
          %v4088 = vrot.slane %v4065, %v4087
          %v4089 = vlaneseq
          %v4090 = vshrl.u32 %v4089, 7
          %v4091 = vsub.s32 5, %v4090
          %v4092 = vrot.slane %v4065, %v4091
          %v4093 = vlaneseq
          %v4094 = vshrl.u32 %v4093, 7
          %v4095 = vsub.s32 6, %v4094
          %v4096 = vrot.slane %v4065, %v4095
          %v4097 = vlaneseq
          %v4098 = vshrl.u32 %v4097, 7
          %v4099 = vsub.s32 7, %v4098
          %v4100 = vrot.slane %v4065, %v4099
          %v4101 = vlaneseq
          %v4102 = vshrl.u32 %v4101, 7
          %v4103 = vsub.s32 0, %v4102
          %v4104 = vrot.slane %v4066, %v4103
          %v4105 = vlaneseq
          %v4106 = vshrl.u32 %v4105, 7
          %v4107 = vsub.s32 1, %v4106
          %v4108 = vrot.slane %v4066, %v4107
          %v4119 = vadd.f32 %v3925, %v4072
          %v4120 = vadd.f32 %v3926, %v4076
          %v4121 = vadd.f32 %v3927, %v4080
          %v4122 = vadd.f32 %v3928, %v4084
          %v4123 = vadd.f32 %v3929, %v4088
          %v4124 = vadd.f32 %v3930, %v4092
          %v4125 = vadd.f32 %v3931, %v4096
          %v4126 = vadd.f32 %v3932, %v4100
          %v4127 = vadd.f32 %v3933, %v4104
          %v4128 = vadd.f32 %v3934, %v4108
          %v4129 = vadd.f32 %v3935, %v4072
          %v4130 = vadd.f32 %v3936, %v4076
          %v4131 = vadd.f32 %v3937, %v4080
          %v4132 = vadd.f32 %v3938, %v4084
          %v4133 = vadd.f32 %v3939, %v4088
          %v4134 = vadd.f32 %v3940, %v4092
          %v4135 = vadd.f32 %v3941, %v4096
          %v4136 = vadd.f32 %v3942, %v4100
          %v4137 = vadd.f32 %v3943, %v4104
          %v4138 = vadd.f32 %v3944, %v4108
          %v4139 = vadd.f32 %v3945, %v4072
          %v4140 = vadd.f32 %v3946, %v4076
          %v4141 = vadd.f32 %v3947, %v4080
          %v4142 = vadd.f32 %v3948, %v4084
          %v4143 = vadd.f32 %v3949, %v4088
          %v4144 = vadd.f32 %v3950, %v4092
          %v4145 = vadd.f32 %v3951, %v4096
          %v4146 = vadd.f32 %v3952, %v4100
          %v4147 = vadd.f32 %v3953, %v4104
          %v4148 = vadd.f32 %v3954, %v4108
          %v4149 = vadd.f32 %v3955, %v4072
          %v4150 = vadd.f32 %v3956, %v4076
          %v4151 = vadd.f32 %v3957, %v4080
          %v4152 = vadd.f32 %v3958, %v4084
          %v4153 = vadd.f32 %v3959, %v4088
          %v4154 = vadd.f32 %v3960, %v4092
          %v4155 = vadd.f32 %v3961, %v4096
          %v4156 = vadd.f32 %v3962, %v4100
          %v4157 = vadd.f32 %v3963, %v4104
          %v4158 = vadd.f32 %v3964, %v4108
          %v4159 = vadd.f32 %v3965, %v4072
          %v4160 = vadd.f32 %v3966, %v4076
          %v4161 = vadd.f32 %v3967, %v4080
          %v4162 = vadd.f32 %v3968, %v4084
          %v4163 = vadd.f32 %v3969, %v4088
          %v4164 = vadd.f32 %v3970, %v4092
          %v4165 = vadd.f32 %v3971, %v4096
          %v4166 = vadd.f32 %v3972, %v4100
          %v4167 = vadd.f32 %v3973, %v4104
          %v4168 = vadd.f32 %v3974, %v4108
          %v4169 = vadd.f32 %v3975, %v4072
          %v4170 = vadd.f32 %v3976, %v4076
          %v4171 = vadd.f32 %v3977, %v4080
          %v4172 = vadd.f32 %v3978, %v4084
          %v4173 = vadd.f32 %v3979, %v4088
          %v4174 = vadd.f32 %v3980, %v4092
          %v4175 = vadd.f32 %v3981, %v4096
          %v4176 = vadd.f32 %v3982, %v4100
          %v4177 = vadd.f32 %v3983, %v4104
          %v4178 = vadd.f32 %v3984, %v4108
          %v4179 = vadd.f32 %v3985, %v4072
          %v4180 = vadd.f32 %v3986, %v4076
          %v4181 = vadd.f32 %v3987, %v4080
          %v4182 = vadd.f32 %v3988, %v4084
          %v4183 = vadd.f32 %v3989, %v4088
          %v4184 = vadd.f32 %v3990, %v4092
          %v4185 = vadd.f32 %v3991, %v4096
          %v4186 = vadd.f32 %v3992, %v4100
          %v4187 = vadd.f32 %v3993, %v4104
          %v4188 = vadd.f32 %v3994, %v4108
          %v4189 = vadd.f32 %v3995, %v4072
          %v4190 = vadd.f32 %v3996, %v4076
          %v4191 = vadd.f32 %v3997, %v4080
          %v4192 = vadd.f32 %v3998, %v4084
          %v4193 = vadd.f32 %v3999, %v4088
          %v4194 = vadd.f32 %v4000, %v4092
          %v4195 = vadd.f32 %v4001, %v4096
          %v4196 = vadd.f32 %v4002, %v4100
          %v4197 = vadd.f32 %v4003, %v4104
          %v4198 = vadd.f32 %v4004, %v4108
          %v4199 = vadd.f32 %v4005, %v4072
          %v4200 = vadd.f32 %v4006, %v4076
          %v4201 = vadd.f32 %v4007, %v4080
          %v4202 = vadd.f32 %v4008, %v4084
          %v4203 = vadd.f32 %v4009, %v4088
          %v4204 = vadd.f32 %v4010, %v4092
          %v4205 = vadd.f32 %v4011, %v4096
          %v4206 = vadd.f32 %v4012, %v4100
          %v4207 = vadd.f32 %v4013, %v4104
          %v4208 = vadd.f32 %v4014, %v4108
          %v4209 = vadd.f32 %v4015, %v4072
          %v4210 = vadd.f32 %v4016, %v4076
          %v4211 = vadd.f32 %v4017, %v4080
          %v4212 = vadd.f32 %v4018, %v4084
          %v4213 = vadd.f32 %v4019, %v4088
          %v4214 = vadd.f32 %v4020, %v4092
          %v4215 = vadd.f32 %v4021, %v4096
          %v4216 = vadd.f32 %v4022, %v4100
          %v4217 = vadd.f32 %v4023, %v4104
          %v4218 = vadd.f32 %v4024, %v4108
          %v4219 = vadd.f32 %v4025, %v4072
          %v4220 = vadd.f32 %v4026, %v4076
          %v4221 = vadd.f32 %v4027, %v4080
          %v4222 = vadd.f32 %v4028, %v4084
          %v4223 = vadd.f32 %v4029, %v4088
          %v4224 = vadd.f32 %v4030, %v4092
          %v4225 = vadd.f32 %v4031, %v4096
          %v4226 = vadd.f32 %v4032, %v4100
          %v4227 = vadd.f32 %v4033, %v4104
          %v4228 = vadd.f32 %v4034, %v4108
          %v4229 = vadd.f32 %v4035, %v4072
          %v4230 = vadd.f32 %v4036, %v4076
          %v4231 = vadd.f32 %v4037, %v4080
          %v4232 = vadd.f32 %v4038, %v4084
          %v4233 = vadd.f32 %v4039, %v4088
          %v4234 = vadd.f32 %v4040, %v4092
          %v4235 = vadd.f32 %v4041, %v4096
          %v4236 = vadd.f32 %v4042, %v4100
          %v4237 = vadd.f32 %v4043, %v4104
          %v4238 = vadd.f32 %v4044, %v4108
          %v4239 = vadd.f32 %v4045, %v4072
          %v4240 = vadd.f32 %v4046, %v4076
          %v4241 = vadd.f32 %v4047, %v4080
          %v4242 = vadd.f32 %v4048, %v4084
          %v4243 = vadd.f32 %v4049, %v4088
          %v4244 = vadd.f32 %v4050, %v4092
          %v4245 = vadd.f32 %v4051, %v4096
          %v4246 = vadd.f32 %v4052, %v4100
          %v4247 = vadd.f32 %v4053, %v4104
          %v4248 = vadd.f32 %v4054, %v4108
          %v4249 = vadd.f32 %v4055, %v4072
          %v4250 = vadd.f32 %v4056, %v4076
          %v4251 = vadd.f32 %v4057, %v4080
          %v4252 = vadd.f32 %v4058, %v4084
          %v4253 = vadd.f32 %v4059, %v4088
          %v4254 = vadd.f32 %v4060, %v4092
          %v4255 = vadd.f32 %v4061, %v4096
          %v4256 = vadd.f32 %v4062, %v4100
          %v4257 = vadd.f32 %v4063, %v4104
          %v4258 = vadd.f32 %v4064, %v4108
          %v4259 = vld [vmem:[#allocation11] sm:$0xff]
          %v4260 = vld [vmem:[#allocation11 + $0x8] sm:$0xff]
          %v4261 = vld [vmem:[#allocation11 + $0x10] sm:$0xff]
          %v4262 = vld [vmem:[#allocation11 + $0x18] sm:$0xff]
          %v4263 = vld [vmem:[#allocation11 + $0x20] sm:$0xff]
          %v4264 = vld [vmem:[#allocation11 + $0x28] sm:$0xff]
          %v4265 = vld [vmem:[#allocation11 + $0x30] sm:$0xff]
          %v4266 = vld [vmem:[#allocation11 + $0x38] sm:$0xff]
          %v4267 = vld [vmem:[#allocation11 + $0x40] sm:$0xff]
          %v4268 = vld [vmem:[#allocation11 + $0x48] sm:$0xff]
          %v4269 = vld [vmem:[#allocation11 + $0x50] sm:$0xff]
          %v4270 = vld [vmem:[#allocation11 + $0x58] sm:$0xff]
          %v4271 = vld [vmem:[#allocation11 + $0x60] sm:$0xff]
          %v4272 = vld [vmem:[#allocation11 + $0x68] sm:$0xff]
          %v4273 = vld [vmem:[#allocation11 + $0x70] sm:$0xff]
          %v4274 = vld [vmem:[#allocation11 + $0x78] sm:$0xff]
          %v4275 = vld [vmem:[#allocation11 + $0x80] sm:$0xff]
          %v4276 = vld [vmem:[#allocation11 + $0x88] sm:$0xff]
          %v4277 = vld [vmem:[#allocation11 + $0x90] sm:$0xff]
          %v4278 = vld [vmem:[#allocation11 + $0x98] sm:$0xff]
          %v4279 = vld [vmem:[%s4] sm:$0xff]
          %v4280 = vld [vmem:[%s4 + $0x8] sm:$0xff]
          %v4281 = vmul.f32 %v4119, %v4119
          %v4282 = vmul.f32 %v4120, %v4120
          %v4283 = vmul.f32 %v4121, %v4121
          %v4284 = vmul.f32 %v4122, %v4122
          %v4285 = vmul.f32 %v4123, %v4123
          %v4286 = vmul.f32 %v4124, %v4124
          %v4287 = vmul.f32 %v4125, %v4125
          %v4288 = vmul.f32 %v4126, %v4126
          %v4289 = vmul.f32 %v4127, %v4127
          %v4290 = vmul.f32 %v4128, %v4128
          %v4291 = vmul.f32 %v4129, %v4129
          %v4292 = vmul.f32 %v4130, %v4130
          %v4293 = vmul.f32 %v4131, %v4131
          %v4294 = vmul.f32 %v4132, %v4132
          %v4295 = vmul.f32 %v4133, %v4133
          %v4296 = vmul.f32 %v4134, %v4134
          %v4297 = vmul.f32 %v4135, %v4135
          %v4298 = vmul.f32 %v4136, %v4136
          %v4299 = vmul.f32 %v4137, %v4137
          %v4300 = vmul.f32 %v4138, %v4138
          %v4301 = vmul.f32 %v4139, %v4139
          %v4302 = vmul.f32 %v4140, %v4140
          %v4303 = vmul.f32 %v4141, %v4141
          %v4304 = vmul.f32 %v4142, %v4142
          %v4305 = vmul.f32 %v4143, %v4143
          %v4306 = vmul.f32 %v4144, %v4144
          %v4307 = vmul.f32 %v4145, %v4145
          %v4308 = vmul.f32 %v4146, %v4146
          %v4309 = vmul.f32 %v4147, %v4147
          %v4310 = vmul.f32 %v4148, %v4148
          %v4311 = vmul.f32 %v4149, %v4149
          %v4312 = vmul.f32 %v4150, %v4150
          %v4313 = vmul.f32 %v4151, %v4151
          %v4314 = vmul.f32 %v4152, %v4152
          %v4315 = vmul.f32 %v4153, %v4153
          %v4316 = vmul.f32 %v4154, %v4154
          %v4317 = vmul.f32 %v4155, %v4155
          %v4318 = vmul.f32 %v4156, %v4156
          %v4319 = vmul.f32 %v4157, %v4157
          %v4320 = vmul.f32 %v4158, %v4158
          %v4321 = vmul.f32 %v4159, %v4159
          %v4322 = vmul.f32 %v4160, %v4160
          %v4323 = vmul.f32 %v4161, %v4161
          %v4324 = vmul.f32 %v4162, %v4162
          %v4325 = vmul.f32 %v4163, %v4163
          %v4326 = vmul.f32 %v4164, %v4164
          %v4327 = vmul.f32 %v4165, %v4165
          %v4328 = vmul.f32 %v4166, %v4166
          %v4329 = vmul.f32 %v4167, %v4167
          %v4330 = vmul.f32 %v4168, %v4168
          %v4331 = vmul.f32 %v4169, %v4169
          %v4332 = vmul.f32 %v4170, %v4170
          %v4333 = vmul.f32 %v4171, %v4171
          %v4334 = vmul.f32 %v4172, %v4172
          %v4335 = vmul.f32 %v4173, %v4173
          %v4336 = vmul.f32 %v4174, %v4174
          %v4337 = vmul.f32 %v4175, %v4175
          %v4338 = vmul.f32 %v4176, %v4176
          %v4339 = vmul.f32 %v4177, %v4177
          %v4340 = vmul.f32 %v4178, %v4178
          %v4341 = vmul.f32 %v4179, %v4179
          %v4342 = vmul.f32 %v4180, %v4180
          %v4343 = vmul.f32 %v4181, %v4181
          %v4344 = vmul.f32 %v4182, %v4182
          %v4345 = vmul.f32 %v4183, %v4183
          %v4346 = vmul.f32 %v4184, %v4184
          %v4347 = vmul.f32 %v4185, %v4185
          %v4348 = vmul.f32 %v4186, %v4186
          %v4349 = vmul.f32 %v4187, %v4187
          %v4350 = vmul.f32 %v4188, %v4188
          %v4351 = vmul.f32 %v4189, %v4189
          %v4352 = vmul.f32 %v4190, %v4190
          %v4353 = vmul.f32 %v4191, %v4191
          %v4354 = vmul.f32 %v4192, %v4192
          %v4355 = vmul.f32 %v4193, %v4193
          %v4356 = vmul.f32 %v4194, %v4194
          %v4357 = vmul.f32 %v4195, %v4195
          %v4358 = vmul.f32 %v4196, %v4196
          %v4359 = vmul.f32 %v4197, %v4197
          %v4360 = vmul.f32 %v4198, %v4198
          %v4361 = vmul.f32 %v4199, %v4199
          %v4362 = vmul.f32 %v4200, %v4200
          %v4363 = vmul.f32 %v4201, %v4201
          %v4364 = vmul.f32 %v4202, %v4202
          %v4365 = vmul.f32 %v4203, %v4203
          %v4366 = vmul.f32 %v4204, %v4204
          %v4367 = vmul.f32 %v4205, %v4205
          %v4368 = vmul.f32 %v4206, %v4206
          %v4369 = vmul.f32 %v4207, %v4207
          %v4370 = vmul.f32 %v4208, %v4208
          %v4371 = vmul.f32 %v4209, %v4209
          %v4372 = vmul.f32 %v4210, %v4210
          %v4373 = vmul.f32 %v4211, %v4211
          %v4374 = vmul.f32 %v4212, %v4212
          %v4375 = vmul.f32 %v4213, %v4213
          %v4376 = vmul.f32 %v4214, %v4214
          %v4377 = vmul.f32 %v4215, %v4215
          %v4378 = vmul.f32 %v4216, %v4216
          %v4379 = vmul.f32 %v4217, %v4217
          %v4380 = vmul.f32 %v4218, %v4218
          %v4381 = vmul.f32 %v4219, %v4219
          %v4382 = vmul.f32 %v4220, %v4220
          %v4383 = vmul.f32 %v4221, %v4221
          %v4384 = vmul.f32 %v4222, %v4222
          %v4385 = vmul.f32 %v4223, %v4223
          %v4386 = vmul.f32 %v4224, %v4224
          %v4387 = vmul.f32 %v4225, %v4225
          %v4388 = vmul.f32 %v4226, %v4226
          %v4389 = vmul.f32 %v4227, %v4227
          %v4390 = vmul.f32 %v4228, %v4228
          %v4391 = vmul.f32 %v4229, %v4229
          %v4392 = vmul.f32 %v4230, %v4230
          %v4393 = vmul.f32 %v4231, %v4231
          %v4394 = vmul.f32 %v4232, %v4232
          %v4395 = vmul.f32 %v4233, %v4233
          %v4396 = vmul.f32 %v4234, %v4234
          %v4397 = vmul.f32 %v4235, %v4235
          %v4398 = vmul.f32 %v4236, %v4236
          %v4399 = vmul.f32 %v4237, %v4237
          %v4400 = vmul.f32 %v4238, %v4238
          %v4401 = vmul.f32 %v4239, %v4239
          %v4402 = vmul.f32 %v4240, %v4240
          %v4403 = vmul.f32 %v4241, %v4241
          %v4404 = vmul.f32 %v4242, %v4242
          %v4405 = vmul.f32 %v4243, %v4243
          %v4406 = vmul.f32 %v4244, %v4244
          %v4407 = vmul.f32 %v4245, %v4245
          %v4408 = vmul.f32 %v4246, %v4246
          %v4409 = vmul.f32 %v4247, %v4247
          %v4410 = vmul.f32 %v4248, %v4248
          %v4411 = vmul.f32 %v4249, %v4249
          %v4412 = vmul.f32 %v4250, %v4250
          %v4413 = vmul.f32 %v4251, %v4251
          %v4414 = vmul.f32 %v4252, %v4252
          %v4415 = vmul.f32 %v4253, %v4253
          %v4416 = vmul.f32 %v4254, %v4254
          %v4417 = vmul.f32 %v4255, %v4255
          %v4418 = vmul.f32 %v4256, %v4256
          %v4419 = vmul.f32 %v4257, %v4257
          %v4420 = vmul.f32 %v4258, %v4258
          %v4421 = vadd.f32 %v4281, %v4282
          %v4422 = vadd.f32 %v4421, %v4283
          %v4423 = vadd.f32 %v4422, %v4284
          %v4424 = vadd.f32 %v4423, %v4285
          %v4425 = vadd.f32 %v4424, %v4286
          %v4426 = vadd.f32 %v4425, %v4287
          %v4427 = vadd.f32 %v4426, %v4288
          %v4428 = vadd.f32 %v4427, %v4289
          %v4429 = vsel %vm3789, %v4290, 0.0
          %v4430 = vadd.f32 %v4428, %v4429
          %4431 = vadd.xlane.f32.xlu0 %v4430
          %v4432 = vpop.xlane.xlu0 %4431
          %v4433 = vadd.f32 %v4291, %v4292
          %v4434 = vadd.f32 %v4433, %v4293
          %v4435 = vadd.f32 %v4434, %v4294
          %v4436 = vadd.f32 %v4435, %v4295
          %v4437 = vadd.f32 %v4436, %v4296
          %v4438 = vadd.f32 %v4437, %v4297
          %v4439 = vadd.f32 %v4438, %v4298
          %v4440 = vadd.f32 %v4439, %v4299
          %v4441 = vsel %vm3789, %v4300, 0.0
          %v4442 = vadd.f32 %v4440, %v4441
          %4443 = vadd.xlane.f32.xlu0 %v4442
          %v4444 = vpop.xlane.xlu0 %4443
          %v4445 = vadd.f32 %v4301, %v4302
          %v4446 = vadd.f32 %v4445, %v4303
          %v4447 = vadd.f32 %v4446, %v4304
          %v4448 = vadd.f32 %v4447, %v4305
          %v4449 = vadd.f32 %v4448, %v4306
          %v4450 = vadd.f32 %v4449, %v4307
          %v4451 = vadd.f32 %v4450, %v4308
          %v4452 = vadd.f32 %v4451, %v4309
          %v4453 = vsel %vm3789, %v4310, 0.0
          %v4454 = vadd.f32 %v4452, %v4453
          %4455 = vadd.xlane.f32.xlu0 %v4454
          %v4456 = vpop.xlane.xlu0 %4455
          %v4457 = vadd.f32 %v4311, %v4312
          %v4458 = vadd.f32 %v4457, %v4313
          %v4459 = vadd.f32 %v4458, %v4314
          %v4460 = vadd.f32 %v4459, %v4315
          %v4461 = vadd.f32 %v4460, %v4316
          %v4462 = vadd.f32 %v4461, %v4317
          %v4463 = vadd.f32 %v4462, %v4318
          %v4464 = vadd.f32 %v4463, %v4319
          %v4465 = vsel %vm3789, %v4320, 0.0
          %v4466 = vadd.f32 %v4464, %v4465
          %4467 = vadd.xlane.f32.xlu0 %v4466
          %v4468 = vpop.xlane.xlu0 %4467
          %v4469 = vadd.f32 %v4321, %v4322
          %v4470 = vadd.f32 %v4469, %v4323
          %v4471 = vadd.f32 %v4470, %v4324
          %v4472 = vadd.f32 %v4471, %v4325
          %v4473 = vadd.f32 %v4472, %v4326
          %v4474 = vadd.f32 %v4473, %v4327
          %v4475 = vadd.f32 %v4474, %v4328
          %v4476 = vadd.f32 %v4475, %v4329
          %v4477 = vsel %vm3789, %v4330, 0.0
          %v4478 = vadd.f32 %v4476, %v4477
          %4479 = vadd.xlane.f32.xlu0 %v4478
          %v4480 = vpop.xlane.xlu0 %4479
          %v4481 = vadd.f32 %v4331, %v4332
          %v4482 = vadd.f32 %v4481, %v4333
          %v4483 = vadd.f32 %v4482, %v4334
          %v4484 = vadd.f32 %v4483, %v4335
          %v4485 = vadd.f32 %v4484, %v4336
          %v4486 = vadd.f32 %v4485, %v4337
          %v4487 = vadd.f32 %v4486, %v4338
          %v4488 = vadd.f32 %v4487, %v4339
          %v4489 = vsel %vm3789, %v4340, 0.0
          %v4490 = vadd.f32 %v4488, %v4489
          %4491 = vadd.xlane.f32.xlu0 %v4490
          %v4492 = vpop.xlane.xlu0 %4491
          %v4493 = vadd.f32 %v4341, %v4342
          %v4494 = vadd.f32 %v4493, %v4343
          %v4495 = vadd.f32 %v4494, %v4344
          %v4496 = vadd.f32 %v4495, %v4345
          %v4497 = vadd.f32 %v4496, %v4346
          %v4498 = vadd.f32 %v4497, %v4347
          %v4499 = vadd.f32 %v4498, %v4348
          %v4500 = vadd.f32 %v4499, %v4349
          %v4501 = vsel %vm3789, %v4350, 0.0
          %v4502 = vadd.f32 %v4500, %v4501
          %4503 = vadd.xlane.f32.xlu0 %v4502
          %v4504 = vpop.xlane.xlu0 %4503
          %v4505 = vadd.f32 %v4351, %v4352
          %v4506 = vadd.f32 %v4505, %v4353
          %v4507 = vadd.f32 %v4506, %v4354
          %v4508 = vadd.f32 %v4507, %v4355
          %v4509 = vadd.f32 %v4508, %v4356
          %v4510 = vadd.f32 %v4509, %v4357
          %v4511 = vadd.f32 %v4510, %v4358
          %v4512 = vadd.f32 %v4511, %v4359
          %v4513 = vsel %vm3789, %v4360, 0.0
          %v4514 = vadd.f32 %v4512, %v4513
          %4515 = vadd.xlane.f32.xlu0 %v4514
          %v4516 = vpop.xlane.xlu0 %4515
          %v4517 = vadd.f32 %v4361, %v4362
          %v4518 = vadd.f32 %v4517, %v4363
          %v4519 = vadd.f32 %v4518, %v4364
          %v4520 = vadd.f32 %v4519, %v4365
          %v4521 = vadd.f32 %v4520, %v4366
          %v4522 = vadd.f32 %v4521, %v4367
          %v4523 = vadd.f32 %v4522, %v4368
          %v4524 = vadd.f32 %v4523, %v4369
          %v4525 = vsel %vm3789, %v4370, 0.0
          %v4526 = vadd.f32 %v4524, %v4525
          %4527 = vadd.xlane.f32.xlu0 %v4526
          %v4528 = vpop.xlane.xlu0 %4527
          %v4529 = vadd.f32 %v4371, %v4372
          %v4530 = vadd.f32 %v4529, %v4373
          %v4531 = vadd.f32 %v4530, %v4374
          %v4532 = vadd.f32 %v4531, %v4375
          %v4533 = vadd.f32 %v4532, %v4376
          %v4534 = vadd.f32 %v4533, %v4377
          %v4535 = vadd.f32 %v4534, %v4378
          %v4536 = vadd.f32 %v4535, %v4379
          %v4537 = vsel %vm3789, %v4380, 0.0
          %v4538 = vadd.f32 %v4536, %v4537
          %4539 = vadd.xlane.f32.xlu0 %v4538
          %v4540 = vpop.xlane.xlu0 %4539
          %v4541 = vadd.f32 %v4381, %v4382
          %v4542 = vadd.f32 %v4541, %v4383
          %v4543 = vadd.f32 %v4542, %v4384
          %v4544 = vadd.f32 %v4543, %v4385
          %v4545 = vadd.f32 %v4544, %v4386
          %v4546 = vadd.f32 %v4545, %v4387
          %v4547 = vadd.f32 %v4546, %v4388
          %v4548 = vadd.f32 %v4547, %v4389
          %v4549 = vsel %vm3789, %v4390, 0.0
          %v4550 = vadd.f32 %v4548, %v4549
          %4551 = vadd.xlane.f32.xlu0 %v4550
          %v4552 = vpop.xlane.xlu0 %4551
          %v4553 = vadd.f32 %v4391, %v4392
          %v4554 = vadd.f32 %v4553, %v4393
          %v4555 = vadd.f32 %v4554, %v4394
          %v4556 = vadd.f32 %v4555, %v4395
          %v4557 = vadd.f32 %v4556, %v4396
          %v4558 = vadd.f32 %v4557, %v4397
          %v4559 = vadd.f32 %v4558, %v4398
          %v4560 = vadd.f32 %v4559, %v4399
          %v4561 = vsel %vm3789, %v4400, 0.0
          %v4562 = vadd.f32 %v4560, %v4561
          %4563 = vadd.xlane.f32.xlu0 %v4562
          %v4564 = vpop.xlane.xlu0 %4563
          %v4565 = vadd.f32 %v4401, %v4402
          %v4566 = vadd.f32 %v4565, %v4403
          %v4567 = vadd.f32 %v4566, %v4404
          %v4568 = vadd.f32 %v4567, %v4405
          %v4569 = vadd.f32 %v4568, %v4406
          %v4570 = vadd.f32 %v4569, %v4407
          %v4571 = vadd.f32 %v4570, %v4408
          %v4572 = vadd.f32 %v4571, %v4409
          %v4573 = vsel %vm3789, %v4410, 0.0
          %v4574 = vadd.f32 %v4572, %v4573
          %4575 = vadd.xlane.f32.xlu0 %v4574
          %v4576 = vpop.xlane.xlu0 %4575
          %v4577 = vadd.f32 %v4411, %v4412
          %v4578 = vadd.f32 %v4577, %v4413
          %v4579 = vadd.f32 %v4578, %v4414
          %v4580 = vadd.f32 %v4579, %v4415
          %v4581 = vadd.f32 %v4580, %v4416
          %v4582 = vadd.f32 %v4581, %v4417
          %v4583 = vadd.f32 %v4582, %v4418
          %v4584 = vadd.f32 %v4583, %v4419
          %v4585 = vsel %vm3789, %v4420, 0.0
          %v4586 = vadd.f32 %v4584, %v4585
          %4587 = vadd.xlane.f32.xlu0 %v4586
          %v4588 = vpop.xlane.xlu0 %4587
          %v4589 = vrsqrt.pop %v4432
          %v4590 = vmul.f32 %v4432, %v4589
          %vm4591 = vcmp.eq.f32.partialorder %v4432, inf
          %v4592 = vsel %vm4591, %v4432, %v4590
          %vm4593 = vcmp.eq.f32.partialorder %v4432, 0.0
          %v4594 = vand.u32 %v4432, 2147483648
          %v4595 = vsel %vm4593, %v4594, %v4592
          %v4596 = vrsqrt.pop %v4444
          %v4597 = vmul.f32 %v4444, %v4596
          %vm4598 = vcmp.eq.f32.partialorder %v4444, inf
          %v4599 = vsel %vm4598, %v4444, %v4597
          %vm4600 = vcmp.eq.f32.partialorder %v4444, 0.0
          %v4601 = vand.u32 %v4444, 2147483648
          %v4602 = vsel %vm4600, %v4601, %v4599
          %v4603 = vrsqrt.pop %v4456
          %v4604 = vmul.f32 %v4456, %v4603
          %vm4605 = vcmp.eq.f32.partialorder %v4456, inf
          %v4606 = vsel %vm4605, %v4456, %v4604
          %vm4607 = vcmp.eq.f32.partialorder %v4456, 0.0
          %v4608 = vand.u32 %v4456, 2147483648
          %v4609 = vsel %vm4607, %v4608, %v4606
          %v4610 = vrsqrt.pop %v4468
          %v4611 = vmul.f32 %v4468, %v4610
          %vm4612 = vcmp.eq.f32.partialorder %v4468, inf
          %v4613 = vsel %vm4612, %v4468, %v4611
          %vm4614 = vcmp.eq.f32.partialorder %v4468, 0.0
          %v4615 = vand.u32 %v4468, 2147483648
          %v4616 = vsel %vm4614, %v4615, %v4613
          %v4617 = vrsqrt.pop %v4480
          %v4618 = vmul.f32 %v4480, %v4617
          %vm4619 = vcmp.eq.f32.partialorder %v4480, inf
          %v4620 = vsel %vm4619, %v4480, %v4618
          %vm4621 = vcmp.eq.f32.partialorder %v4480, 0.0
          %v4622 = vand.u32 %v4480, 2147483648
          %v4623 = vsel %vm4621, %v4622, %v4620
          %v4624 = vrsqrt.pop %v4492
          %v4625 = vmul.f32 %v4492, %v4624
          %vm4626 = vcmp.eq.f32.partialorder %v4492, inf
          %v4627 = vsel %vm4626, %v4492, %v4625
          %vm4628 = vcmp.eq.f32.partialorder %v4492, 0.0
          %v4629 = vand.u32 %v4492, 2147483648
          %v4630 = vsel %vm4628, %v4629, %v4627
          %v4631 = vrsqrt.pop %v4504
          %v4632 = vmul.f32 %v4504, %v4631
          %vm4633 = vcmp.eq.f32.partialorder %v4504, inf
          %v4634 = vsel %vm4633, %v4504, %v4632
          %vm4635 = vcmp.eq.f32.partialorder %v4504, 0.0
          %v4636 = vand.u32 %v4504, 2147483648
          %v4637 = vsel %vm4635, %v4636, %v4634
          %v4638 = vrsqrt.pop %v4516
          %v4639 = vmul.f32 %v4516, %v4638
          %vm4640 = vcmp.eq.f32.partialorder %v4516, inf
          %v4641 = vsel %vm4640, %v4516, %v4639
          %vm4642 = vcmp.eq.f32.partialorder %v4516, 0.0
          %v4643 = vand.u32 %v4516, 2147483648
          %v4644 = vsel %vm4642, %v4643, %v4641
          %v4645 = vrsqrt.pop %v4528
          %v4646 = vmul.f32 %v4528, %v4645
          %vm4647 = vcmp.eq.f32.partialorder %v4528, inf
          %v4648 = vsel %vm4647, %v4528, %v4646
          %vm4649 = vcmp.eq.f32.partialorder %v4528, 0.0
          %v4650 = vand.u32 %v4528, 2147483648
          %v4651 = vsel %vm4649, %v4650, %v4648
          %v4652 = vrsqrt.pop %v4540
          %v4653 = vmul.f32 %v4540, %v4652
          %vm4654 = vcmp.eq.f32.partialorder %v4540, inf
          %v4655 = vsel %vm4654, %v4540, %v4653
          %vm4656 = vcmp.eq.f32.partialorder %v4540, 0.0
          %v4657 = vand.u32 %v4540, 2147483648
          %v4658 = vsel %vm4656, %v4657, %v4655
          %v4659 = vrsqrt.pop %v4552
          %v4660 = vmul.f32 %v4552, %v4659
          %vm4661 = vcmp.eq.f32.partialorder %v4552, inf
          %v4662 = vsel %vm4661, %v4552, %v4660
          %vm4663 = vcmp.eq.f32.partialorder %v4552, 0.0
          %v4664 = vand.u32 %v4552, 2147483648
          %v4665 = vsel %vm4663, %v4664, %v4662
          %v4666 = vrsqrt.pop %v4564
          %v4667 = vmul.f32 %v4564, %v4666
          %vm4668 = vcmp.eq.f32.partialorder %v4564, inf
          %v4669 = vsel %vm4668, %v4564, %v4667
          %vm4670 = vcmp.eq.f32.partialorder %v4564, 0.0
          %v4671 = vand.u32 %v4564, 2147483648
          %v4672 = vsel %vm4670, %v4671, %v4669
          %v4673 = vrsqrt.pop %v4576
          %v4674 = vmul.f32 %v4576, %v4673
          %vm4675 = vcmp.eq.f32.partialorder %v4576, inf
          %v4676 = vsel %vm4675, %v4576, %v4674
          %vm4677 = vcmp.eq.f32.partialorder %v4576, 0.0
          %v4678 = vand.u32 %v4576, 2147483648
          %v4679 = vsel %vm4677, %v4678, %v4676
          %v4680 = vrsqrt.pop %v4588
          %v4681 = vmul.f32 %v4588, %v4680
          %vm4682 = vcmp.eq.f32.partialorder %v4588, inf
          %v4683 = vsel %vm4682, %v4588, %v4681
          %vm4684 = vcmp.eq.f32.partialorder %v4588, 0.0
          %v4685 = vand.u32 %v4588, 2147483648
          %v4686 = vsel %vm4684, %v4685, %v4683
          %v4687 = vmax.f32 %v4595, 1e-08
          %v4688 = vmax.f32 %v4602, 1e-08
          %v4689 = vmax.f32 %v4609, 1e-08
          %v4690 = vmax.f32 %v4616, 1e-08
          %v4691 = vmax.f32 %v4623, 1e-08
          %v4692 = vmax.f32 %v4630, 1e-08
          %v4693 = vmax.f32 %v4637, 1e-08
          %v4694 = vmax.f32 %v4644, 1e-08
          %v4695 = vmax.f32 %v4651, 1e-08
          %v4696 = vmax.f32 %v4658, 1e-08
          %v4697 = vmax.f32 %v4665, 1e-08
          %v4698 = vmax.f32 %v4672, 1e-08
          %v4699 = vmax.f32 %v4679, 1e-08
          %v4700 = vmax.f32 %v4686, 1e-08
          %v4701 = vrcp.pop %v4687
          %v4702 = vrcp.pop %v4688
          %v4703 = vrcp.pop %v4689
          %v4704 = vrcp.pop %v4690
          %v4705 = vrcp.pop %v4691
          %v4706 = vrcp.pop %v4692
          %v4707 = vrcp.pop %v4693
          %v4708 = vrcp.pop %v4694
          %v4709 = vrcp.pop %v4695
          %v4710 = vrcp.pop %v4696
          %v4711 = vrcp.pop %v4697
          %v4712 = vrcp.pop %v4698
          %v4713 = vrcp.pop %v4699
          %v4714 = vrcp.pop %v4700
          %v4715 = vmul.f32 %v4259, %v4259
          %v4716 = vmul.f32 %v4260, %v4260
          %v4717 = vmul.f32 %v4261, %v4261
          %v4718 = vmul.f32 %v4262, %v4262
          %v4719 = vmul.f32 %v4263, %v4263
          %v4720 = vmul.f32 %v4264, %v4264
          %v4721 = vmul.f32 %v4265, %v4265
          %v4722 = vmul.f32 %v4266, %v4266
          %v4723 = vmul.f32 %v4267, %v4267
          %v4724 = vmul.f32 %v4268, %v4268
          %v4725 = vmul.f32 %v4269, %v4269
          %v4726 = vmul.f32 %v4270, %v4270
          %v4727 = vmul.f32 %v4271, %v4271
          %v4728 = vmul.f32 %v4272, %v4272
          %v4729 = vmul.f32 %v4273, %v4273
          %v4730 = vmul.f32 %v4274, %v4274
          %v4731 = vmul.f32 %v4275, %v4275
          %v4732 = vmul.f32 %v4276, %v4276
          %v4733 = vmul.f32 %v4277, %v4277
          %v4734 = vmul.f32 %v4278, %v4278
          %v4735 = vadd.f32 %v4715, %v4716
          %v4736 = vadd.f32 %v4735, %v4717
          %v4737 = vadd.f32 %v4736, %v4718
          %v4738 = vadd.f32 %v4737, %v4719
          %v4739 = vadd.f32 %v4738, %v4720
          %v4740 = vadd.f32 %v4739, %v4721
          %v4741 = vadd.f32 %v4740, %v4722
          %v4742 = vadd.f32 %v4741, %v4723
          %v4743 = vsel %vm3789, %v4724, 0.0
          %v4744 = vadd.f32 %v4742, %v4743
          %4745 = vadd.xlane.f32.xlu0 %v4744
          %v4746 = vpop.xlane.xlu0 %4745
          %v4747 = vadd.f32 %v4725, %v4726
          %v4748 = vadd.f32 %v4747, %v4727
          %v4749 = vadd.f32 %v4748, %v4728
          %v4750 = vadd.f32 %v4749, %v4729
          %v4751 = vadd.f32 %v4750, %v4730
          %v4752 = vadd.f32 %v4751, %v4731
          %v4753 = vadd.f32 %v4752, %v4732
          %v4754 = vadd.f32 %v4753, %v4733
          %v4755 = vsel %vm3789, %v4734, 0.0
          %v4756 = vadd.f32 %v4754, %v4755
          %4757 = vadd.xlane.f32.xlu0 %v4756
          %v4758 = vpop.xlane.xlu0 %4757
          %v4759 = vrsqrt.pop %v4746
          %v4760 = vmul.f32 %v4746, %v4759
          %vm4761 = vcmp.eq.f32.partialorder %v4746, inf
          %v4762 = vsel %vm4761, %v4746, %v4760
          %vm4763 = vcmp.eq.f32.partialorder %v4746, 0.0
          %v4764 = vand.u32 %v4746, 2147483648
          %v4765 = vsel %vm4763, %v4764, %v4762
          %v4766 = vrsqrt.pop %v4758
          %v4767 = vmul.f32 %v4758, %v4766
          %vm4768 = vcmp.eq.f32.partialorder %v4758, inf
          %v4769 = vsel %vm4768, %v4758, %v4767
          %vm4770 = vcmp.eq.f32.partialorder %v4758, 0.0
          %v4771 = vand.u32 %v4758, 2147483648
          %v4772 = vsel %vm4770, %v4771, %v4769
          %v4773 = vmax.f32 %v4765, 1e-08
          %v4774 = vmax.f32 %v4772, 1e-08
          %v4775 = vrcp.pop %v4773
          %v4776 = vrcp.pop %v4774
          %v4777 = vmul.f32 %v4259, %v4775
          %v4778 = vmul.f32 %v4260, %v4775
          %v4779 = vmul.f32 %v4261, %v4775
          %v4780 = vmul.f32 %v4262, %v4775
          %v4781 = vmul.f32 %v4263, %v4775
          %v4782 = vmul.f32 %v4264, %v4775
          %v4783 = vmul.f32 %v4265, %v4775
          %v4784 = vmul.f32 %v4266, %v4775
          %v4785 = vmul.f32 %v4267, %v4775
          %v4786 = vmul.f32 %v4268, %v4775
          %v4787 = vmul.f32 %v4269, %v4776
          %v4788 = vmul.f32 %v4270, %v4776
          %v4789 = vmul.f32 %v4271, %v4776
          %v4790 = vmul.f32 %v4272, %v4776
          %v4791 = vmul.f32 %v4273, %v4776
          %v4792 = vmul.f32 %v4274, %v4776
          %v4793 = vmul.f32 %v4275, %v4776
          %v4794 = vmul.f32 %v4276, %v4776
          %v4795 = vmul.f32 %v4277, %v4776
          %v4796 = vmul.f32 %v4278, %v4776
          %v4798 = vsel %vm3789, %v4128, 0
          %v4801 = vsel %vm3789, %v4138, 0
          %v4804 = vsel %vm3789, %v4148, 0
          %v4807 = vsel %vm3789, %v4158, 0
          %v4810 = vsel %vm3789, %v4168, 0
          %v4813 = vsel %vm3789, %v4178, 0
          %v4816 = vsel %vm3789, %v4188, 0
          %v4819 = vsel %vm3789, %v4198, 0
          %v4822 = vsel %vm3789, %v4208, 0
          %v4825 = vsel %vm3789, %v4218, 0
          %v4828 = vsel %vm3789, %v4228, 0
          %v4831 = vsel %vm3789, %v4238, 0
          %v4834 = vsel %vm3789, %v4248, 0
          %v4837 = vsel %vm3789, %v4258, 0
          %v4840 = vsel %vm3789, %v4786, 0
          %v4843 = vsel %vm3789, %v4796, 0
          %4845 = vmatprep.subr.mxu0 0.0
          %4846 = vmatpush1.xpose.msra.mxu0 0.0
          %4847 = vmatprep.subr.mxu0 0.0
          %4848 = vmatpush1.xpose.msra.mxu0 0.0
          %4849 = vmatprep.subr.mxu0 0.0
          %4850 = vmatpush1.xpose.msra.mxu0 0.0
          %4851 = vmatprep.subr.mxu0 0.0
          %4852 = vmatpush1.xpose.msra.mxu0 0.0
          %4853 = vmatprep.subr.mxu0 0.0
          %4854 = vmatpush1.xpose.msra.mxu0 0.0
          %4855 = vmatprep.subr.mxu0 0.0
          %4856 = vmatpush1.xpose.msra.mxu0 0.0
          %4857 = vmatprep.subr.mxu0 0.0
          %4858 = vmatpush1.xpose.msra.mxu0 0.0
          %4859 = vmatprep.subr.mxu0 0.0
          %4860 = vmatpush1.xpose.msra.mxu0 0.0
          %4861 = vmatprep.subr.mxu0 0.0
          %4862 = vmatpush1.xpose.msra.mxu0 0.0
          %4863 = vmatprep.subr.mxu0 0.0
          %4864 = vmatpush1.xpose.msra.mxu0 0.0
          %4865 = vmatprep.subr.mxu0 0.0
          %4866 = vmatpush1.xpose.msra.mxu0 0.0
          %4867 = vmatprep.subr.mxu0 0.0
          %4868 = vmatpush1.xpose.msra.mxu0 0.0
          %4869 = vmatprep.subr.mxu0 0.0
          %4870 = vmatpush1.xpose.msra.mxu0 0.0
          %4871 = vmatprep.subr.mxu0 0.0
          %4872 = vmatpush1.xpose.msra.mxu0 0.0
          %4873 = vmatprep.subr.mxu0 %v4788
          %4874 = vmatpush1.xpose.msra.mxu0 %v4787
          %4875 = vmatprep.subr.mxu0 %v4778
          %4876 = vmatpush1.xpose.msra.mxu0 %v4777
          %4877 = vmatprep.subr.mxu0 0.0
          %4878 = vmatpush2.xpose.msra.mxu0 0.0
          %4879 = vmatprep.subr.mxu0 0.0
          %4880 = vmatpush2.xpose.msra.mxu0 0.0
          %4881 = vmatprep.subr.mxu0 0.0
          %4882 = vmatpush2.xpose.msra.mxu0 0.0
          %4883 = vmatprep.subr.mxu0 0.0
          %4884 = vmatpush2.xpose.msra.mxu0 0.0
          %4885 = vmatprep.subr.mxu0 0.0
          %4886 = vmatpush2.xpose.msra.mxu0 0.0
          %4887 = vmatprep.subr.mxu0 0.0
          %4888 = vmatpush2.xpose.msra.mxu0 0.0
          %4889 = vmatprep.subr.mxu0 0.0
          %4890 = vmatpush2.xpose.msra.mxu0 0.0
          %4891 = vmatprep.subr.mxu0 0.0
          %4892 = vmatpush2.xpose.msra.mxu0 0.0
          %4893 = vmatprep.subr.mxu0 0.0
          %4894 = vmatpush2.xpose.msra.mxu0 0.0
          %4895 = vmatprep.subr.mxu0 0.0
          %4896 = vmatpush2.xpose.msra.mxu0 0.0
          %4897 = vmatprep.subr.mxu0 0.0
          %4898 = vmatpush2.xpose.msra.mxu0 0.0
          %4899 = vmatprep.subr.mxu0 0.0
          %4900 = vmatpush2.xpose.msra.mxu0 0.0
          %4901 = vmatprep.subr.mxu0 0.0
          %4902 = vmatpush2.xpose.msra.mxu0 0.0
          %4903 = vmatprep.subr.mxu0 0.0
          %4904 = vmatpush2.xpose.msra.mxu0 0.0
          %4905 = vmatprep.subr.mxu0 0.0
          %4906 = vmatpush2.xpose.msra.mxu0 0.0
          %4907 = vmatprep.subr.mxu0 0.0
          %4908 = vmatpush2.xpose.msra.mxu0 0.0
          %4909 = vmatprep.mubr.f32.mxu0 %v4120
          %4910 = vmatmul.mubr.f32.gmra.mxu0 %v4119
          %v4911 = vpop.f32.mrf.mxu0
          %v4912 = vadd.f32 0.0, %v4911
          %v4913 = vpop.f32.mrf.mxu0
          %4914 = vmatprep.mubr.f32.mxu0 %v4130
          %4915 = vmatmul.mubr.f32.gmra.mxu0 %v4129
          %v4916 = vpop.f32.mrf.mxu0
          %v4917 = vadd.f32 0.0, %v4916
          %v4918 = vpop.f32.mrf.mxu0
          %4919 = vmatprep.mubr.f32.mxu0 %v4140
          %4920 = vmatmul.mubr.f32.gmra.mxu0 %v4139
          %v4921 = vpop.f32.mrf.mxu0
          %v4922 = vadd.f32 0.0, %v4921
          %v4923 = vpop.f32.mrf.mxu0
          %4924 = vmatprep.mubr.f32.mxu0 %v4150
          %4925 = vmatmul.mubr.f32.gmra.mxu0 %v4149
          %v4926 = vpop.f32.mrf.mxu0
          %v4927 = vadd.f32 0.0, %v4926
          %v4928 = vpop.f32.mrf.mxu0
          %4929 = vmatprep.mubr.f32.mxu0 %v4160
          %4930 = vmatmul.mubr.f32.gmra.mxu0 %v4159
          %v4931 = vpop.f32.mrf.mxu0
          %v4932 = vadd.f32 0.0, %v4931
          %v4933 = vpop.f32.mrf.mxu0
          %4934 = vmatprep.mubr.f32.mxu0 %v4170
          %4935 = vmatmul.mubr.f32.gmra.mxu0 %v4169
          %v4936 = vpop.f32.mrf.mxu0
          %v4937 = vadd.f32 0.0, %v4936
          %v4938 = vpop.f32.mrf.mxu0
          %4939 = vmatprep.mubr.f32.mxu0 %v4180
          %4940 = vmatmul.mubr.f32.gmra.mxu0 %v4179
          %v4941 = vpop.f32.mrf.mxu0
          %v4942 = vadd.f32 0.0, %v4941
          %v4943 = vpop.f32.mrf.mxu0
          %4944 = vmatprep.mubr.f32.mxu0 %v4190
          %4945 = vmatmul.mubr.f32.gmra.mxu0 %v4189
          %v4946 = vpop.f32.mrf.mxu0
          %v4947 = vadd.f32 0.0, %v4946
          %v4948 = vpop.f32.mrf.mxu0
          %4949 = vmatprep.mubr.f32.mxu0 %v4200
          %4950 = vmatmul.mubr.f32.gmra.mxu0 %v4199
          %v4951 = vpop.f32.mrf.mxu0
          %v4952 = vadd.f32 0.0, %v4951
          %v4953 = vpop.f32.mrf.mxu0
          %4954 = vmatprep.mubr.f32.mxu0 %v4210
          %4955 = vmatmul.mubr.f32.gmra.mxu0 %v4209
          %v4956 = vpop.f32.mrf.mxu0
          %v4957 = vadd.f32 0.0, %v4956
          %v4958 = vpop.f32.mrf.mxu0
          %4959 = vmatprep.mubr.f32.mxu0 %v4220
          %4960 = vmatmul.mubr.f32.gmra.mxu0 %v4219
          %v4961 = vpop.f32.mrf.mxu0
          %v4962 = vadd.f32 0.0, %v4961
          %v4963 = vpop.f32.mrf.mxu0
          %4964 = vmatprep.mubr.f32.mxu0 %v4230
          %4965 = vmatmul.mubr.f32.gmra.mxu0 %v4229
          %v4966 = vpop.f32.mrf.mxu0
          %v4967 = vadd.f32 0.0, %v4966
          %v4968 = vpop.f32.mrf.mxu0
          %4969 = vmatprep.mubr.f32.mxu0 %v4240
          %4970 = vmatmul.mubr.f32.gmra.mxu0 %v4239
          %v4971 = vpop.f32.mrf.mxu0
          %v4972 = vadd.f32 0.0, %v4971
          %v4973 = vpop.f32.mrf.mxu0
          %4974 = vmatprep.mubr.f32.mxu0 %v4250
          %4975 = vmatmul.mubr.f32.gmra.mxu0 %v4249
          %v4976 = vpop.f32.mrf.mxu0
          %v4977 = vadd.f32 0.0, %v4976
          %v4978 = vpop.f32.mrf.mxu0
          %4979 = vdwg.mxu0
          %4980 = vmatprep.subr.mxu0 0.0
          %4981 = vmatpush1.xpose.msra.mxu0 0.0
          %4982 = vmatprep.subr.mxu0 0.0
          %4983 = vmatpush1.xpose.msra.mxu0 0.0
          %4984 = vmatprep.subr.mxu0 0.0
          %4985 = vmatpush1.xpose.msra.mxu0 0.0
          %4986 = vmatprep.subr.mxu0 0.0
          %4987 = vmatpush1.xpose.msra.mxu0 0.0
          %4988 = vmatprep.subr.mxu0 0.0
          %4989 = vmatpush1.xpose.msra.mxu0 0.0
          %4990 = vmatprep.subr.mxu0 0.0
          %4991 = vmatpush1.xpose.msra.mxu0 0.0
          %4992 = vmatprep.subr.mxu0 0.0
          %4993 = vmatpush1.xpose.msra.mxu0 0.0
          %4994 = vmatprep.subr.mxu0 0.0
          %4995 = vmatpush1.xpose.msra.mxu0 0.0
          %4996 = vmatprep.subr.mxu0 0.0
          %4997 = vmatpush1.xpose.msra.mxu0 0.0
          %4998 = vmatprep.subr.mxu0 0.0
          %4999 = vmatpush1.xpose.msra.mxu0 0.0
          %5000 = vmatprep.subr.mxu0 0.0
          %5001 = vmatpush1.xpose.msra.mxu0 0.0
          %5002 = vmatprep.subr.mxu0 0.0
          %5003 = vmatpush1.xpose.msra.mxu0 0.0
          %5004 = vmatprep.subr.mxu0 0.0
          %5005 = vmatpush1.xpose.msra.mxu0 0.0
          %5006 = vmatprep.subr.mxu0 0.0
          %5007 = vmatpush1.xpose.msra.mxu0 0.0
          %5008 = vmatprep.subr.mxu0 %v4790
          %5009 = vmatpush1.xpose.msra.mxu0 %v4789
          %5010 = vmatprep.subr.mxu0 %v4780
          %5011 = vmatpush1.xpose.msra.mxu0 %v4779
          %5012 = vmatprep.subr.mxu0 0.0
          %5013 = vmatpush2.xpose.msra.mxu0 0.0
          %5014 = vmatprep.subr.mxu0 0.0
          %5015 = vmatpush2.xpose.msra.mxu0 0.0
          %5016 = vmatprep.subr.mxu0 0.0
          %5017 = vmatpush2.xpose.msra.mxu0 0.0
          %5018 = vmatprep.subr.mxu0 0.0
          %5019 = vmatpush2.xpose.msra.mxu0 0.0
          %5020 = vmatprep.subr.mxu0 0.0
          %5021 = vmatpush2.xpose.msra.mxu0 0.0
          %5022 = vmatprep.subr.mxu0 0.0
          %5023 = vmatpush2.xpose.msra.mxu0 0.0
          %5024 = vmatprep.subr.mxu0 0.0
          %5025 = vmatpush2.xpose.msra.mxu0 0.0
          %5026 = vmatprep.subr.mxu0 0.0
          %5027 = vmatpush2.xpose.msra.mxu0 0.0
          %5028 = vmatprep.subr.mxu0 0.0
          %5029 = vmatpush2.xpose.msra.mxu0 0.0
          %5030 = vmatprep.subr.mxu0 0.0
          %5031 = vmatpush2.xpose.msra.mxu0 0.0
          %5032 = vmatprep.subr.mxu0 0.0
          %5033 = vmatpush2.xpose.msra.mxu0 0.0
          %5034 = vmatprep.subr.mxu0 0.0
          %5035 = vmatpush2.xpose.msra.mxu0 0.0
          %5036 = vmatprep.subr.mxu0 0.0
          %5037 = vmatpush2.xpose.msra.mxu0 0.0
          %5038 = vmatprep.subr.mxu0 0.0
          %5039 = vmatpush2.xpose.msra.mxu0 0.0
          %5040 = vmatprep.subr.mxu0 0.0
          %5041 = vmatpush2.xpose.msra.mxu0 0.0
          %5042 = vmatprep.subr.mxu0 0.0
          %5043 = vmatpush2.xpose.msra.mxu0 0.0
          %5044 = vmatprep.mubr.f32.mxu0 %v4122
          %5045 = vmatmul.mubr.f32.gmra.mxu0 %v4121
          %v5046 = vpop.f32.mrf.mxu0
          %v5047 = vadd.f32 %v4912, %v5046
          %v5048 = vpop.f32.mrf.mxu0
          %5049 = vmatprep.mubr.f32.mxu0 %v4132
          %5050 = vmatmul.mubr.f32.gmra.mxu0 %v4131
          %v5051 = vpop.f32.mrf.mxu0
          %v5052 = vadd.f32 %v4917, %v5051
          %v5053 = vpop.f32.mrf.mxu0
          %5054 = vmatprep.mubr.f32.mxu0 %v4142
          %5055 = vmatmul.mubr.f32.gmra.mxu0 %v4141
          %v5056 = vpop.f32.mrf.mxu0
          %v5057 = vadd.f32 %v4922, %v5056
          %v5058 = vpop.f32.mrf.mxu0
          %5059 = vmatprep.mubr.f32.mxu0 %v4152
          %5060 = vmatmul.mubr.f32.gmra.mxu0 %v4151
          %v5061 = vpop.f32.mrf.mxu0
          %v5062 = vadd.f32 %v4927, %v5061
          %v5063 = vpop.f32.mrf.mxu0
          %5064 = vmatprep.mubr.f32.mxu0 %v4162
          %5065 = vmatmul.mubr.f32.gmra.mxu0 %v4161
          %v5066 = vpop.f32.mrf.mxu0
          %v5067 = vadd.f32 %v4932, %v5066
          %v5068 = vpop.f32.mrf.mxu0
          %5069 = vmatprep.mubr.f32.mxu0 %v4172
          %5070 = vmatmul.mubr.f32.gmra.mxu0 %v4171
          %v5071 = vpop.f32.mrf.mxu0
          %v5072 = vadd.f32 %v4937, %v5071
          %v5073 = vpop.f32.mrf.mxu0
          %5074 = vmatprep.mubr.f32.mxu0 %v4182
          %5075 = vmatmul.mubr.f32.gmra.mxu0 %v4181
          %v5076 = vpop.f32.mrf.mxu0
          %v5077 = vadd.f32 %v4942, %v5076
          %v5078 = vpop.f32.mrf.mxu0
          %5079 = vmatprep.mubr.f32.mxu0 %v4192
          %5080 = vmatmul.mubr.f32.gmra.mxu0 %v4191
          %v5081 = vpop.f32.mrf.mxu0
          %v5082 = vadd.f32 %v4947, %v5081
          %v5083 = vpop.f32.mrf.mxu0
          %5084 = vmatprep.mubr.f32.mxu0 %v4202
          %5085 = vmatmul.mubr.f32.gmra.mxu0 %v4201
          %v5086 = vpop.f32.mrf.mxu0
          %v5087 = vadd.f32 %v4952, %v5086
          %v5088 = vpop.f32.mrf.mxu0
          %5089 = vmatprep.mubr.f32.mxu0 %v4212
          %5090 = vmatmul.mubr.f32.gmra.mxu0 %v4211
          %v5091 = vpop.f32.mrf.mxu0
          %v5092 = vadd.f32 %v4957, %v5091
          %v5093 = vpop.f32.mrf.mxu0
          %5094 = vmatprep.mubr.f32.mxu0 %v4222
          %5095 = vmatmul.mubr.f32.gmra.mxu0 %v4221
          %v5096 = vpop.f32.mrf.mxu0
          %v5097 = vadd.f32 %v4962, %v5096
          %v5098 = vpop.f32.mrf.mxu0
          %5099 = vmatprep.mubr.f32.mxu0 %v4232
          %5100 = vmatmul.mubr.f32.gmra.mxu0 %v4231
          %v5101 = vpop.f32.mrf.mxu0
          %v5102 = vadd.f32 %v4967, %v5101
          %v5103 = vpop.f32.mrf.mxu0
          %5104 = vmatprep.mubr.f32.mxu0 %v4242
          %5105 = vmatmul.mubr.f32.gmra.mxu0 %v4241
          %v5106 = vpop.f32.mrf.mxu0
          %v5107 = vadd.f32 %v4972, %v5106
          %v5108 = vpop.f32.mrf.mxu0
          %5109 = vmatprep.mubr.f32.mxu0 %v4252
          %5110 = vmatmul.mubr.f32.gmra.mxu0 %v4251
          %v5111 = vpop.f32.mrf.mxu0
          %v5112 = vadd.f32 %v4977, %v5111
          %v5113 = vpop.f32.mrf.mxu0
          %5114 = vdwg.mxu0
          %5115 = vmatprep.subr.mxu0 0.0
          %5116 = vmatpush1.xpose.msra.mxu0 0.0
          %5117 = vmatprep.subr.mxu0 0.0
          %5118 = vmatpush1.xpose.msra.mxu0 0.0
          %5119 = vmatprep.subr.mxu0 0.0
          %5120 = vmatpush1.xpose.msra.mxu0 0.0
          %5121 = vmatprep.subr.mxu0 0.0
          %5122 = vmatpush1.xpose.msra.mxu0 0.0
          %5123 = vmatprep.subr.mxu0 0.0
          %5124 = vmatpush1.xpose.msra.mxu0 0.0
          %5125 = vmatprep.subr.mxu0 0.0
          %5126 = vmatpush1.xpose.msra.mxu0 0.0
          %5127 = vmatprep.subr.mxu0 0.0
          %5128 = vmatpush1.xpose.msra.mxu0 0.0
          %5129 = vmatprep.subr.mxu0 0.0
          %5130 = vmatpush1.xpose.msra.mxu0 0.0
          %5131 = vmatprep.subr.mxu0 0.0
          %5132 = vmatpush1.xpose.msra.mxu0 0.0
          %5133 = vmatprep.subr.mxu0 0.0
          %5134 = vmatpush1.xpose.msra.mxu0 0.0
          %5135 = vmatprep.subr.mxu0 0.0
          %5136 = vmatpush1.xpose.msra.mxu0 0.0
          %5137 = vmatprep.subr.mxu0 0.0
          %5138 = vmatpush1.xpose.msra.mxu0 0.0
          %5139 = vmatprep.subr.mxu0 0.0
          %5140 = vmatpush1.xpose.msra.mxu0 0.0
          %5141 = vmatprep.subr.mxu0 0.0
          %5142 = vmatpush1.xpose.msra.mxu0 0.0
          %5143 = vmatprep.subr.mxu0 %v4792
          %5144 = vmatpush1.xpose.msra.mxu0 %v4791
          %5145 = vmatprep.subr.mxu0 %v4782
          %5146 = vmatpush1.xpose.msra.mxu0 %v4781
          %5147 = vmatprep.subr.mxu0 0.0
          %5148 = vmatpush2.xpose.msra.mxu0 0.0
          %5149 = vmatprep.subr.mxu0 0.0
          %5150 = vmatpush2.xpose.msra.mxu0 0.0
          %5151 = vmatprep.subr.mxu0 0.0
          %5152 = vmatpush2.xpose.msra.mxu0 0.0
          %5153 = vmatprep.subr.mxu0 0.0
          %5154 = vmatpush2.xpose.msra.mxu0 0.0
          %5155 = vmatprep.subr.mxu0 0.0
          %5156 = vmatpush2.xpose.msra.mxu0 0.0
          %5157 = vmatprep.subr.mxu0 0.0
          %5158 = vmatpush2.xpose.msra.mxu0 0.0
          %5159 = vmatprep.subr.mxu0 0.0
          %5160 = vmatpush2.xpose.msra.mxu0 0.0
          %5161 = vmatprep.subr.mxu0 0.0
          %5162 = vmatpush2.xpose.msra.mxu0 0.0
          %5163 = vmatprep.subr.mxu0 0.0
          %5164 = vmatpush2.xpose.msra.mxu0 0.0
          %5165 = vmatprep.subr.mxu0 0.0
          %5166 = vmatpush2.xpose.msra.mxu0 0.0
          %5167 = vmatprep.subr.mxu0 0.0
          %5168 = vmatpush2.xpose.msra.mxu0 0.0
          %5169 = vmatprep.subr.mxu0 0.0
          %5170 = vmatpush2.xpose.msra.mxu0 0.0
          %5171 = vmatprep.subr.mxu0 0.0
          %5172 = vmatpush2.xpose.msra.mxu0 0.0
          %5173 = vmatprep.subr.mxu0 0.0
          %5174 = vmatpush2.xpose.msra.mxu0 0.0
          %5175 = vmatprep.subr.mxu0 0.0
          %5176 = vmatpush2.xpose.msra.mxu0 0.0
          %5177 = vmatprep.subr.mxu0 0.0
          %5178 = vmatpush2.xpose.msra.mxu0 0.0
          %5179 = vmatprep.mubr.f32.mxu0 %v4124
          %5180 = vmatmul.mubr.f32.gmra.mxu0 %v4123
          %v5181 = vpop.f32.mrf.mxu0
          %v5182 = vadd.f32 %v5047, %v5181
          %v5183 = vpop.f32.mrf.mxu0
          %5184 = vmatprep.mubr.f32.mxu0 %v4134
          %5185 = vmatmul.mubr.f32.gmra.mxu0 %v4133
          %v5186 = vpop.f32.mrf.mxu0
          %v5187 = vadd.f32 %v5052, %v5186
          %v5188 = vpop.f32.mrf.mxu0
          %5189 = vmatprep.mubr.f32.mxu0 %v4144
          %5190 = vmatmul.mubr.f32.gmra.mxu0 %v4143
          %v5191 = vpop.f32.mrf.mxu0
          %v5192 = vadd.f32 %v5057, %v5191
          %v5193 = vpop.f32.mrf.mxu0
          %5194 = vmatprep.mubr.f32.mxu0 %v4154
          %5195 = vmatmul.mubr.f32.gmra.mxu0 %v4153
          %v5196 = vpop.f32.mrf.mxu0
          %v5197 = vadd.f32 %v5062, %v5196
          %v5198 = vpop.f32.mrf.mxu0
          %5199 = vmatprep.mubr.f32.mxu0 %v4164
          %5200 = vmatmul.mubr.f32.gmra.mxu0 %v4163
          %v5201 = vpop.f32.mrf.mxu0
          %v5202 = vadd.f32 %v5067, %v5201
          %v5203 = vpop.f32.mrf.mxu0
          %5204 = vmatprep.mubr.f32.mxu0 %v4174
          %5205 = vmatmul.mubr.f32.gmra.mxu0 %v4173
          %v5206 = vpop.f32.mrf.mxu0
          %v5207 = vadd.f32 %v5072, %v5206
          %v5208 = vpop.f32.mrf.mxu0
          %5209 = vmatprep.mubr.f32.mxu0 %v4184
          %5210 = vmatmul.mubr.f32.gmra.mxu0 %v4183
          %v5211 = vpop.f32.mrf.mxu0
          %v5212 = vadd.f32 %v5077, %v5211
          %v5213 = vpop.f32.mrf.mxu0
          %5214 = vmatprep.mubr.f32.mxu0 %v4194
          %5215 = vmatmul.mubr.f32.gmra.mxu0 %v4193
          %v5216 = vpop.f32.mrf.mxu0
          %v5217 = vadd.f32 %v5082, %v5216
          %v5218 = vpop.f32.mrf.mxu0
          %5219 = vmatprep.mubr.f32.mxu0 %v4204
          %5220 = vmatmul.mubr.f32.gmra.mxu0 %v4203
          %v5221 = vpop.f32.mrf.mxu0
          %v5222 = vadd.f32 %v5087, %v5221
          %v5223 = vpop.f32.mrf.mxu0
          %5224 = vmatprep.mubr.f32.mxu0 %v4214
          %5225 = vmatmul.mubr.f32.gmra.mxu0 %v4213
          %v5226 = vpop.f32.mrf.mxu0
          %v5227 = vadd.f32 %v5092, %v5226
          %v5228 = vpop.f32.mrf.mxu0
          %5229 = vmatprep.mubr.f32.mxu0 %v4224
          %5230 = vmatmul.mubr.f32.gmra.mxu0 %v4223
          %v5231 = vpop.f32.mrf.mxu0
          %v5232 = vadd.f32 %v5097, %v5231
          %v5233 = vpop.f32.mrf.mxu0
          %5234 = vmatprep.mubr.f32.mxu0 %v4234
          %5235 = vmatmul.mubr.f32.gmra.mxu0 %v4233
          %v5236 = vpop.f32.mrf.mxu0
          %v5237 = vadd.f32 %v5102, %v5236
          %v5238 = vpop.f32.mrf.mxu0
          %5239 = vmatprep.mubr.f32.mxu0 %v4244
          %5240 = vmatmul.mubr.f32.gmra.mxu0 %v4243
          %v5241 = vpop.f32.mrf.mxu0
          %v5242 = vadd.f32 %v5107, %v5241
          %v5243 = vpop.f32.mrf.mxu0
          %5244 = vmatprep.mubr.f32.mxu0 %v4254
          %5245 = vmatmul.mubr.f32.gmra.mxu0 %v4253
          %v5246 = vpop.f32.mrf.mxu0
          %v5247 = vadd.f32 %v5112, %v5246
          %v5248 = vpop.f32.mrf.mxu0
          %5249 = vdwg.mxu0
          %5250 = vmatprep.subr.mxu0 0.0
          %5251 = vmatpush1.xpose.msra.mxu0 0.0
          %5252 = vmatprep.subr.mxu0 0.0
          %5253 = vmatpush1.xpose.msra.mxu0 0.0
          %5254 = vmatprep.subr.mxu0 0.0
          %5255 = vmatpush1.xpose.msra.mxu0 0.0
          %5256 = vmatprep.subr.mxu0 0.0
          %5257 = vmatpush1.xpose.msra.mxu0 0.0
          %5258 = vmatprep.subr.mxu0 0.0
          %5259 = vmatpush1.xpose.msra.mxu0 0.0
          %5260 = vmatprep.subr.mxu0 0.0
          %5261 = vmatpush1.xpose.msra.mxu0 0.0
          %5262 = vmatprep.subr.mxu0 0.0
          %5263 = vmatpush1.xpose.msra.mxu0 0.0
          %5264 = vmatprep.subr.mxu0 0.0
          %5265 = vmatpush1.xpose.msra.mxu0 0.0
          %5266 = vmatprep.subr.mxu0 0.0
          %5267 = vmatpush1.xpose.msra.mxu0 0.0
          %5268 = vmatprep.subr.mxu0 0.0
          %5269 = vmatpush1.xpose.msra.mxu0 0.0
          %5270 = vmatprep.subr.mxu0 0.0
          %5271 = vmatpush1.xpose.msra.mxu0 0.0
          %5272 = vmatprep.subr.mxu0 0.0
          %5273 = vmatpush1.xpose.msra.mxu0 0.0
          %5274 = vmatprep.subr.mxu0 0.0
          %5275 = vmatpush1.xpose.msra.mxu0 0.0
          %5276 = vmatprep.subr.mxu0 0.0
          %5277 = vmatpush1.xpose.msra.mxu0 0.0
          %5278 = vmatprep.subr.mxu0 %v4794
          %5279 = vmatpush1.xpose.msra.mxu0 %v4793
          %5280 = vmatprep.subr.mxu0 %v4784
          %5281 = vmatpush1.xpose.msra.mxu0 %v4783
          %5282 = vmatprep.subr.mxu0 0.0
          %5283 = vmatpush2.xpose.msra.mxu0 0.0
          %5284 = vmatprep.subr.mxu0 0.0
          %5285 = vmatpush2.xpose.msra.mxu0 0.0
          %5286 = vmatprep.subr.mxu0 0.0
          %5287 = vmatpush2.xpose.msra.mxu0 0.0
          %5288 = vmatprep.subr.mxu0 0.0
          %5289 = vmatpush2.xpose.msra.mxu0 0.0
          %5290 = vmatprep.subr.mxu0 0.0
          %5291 = vmatpush2.xpose.msra.mxu0 0.0
          %5292 = vmatprep.subr.mxu0 0.0
          %5293 = vmatpush2.xpose.msra.mxu0 0.0
          %5294 = vmatprep.subr.mxu0 0.0
          %5295 = vmatpush2.xpose.msra.mxu0 0.0
          %5296 = vmatprep.subr.mxu0 0.0
          %5297 = vmatpush2.xpose.msra.mxu0 0.0
          %5298 = vmatprep.subr.mxu0 0.0
          %5299 = vmatpush2.xpose.msra.mxu0 0.0
          %5300 = vmatprep.subr.mxu0 0.0
          %5301 = vmatpush2.xpose.msra.mxu0 0.0
          %5302 = vmatprep.subr.mxu0 0.0
          %5303 = vmatpush2.xpose.msra.mxu0 0.0
          %5304 = vmatprep.subr.mxu0 0.0
          %5305 = vmatpush2.xpose.msra.mxu0 0.0
          %5306 = vmatprep.subr.mxu0 0.0
          %5307 = vmatpush2.xpose.msra.mxu0 0.0
          %5308 = vmatprep.subr.mxu0 0.0
          %5309 = vmatpush2.xpose.msra.mxu0 0.0
          %5310 = vmatprep.subr.mxu0 0.0
          %5311 = vmatpush2.xpose.msra.mxu0 0.0
          %5312 = vmatprep.subr.mxu0 0.0
          %5313 = vmatpush2.xpose.msra.mxu0 0.0
          %5314 = vmatprep.mubr.f32.mxu0 %v4126
          %5315 = vmatmul.mubr.f32.gmra.mxu0 %v4125
          %v5316 = vpop.f32.mrf.mxu0
          %v5317 = vadd.f32 %v5182, %v5316
          %v5318 = vpop.f32.mrf.mxu0
          %5319 = vmatprep.mubr.f32.mxu0 %v4136
          %5320 = vmatmul.mubr.f32.gmra.mxu0 %v4135
          %v5321 = vpop.f32.mrf.mxu0
          %v5322 = vadd.f32 %v5187, %v5321
          %v5323 = vpop.f32.mrf.mxu0
          %5324 = vmatprep.mubr.f32.mxu0 %v4146
          %5325 = vmatmul.mubr.f32.gmra.mxu0 %v4145
          %v5326 = vpop.f32.mrf.mxu0
          %v5327 = vadd.f32 %v5192, %v5326
          %v5328 = vpop.f32.mrf.mxu0
          %5329 = vmatprep.mubr.f32.mxu0 %v4156
          %5330 = vmatmul.mubr.f32.gmra.mxu0 %v4155
          %v5331 = vpop.f32.mrf.mxu0
          %v5332 = vadd.f32 %v5197, %v5331
          %v5333 = vpop.f32.mrf.mxu0
          %5334 = vmatprep.mubr.f32.mxu0 %v4166
          %5335 = vmatmul.mubr.f32.gmra.mxu0 %v4165
          %v5336 = vpop.f32.mrf.mxu0
          %v5337 = vadd.f32 %v5202, %v5336
          %v5338 = vpop.f32.mrf.mxu0
          %5339 = vmatprep.mubr.f32.mxu0 %v4176
          %5340 = vmatmul.mubr.f32.gmra.mxu0 %v4175
          %v5341 = vpop.f32.mrf.mxu0
          %v5342 = vadd.f32 %v5207, %v5341
          %v5343 = vpop.f32.mrf.mxu0
          %5344 = vmatprep.mubr.f32.mxu0 %v4186
          %5345 = vmatmul.mubr.f32.gmra.mxu0 %v4185
          %v5346 = vpop.f32.mrf.mxu0
          %v5347 = vadd.f32 %v5212, %v5346
          %v5348 = vpop.f32.mrf.mxu0
          %5349 = vmatprep.mubr.f32.mxu0 %v4196
          %5350 = vmatmul.mubr.f32.gmra.mxu0 %v4195
          %v5351 = vpop.f32.mrf.mxu0
          %v5352 = vadd.f32 %v5217, %v5351
          %v5353 = vpop.f32.mrf.mxu0
          %5354 = vmatprep.mubr.f32.mxu0 %v4206
          %5355 = vmatmul.mubr.f32.gmra.mxu0 %v4205
          %v5356 = vpop.f32.mrf.mxu0
          %v5357 = vadd.f32 %v5222, %v5356
          %v5358 = vpop.f32.mrf.mxu0
          %5359 = vmatprep.mubr.f32.mxu0 %v4216
          %5360 = vmatmul.mubr.f32.gmra.mxu0 %v4215
          %v5361 = vpop.f32.mrf.mxu0
          %v5362 = vadd.f32 %v5227, %v5361
          %v5363 = vpop.f32.mrf.mxu0
          %5364 = vmatprep.mubr.f32.mxu0 %v4226
          %5365 = vmatmul.mubr.f32.gmra.mxu0 %v4225
          %v5366 = vpop.f32.mrf.mxu0
          %v5367 = vadd.f32 %v5232, %v5366
          %v5368 = vpop.f32.mrf.mxu0
          %5369 = vmatprep.mubr.f32.mxu0 %v4236
          %5370 = vmatmul.mubr.f32.gmra.mxu0 %v4235
          %v5371 = vpop.f32.mrf.mxu0
          %v5372 = vadd.f32 %v5237, %v5371
          %v5373 = vpop.f32.mrf.mxu0
          %5374 = vmatprep.mubr.f32.mxu0 %v4246
          %5375 = vmatmul.mubr.f32.gmra.mxu0 %v4245
          %v5376 = vpop.f32.mrf.mxu0
          %v5377 = vadd.f32 %v5242, %v5376
          %v5378 = vpop.f32.mrf.mxu0
          %5379 = vmatprep.mubr.f32.mxu0 %v4256
          %5380 = vmatmul.mubr.f32.gmra.mxu0 %v4255
          %v5381 = vpop.f32.mrf.mxu0
          %v5382 = vadd.f32 %v5247, %v5381
          %v5383 = vpop.f32.mrf.mxu0
          %5384 = vdwg.mxu0
          %5385 = vmatprep.subr.mxu0 0.0
          %5386 = vmatpush1.xpose.msra.mxu0 0.0
          %5387 = vmatprep.subr.mxu0 0.0
          %5388 = vmatpush1.xpose.msra.mxu0 0.0
          %5389 = vmatprep.subr.mxu0 0.0
          %5390 = vmatpush1.xpose.msra.mxu0 0.0
          %5391 = vmatprep.subr.mxu0 0.0
          %5392 = vmatpush1.xpose.msra.mxu0 0.0
          %5393 = vmatprep.subr.mxu0 0.0
          %5394 = vmatpush1.xpose.msra.mxu0 0.0
          %5395 = vmatprep.subr.mxu0 0.0
          %5396 = vmatpush1.xpose.msra.mxu0 0.0
          %5397 = vmatprep.subr.mxu0 0.0
          %5398 = vmatpush1.xpose.msra.mxu0 0.0
          %5399 = vmatprep.subr.mxu0 0.0
          %5400 = vmatpush1.xpose.msra.mxu0 0.0
          %5401 = vmatprep.subr.mxu0 0.0
          %5402 = vmatpush1.xpose.msra.mxu0 0.0
          %5403 = vmatprep.subr.mxu0 0.0
          %5404 = vmatpush1.xpose.msra.mxu0 0.0
          %5405 = vmatprep.subr.mxu0 0.0
          %5406 = vmatpush1.xpose.msra.mxu0 0.0
          %5407 = vmatprep.subr.mxu0 0.0
          %5408 = vmatpush1.xpose.msra.mxu0 0.0
          %5409 = vmatprep.subr.mxu0 0.0
          %5410 = vmatpush1.xpose.msra.mxu0 0.0
          %5411 = vmatprep.subr.mxu0 0.0
          %5412 = vmatpush1.xpose.msra.mxu0 0.0
          %5413 = vmatprep.subr.mxu0 %v4843
          %5414 = vmatpush1.xpose.msra.mxu0 %v4795
          %5415 = vmatprep.subr.mxu0 %v4840
          %5416 = vmatpush1.xpose.msra.mxu0 %v4785
          %5417 = vmatprep.subr.mxu0 0.0
          %5418 = vmatpush2.xpose.msra.mxu0 0.0
          %5419 = vmatprep.subr.mxu0 0.0
          %5420 = vmatpush2.xpose.msra.mxu0 0.0
          %5421 = vmatprep.subr.mxu0 0.0
          %5422 = vmatpush2.xpose.msra.mxu0 0.0
          %5423 = vmatprep.subr.mxu0 0.0
          %5424 = vmatpush2.xpose.msra.mxu0 0.0
          %5425 = vmatprep.subr.mxu0 0.0
          %5426 = vmatpush2.xpose.msra.mxu0 0.0
          %5427 = vmatprep.subr.mxu0 0.0
          %5428 = vmatpush2.xpose.msra.mxu0 0.0
          %5429 = vmatprep.subr.mxu0 0.0
          %5430 = vmatpush2.xpose.msra.mxu0 0.0
          %5431 = vmatprep.subr.mxu0 0.0
          %5432 = vmatpush2.xpose.msra.mxu0 0.0
          %5433 = vmatprep.subr.mxu0 0.0
          %5434 = vmatpush2.xpose.msra.mxu0 0.0
          %5435 = vmatprep.subr.mxu0 0.0
          %5436 = vmatpush2.xpose.msra.mxu0 0.0
          %5437 = vmatprep.subr.mxu0 0.0
          %5438 = vmatpush2.xpose.msra.mxu0 0.0
          %5439 = vmatprep.subr.mxu0 0.0
          %5440 = vmatpush2.xpose.msra.mxu0 0.0
          %5441 = vmatprep.subr.mxu0 0.0
          %5442 = vmatpush2.xpose.msra.mxu0 0.0
          %5443 = vmatprep.subr.mxu0 0.0
          %5444 = vmatpush2.xpose.msra.mxu0 0.0
          %5445 = vmatprep.subr.mxu0 0.0
          %5446 = vmatpush2.xpose.msra.mxu0 0.0
          %5447 = vmatprep.subr.mxu0 0.0
          %5448 = vmatpush2.xpose.msra.mxu0 0.0
          %5449 = vmatprep.mubr.f32.mxu0 %v4798
          %5450 = vmatmul.mubr.f32.gmra.mxu0 %v4127
          %v5451 = vpop.f32.mrf.mxu0
          %v5452 = vadd.f32 %v5317, %v5451
          %v5453 = vpop.f32.mrf.mxu0
          %5454 = vmatprep.mubr.f32.mxu0 %v4801
          %5455 = vmatmul.mubr.f32.gmra.mxu0 %v4137
          %v5456 = vpop.f32.mrf.mxu0
          %v5457 = vadd.f32 %v5322, %v5456
          %v5458 = vpop.f32.mrf.mxu0
          %5459 = vmatprep.mubr.f32.mxu0 %v4804
          %5460 = vmatmul.mubr.f32.gmra.mxu0 %v4147
          %v5461 = vpop.f32.mrf.mxu0
          %v5462 = vadd.f32 %v5327, %v5461
          %v5463 = vpop.f32.mrf.mxu0
          %5464 = vmatprep.mubr.f32.mxu0 %v4807
          %5465 = vmatmul.mubr.f32.gmra.mxu0 %v4157
          %v5466 = vpop.f32.mrf.mxu0
          %v5467 = vadd.f32 %v5332, %v5466
          %v5468 = vpop.f32.mrf.mxu0
          %5469 = vmatprep.mubr.f32.mxu0 %v4810
          %5470 = vmatmul.mubr.f32.gmra.mxu0 %v4167
          %v5471 = vpop.f32.mrf.mxu0
          %v5472 = vadd.f32 %v5337, %v5471
          %v5473 = vpop.f32.mrf.mxu0
          %5474 = vmatprep.mubr.f32.mxu0 %v4813
          %5475 = vmatmul.mubr.f32.gmra.mxu0 %v4177
          %v5476 = vpop.f32.mrf.mxu0
          %v5477 = vadd.f32 %v5342, %v5476
          %v5478 = vpop.f32.mrf.mxu0
          %5479 = vmatprep.mubr.f32.mxu0 %v4816
          %5480 = vmatmul.mubr.f32.gmra.mxu0 %v4187
          %v5481 = vpop.f32.mrf.mxu0
          %v5482 = vadd.f32 %v5347, %v5481
          %v5483 = vpop.f32.mrf.mxu0
          %5484 = vmatprep.mubr.f32.mxu0 %v4819
          %5485 = vmatmul.mubr.f32.gmra.mxu0 %v4197
          %v5486 = vpop.f32.mrf.mxu0
          %v5487 = vadd.f32 %v5352, %v5486
          %v5488 = vpop.f32.mrf.mxu0
          %5489 = vmatprep.mubr.f32.mxu0 %v4822
          %5490 = vmatmul.mubr.f32.gmra.mxu0 %v4207
          %v5491 = vpop.f32.mrf.mxu0
          %v5492 = vadd.f32 %v5357, %v5491
          %v5493 = vpop.f32.mrf.mxu0
          %5494 = vmatprep.mubr.f32.mxu0 %v4825
          %5495 = vmatmul.mubr.f32.gmra.mxu0 %v4217
          %v5496 = vpop.f32.mrf.mxu0
          %v5497 = vadd.f32 %v5362, %v5496
          %v5498 = vpop.f32.mrf.mxu0
          %5499 = vmatprep.mubr.f32.mxu0 %v4828
          %5500 = vmatmul.mubr.f32.gmra.mxu0 %v4227
          %v5501 = vpop.f32.mrf.mxu0
          %v5502 = vadd.f32 %v5367, %v5501
          %v5503 = vpop.f32.mrf.mxu0
          %5504 = vmatprep.mubr.f32.mxu0 %v4831
          %5505 = vmatmul.mubr.f32.gmra.mxu0 %v4237
          %v5506 = vpop.f32.mrf.mxu0
          %v5507 = vadd.f32 %v5372, %v5506
          %v5508 = vpop.f32.mrf.mxu0
          %5509 = vmatprep.mubr.f32.mxu0 %v4834
          %5510 = vmatmul.mubr.f32.gmra.mxu0 %v4247
          %v5511 = vpop.f32.mrf.mxu0
          %v5512 = vadd.f32 %v5377, %v5511
          %v5513 = vpop.f32.mrf.mxu0
          %5514 = vmatprep.mubr.f32.mxu0 %v4837
          %5515 = vmatmul.mubr.f32.gmra.mxu0 %v4257
          %v5516 = vpop.f32.mrf.mxu0
          %v5517 = vadd.f32 %v5382, %v5516
          %v5518 = vpop.f32.mrf.mxu0
          %5519 = vdwg.mxu0
          %v5520 = vmul.f32 %v5452, %v4701
          %v5521 = vmul.f32 %v5457, %v4702
          %v5522 = vmul.f32 %v5462, %v4703
          %v5523 = vmul.f32 %v5467, %v4704
          %v5524 = vmul.f32 %v5472, %v4705
          %v5525 = vmul.f32 %v5477, %v4706
          %v5526 = vmul.f32 %v5482, %v4707
          %v5527 = vmul.f32 %v5487, %v4708
          %v5528 = vmul.f32 %v5492, %v4709
          %v5529 = vmul.f32 %v5497, %v4710
          %v5530 = vmul.f32 %v5502, %v4711
          %v5531 = vmul.f32 %v5507, %v4712
          %v5532 = vmul.f32 %v5512, %v4713
          %v5533 = vmul.f32 %v5517, %v4714
          %v5534 = vlaneseq
          %v5535 = vshrl.u32 %v5534, 7
          %v5536 = vadd.s32 %v5535, 8
          %v5537 = vadd.s32 %v5535, 16
          %v5538 = vadd.s32 %v5535, 24
          %v5539 = vadd.s32 %v5535, 32
          %v5540 = vadd.s32 %v5535, 40
          %v5541 = vadd.s32 %v5535, 48
          %v5542 = vadd.s32 %v5535, 56
          %v5543 = vadd.s32 %v5535, 64
          %v5544 = vadd.s32 %v5535, 72
          %v5545 = vadd.s32 %v5535, 80
          %v5546 = vadd.s32 %v5535, 88
          %v5547 = vadd.s32 %v5535, 96
          %v5548 = vadd.s32 %v5535, 104
          %v5549 = vlaneseq
          %v5550 = vand.u32 %v5549, 127
          %vm5551 = vcmp.eq.s32.totalorder %v5535, %v5550
          %vm5552 = vcmp.eq.s32.totalorder %v5536, %v5550
          %vm5553 = vcmp.eq.s32.totalorder %v5537, %v5550
          %vm5554 = vcmp.eq.s32.totalorder %v5538, %v5550
          %vm5555 = vcmp.eq.s32.totalorder %v5539, %v5550
          %vm5556 = vcmp.eq.s32.totalorder %v5540, %v5550
          %vm5557 = vcmp.eq.s32.totalorder %v5541, %v5550
          %vm5558 = vcmp.eq.s32.totalorder %v5542, %v5550
          %vm5559 = vcmp.eq.s32.totalorder %v5543, %v5550
          %vm5560 = vcmp.eq.s32.totalorder %v5544, %v5550
          %vm5561 = vcmp.eq.s32.totalorder %v5545, %v5550
          %vm5562 = vcmp.eq.s32.totalorder %v5546, %v5550
          %vm5563 = vcmp.eq.s32.totalorder %v5547, %v5550
          %vm5564 = vcmp.eq.s32.totalorder %v5548, %v5550
          %v5565 = vsel %vm5551, %v5520, 0.0
          %v5566 = vsel %vm5552, %v5521, 0.0
          %v5567 = vsel %vm5553, %v5522, 0.0
          %v5568 = vsel %vm5554, %v5523, 0.0
          %v5569 = vsel %vm5555, %v5524, 0.0
          %v5570 = vsel %vm5556, %v5525, 0.0
          %v5571 = vsel %vm5557, %v5526, 0.0
          %v5572 = vsel %vm5558, %v5527, 0.0
          %v5573 = vsel %vm5559, %v5528, 0.0
          %v5574 = vsel %vm5560, %v5529, 0.0
          %v5575 = vsel %vm5561, %v5530, 0.0
          %v5576 = vsel %vm5562, %v5531, 0.0
          %v5577 = vsel %vm5563, %v5532, 0.0
          %v5578 = vsel %vm5564, %v5533, 0.0
          %vm5579 = vcmask 130048
          %v5580 = vsel %vm5579, %v5565, 0.0
          %5581 = vadd.xlane.f32.xlu0 %v5580
          %v5582 = vpop.xlane.xlu0 %5581
          %v5583 = vsel %vm5579, %v5566, 0.0
          %5584 = vadd.xlane.f32.xlu0 %v5583
          %v5585 = vpop.xlane.xlu0 %5584
          %v5586 = vsel %vm5579, %v5567, 0.0
          %5587 = vadd.xlane.f32.xlu0 %v5586
          %v5588 = vpop.xlane.xlu0 %5587
          %v5589 = vsel %vm5579, %v5568, 0.0
          %5590 = vadd.xlane.f32.xlu0 %v5589
          %v5591 = vpop.xlane.xlu0 %5590
          %v5592 = vsel %vm5579, %v5569, 0.0
          %5593 = vadd.xlane.f32.xlu0 %v5592
          %v5594 = vpop.xlane.xlu0 %5593
          %v5595 = vsel %vm5579, %v5570, 0.0
          %5596 = vadd.xlane.f32.xlu0 %v5595
          %v5597 = vpop.xlane.xlu0 %5596
          %v5598 = vsel %vm5579, %v5571, 0.0
          %5599 = vadd.xlane.f32.xlu0 %v5598
          %v5600 = vpop.xlane.xlu0 %5599
          %v5601 = vsel %vm5579, %v5572, 0.0
          %5602 = vadd.xlane.f32.xlu0 %v5601
          %v5603 = vpop.xlane.xlu0 %5602
          %v5604 = vsel %vm5579, %v5573, 0.0
          %5605 = vadd.xlane.f32.xlu0 %v5604
          %v5606 = vpop.xlane.xlu0 %5605
          %v5607 = vsel %vm5579, %v5574, 0.0
          %5608 = vadd.xlane.f32.xlu0 %v5607
          %v5609 = vpop.xlane.xlu0 %5608
          %v5610 = vsel %vm5579, %v5575, 0.0
          %5611 = vadd.xlane.f32.xlu0 %v5610
          %v5612 = vpop.xlane.xlu0 %5611
          %v5613 = vsel %vm5579, %v5576, 0.0
          %5614 = vadd.xlane.f32.xlu0 %v5613
          %v5615 = vpop.xlane.xlu0 %5614
          %v5616 = vsel %vm5579, %v5577, 0.0
          %5617 = vadd.xlane.f32.xlu0 %v5616
          %v5618 = vpop.xlane.xlu0 %5617
          %v5619 = vsel %vm5579, %v5578, 0.0
          %5620 = vadd.xlane.f32.xlu0 %v5619
          %v5621 = vpop.xlane.xlu0 %5620
          %v5622 = vsub.f32 1.0, %v5582
          %v5623 = vsub.f32 1.0, %v5585
          %v5624 = vsub.f32 1.0, %v5588
          %v5625 = vsub.f32 1.0, %v5591
          %v5626 = vsub.f32 1.0, %v5594
          %v5627 = vsub.f32 1.0, %v5597
          %v5628 = vsub.f32 1.0, %v5600
          %v5629 = vsub.f32 1.0, %v5603
          %v5630 = vsub.f32 1.0, %v5606
          %v5631 = vsub.f32 1.0, %v5609
          %v5632 = vsub.f32 1.0, %v5612
          %v5633 = vsub.f32 1.0, %v5615
          %v5634 = vsub.f32 1.0, %v5618
          %v5635 = vsub.f32 1.0, %v5621
          %v5636 = vsub.f32 %v5520, 0.2
          %v5637 = vsub.f32 %v5521, 0.2
          %v5638 = vsub.f32 %v5522, 0.2
          %v5639 = vsub.f32 %v5523, 0.2
          %v5640 = vsub.f32 %v5524, 0.2
          %v5641 = vsub.f32 %v5525, 0.2
          %v5642 = vsub.f32 %v5526, 0.2
          %v5643 = vsub.f32 %v5527, 0.2
          %v5644 = vsub.f32 %v5528, 0.2
          %v5645 = vsub.f32 %v5529, 0.2
          %v5646 = vsub.f32 %v5530, 0.2
          %v5647 = vsub.f32 %v5531, 0.2
          %v5648 = vsub.f32 %v5532, 0.2
          %v5649 = vsub.f32 %v5533, 0.2
          %v5650 = vmax.f32 %v5636, 0.0
          %v5651 = vmax.f32 %v5637, 0.0
          %v5652 = vmax.f32 %v5638, 0.0
          %v5653 = vmax.f32 %v5639, 0.0
          %v5654 = vmax.f32 %v5640, 0.0
          %v5655 = vmax.f32 %v5641, 0.0
          %v5656 = vmax.f32 %v5642, 0.0
          %v5657 = vmax.f32 %v5643, 0.0
          %v5658 = vmax.f32 %v5644, 0.0
          %v5659 = vmax.f32 %v5645, 0.0
          %v5660 = vmax.f32 %v5646, 0.0
          %v5661 = vmax.f32 %v5647, 0.0
          %v5662 = vmax.f32 %v5648, 0.0
          %v5663 = vmax.f32 %v5649, 0.0
          %v5664 = vsel %vm5579, %v5650, 0.0
          %5665 = vadd.xlane.f32.xlu0 %v5664
          %v5666 = vpop.xlane.xlu0 %5665
          %v5667 = vsel %vm5579, %v5651, 0.0
          %5668 = vadd.xlane.f32.xlu0 %v5667
          %v5669 = vpop.xlane.xlu0 %5668
          %v5670 = vsel %vm5579, %v5652, 0.0
          %5671 = vadd.xlane.f32.xlu0 %v5670
          %v5672 = vpop.xlane.xlu0 %5671
          %v5673 = vsel %vm5579, %v5653, 0.0
          %5674 = vadd.xlane.f32.xlu0 %v5673
          %v5675 = vpop.xlane.xlu0 %5674
          %v5676 = vsel %vm5579, %v5654, 0.0
          %5677 = vadd.xlane.f32.xlu0 %v5676
          %v5678 = vpop.xlane.xlu0 %5677
          %v5679 = vsel %vm5579, %v5655, 0.0
          %5680 = vadd.xlane.f32.xlu0 %v5679
          %v5681 = vpop.xlane.xlu0 %5680
          %v5682 = vsel %vm5579, %v5656, 0.0
          %5683 = vadd.xlane.f32.xlu0 %v5682
          %v5684 = vpop.xlane.xlu0 %5683
          %v5685 = vsel %vm5579, %v5657, 0.0
          %5686 = vadd.xlane.f32.xlu0 %v5685
          %v5687 = vpop.xlane.xlu0 %5686
          %v5688 = vsel %vm5579, %v5658, 0.0
          %5689 = vadd.xlane.f32.xlu0 %v5688
          %v5690 = vpop.xlane.xlu0 %5689
          %v5691 = vsel %vm5579, %v5659, 0.0
          %5692 = vadd.xlane.f32.xlu0 %v5691
          %v5693 = vpop.xlane.xlu0 %5692
          %v5694 = vsel %vm5579, %v5660, 0.0
          %5695 = vadd.xlane.f32.xlu0 %v5694
          %v5696 = vpop.xlane.xlu0 %5695
          %v5697 = vsel %vm5579, %v5661, 0.0
          %5698 = vadd.xlane.f32.xlu0 %v5697
          %v5699 = vpop.xlane.xlu0 %5698
          %v5700 = vsel %vm5579, %v5662, 0.0
          %5701 = vadd.xlane.f32.xlu0 %v5700
          %v5702 = vpop.xlane.xlu0 %5701
          %v5703 = vsel %vm5579, %v5663, 0.0
          %5704 = vadd.xlane.f32.xlu0 %v5703
          %v5705 = vpop.xlane.xlu0 %5704
          %v5706 = vsub.f32 %v5666, 0.2
          %v5707 = vsub.f32 %v5669, 0.2
          %v5708 = vsub.f32 %v5672, 0.2
          %v5709 = vsub.f32 %v5675, 0.2
          %v5710 = vsub.f32 %v5678, 0.2
          %v5711 = vsub.f32 %v5681, 0.2
          %v5712 = vsub.f32 %v5684, 0.2
          %v5713 = vsub.f32 %v5687, 0.2
          %v5714 = vsub.f32 %v5690, 0.2
          %v5715 = vsub.f32 %v5693, 0.2
          %v5716 = vsub.f32 %v5696, 0.2
          %v5717 = vsub.f32 %v5699, 0.2
          %v5718 = vsub.f32 %v5702, 0.2
          %v5719 = vsub.f32 %v5705, 0.2
          %vm5720 = vcmp.lt.s32.totalorder %v5535, 16
          %vm5721 = vcmp.lt.s32.totalorder %v5536, 16
          %vm5722 = vcmp.lt.s32.totalorder %v5537, 16
          %vm5723 = vcmp.lt.s32.totalorder %v5538, 16
          %vm5724 = vcmp.lt.s32.totalorder %v5539, 16
          %vm5725 = vcmp.lt.s32.totalorder %v5540, 16
          %vm5726 = vcmp.lt.s32.totalorder %v5541, 16
          %vm5727 = vcmp.lt.s32.totalorder %v5542, 16
          %vm5728 = vcmp.lt.s32.totalorder %v5543, 16
          %vm5729 = vcmp.lt.s32.totalorder %v5544, 16
          %vm5730 = vcmp.lt.s32.totalorder %v5545, 16
          %vm5731 = vcmp.lt.s32.totalorder %v5546, 16
          %vm5732 = vcmp.lt.s32.totalorder %v5547, 16
          %vm5733 = vcmp.lt.s32.totalorder %v5548, 16
          %v5734 = vadd.f32 %v5622, %v5706
          %v5735 = vadd.f32 %v5623, %v5707
          %v5736 = vadd.f32 %v5624, %v5708
          %v5737 = vadd.f32 %v5625, %v5709
          %v5738 = vadd.f32 %v5626, %v5710
          %v5739 = vadd.f32 %v5627, %v5711
          %v5740 = vadd.f32 %v5628, %v5712
          %v5741 = vadd.f32 %v5629, %v5713
          %v5742 = vadd.f32 %v5630, %v5714
          %v5743 = vadd.f32 %v5631, %v5715
          %v5744 = vadd.f32 %v5632, %v5716
          %v5745 = vadd.f32 %v5633, %v5717
          %v5746 = vadd.f32 %v5634, %v5718
          %v5747 = vadd.f32 %v5635, %v5719
          %v5748 = vsel %vm5720, %v5734, 0.0
          %v5749 = vsel %vm5721, %v5735, 0.0
          %v5750 = vsel %vm5722, %v5736, 0.0
          %v5751 = vsel %vm5723, %v5737, 0.0
          %v5752 = vsel %vm5724, %v5738, 0.0
          %v5753 = vsel %vm5725, %v5739, 0.0
          %v5754 = vsel %vm5726, %v5740, 0.0
          %v5755 = vsel %vm5727, %v5741, 0.0
          %v5756 = vsel %vm5728, %v5742, 0.0
          %v5757 = vsel %vm5729, %v5743, 0.0
          %v5758 = vsel %vm5730, %v5744, 0.0
          %v5759 = vsel %vm5731, %v5745, 0.0
          %v5760 = vsel %vm5732, %v5746, 0.0
          %v5761 = vsel %vm5733, %v5747, 0.0
          %vm5762 = vcmask 7168
          %v5763 = vsel %vm5762, %v5748, 0.0
          %v5764 = vsel %vm5762, %v5749, 0.0
          %v5765 = vadd.f32 %v5763, %v5764
          %v5766 = vsel %vm5762, %v5750, 0.0
          %v5767 = vadd.f32 %v5765, %v5766
          %v5768 = vsel %vm5762, %v5751, 0.0
          %v5769 = vadd.f32 %v5767, %v5768
          %v5770 = vsel %vm5762, %v5752, 0.0
          %v5771 = vadd.f32 %v5769, %v5770
          %v5772 = vsel %vm5762, %v5753, 0.0
          %v5773 = vadd.f32 %v5771, %v5772
          %v5774 = vsel %vm5762, %v5754, 0.0
          %v5775 = vadd.f32 %v5773, %v5774
          %v5776 = vsel %vm5762, %v5755, 0.0
          %v5777 = vadd.f32 %v5775, %v5776
          %v5778 = vsel %vm5762, %v5756, 0.0
          %v5779 = vadd.f32 %v5777, %v5778
          %v5780 = vsel %vm5762, %v5757, 0.0
          %v5781 = vadd.f32 %v5779, %v5780
          %v5782 = vsel %vm5762, %v5758, 0.0
          %v5783 = vadd.f32 %v5781, %v5782
          %v5784 = vsel %vm5762, %v5759, 0.0
          %v5785 = vadd.f32 %v5783, %v5784
          %v5786 = vsel %vm5762, %v5760, 0.0
          %v5787 = vadd.f32 %v5785, %v5786
          %v5788 = vsel %vm5762, %v5761, 0.0
          %v5789 = vadd.f32 %v5787, %v5788
          %5790 = vadd.xlane.f32.xlu0 %v5789
          %v5791 = vpop.xlane.xlu0 %5790
          %v5792 = vrot.slane %v5791, 4
          %v5793 = vadd.f32 %v5791, %v5792
          %v5794 = vrot.slane %v5793, 2
          %v5795 = vadd.f32 %v5793, %v5794
          %v5796 = vrot.slane %v5795, 1
          %v5797 = vadd.f32 %v5795, %v5796
          %s5798 = vtos %v5797
          %s5799 = smul.f32 %s5798, 0.0625
          %v5800 = vmax.f32 %v4259, %v4261
          %v5801 = vmax.f32 %v4260, %v4262
          %v5802 = vmax.f32 %v5800, %v4263
          %v5803 = vmax.f32 %v5801, %v4264
          %v5804 = vmax.f32 %v5802, %v4265
          %v5805 = vmax.f32 %v5803, %v4266
          %v5806 = vmax.f32 %v5804, %v4267
          %v5807 = vsel %vm3789, %v4268, -inf
          %v5808 = vmax.f32 %v5805, %v5807
          %v5809 = vmax.f32 %v5806, %v5808
          %5810 = vmax.xlane.f32.xlu0 %v5809
          %v5811 = vpop.xlane.xlu0 %5810
          %v5812 = vmax.f32 %v4269, %v4271
          %v5813 = vmax.f32 %v4270, %v4272
          %v5814 = vmax.f32 %v5812, %v4273
          %v5815 = vmax.f32 %v5813, %v4274
          %v5816 = vmax.f32 %v5814, %v4275
          %v5817 = vmax.f32 %v5815, %v4276
          %v5818 = vmax.f32 %v5816, %v4277
          %v5819 = vsel %vm3789, %v4278, -inf
          %v5820 = vmax.f32 %v5817, %v5819
          %v5821 = vmax.f32 %v5818, %v5820
          %5822 = vmax.xlane.f32.xlu0 %v5821
          %v5823 = vpop.xlane.xlu0 %5822
          %v5824 = vsub.f32 %v4259, %v5811
          %v5825 = vsub.f32 %v4260, %v5811
          %v5826 = vsub.f32 %v4261, %v5811
          %v5827 = vsub.f32 %v4262, %v5811
          %v5828 = vsub.f32 %v4263, %v5811
          %v5829 = vsub.f32 %v4264, %v5811
          %v5830 = vsub.f32 %v4265, %v5811
          %v5831 = vsub.f32 %v4266, %v5811
          %v5832 = vsub.f32 %v4267, %v5811
          %v5833 = vsub.f32 %v4268, %v5811
          %v5834 = vsub.f32 %v4269, %v5823
          %v5835 = vsub.f32 %v4270, %v5823
          %v5836 = vsub.f32 %v4271, %v5823
          %v5837 = vsub.f32 %v4272, %v5823
          %v5838 = vsub.f32 %v4273, %v5823
          %v5839 = vsub.f32 %v4274, %v5823
          %v5840 = vsub.f32 %v4275, %v5823
          %v5841 = vsub.f32 %v4276, %v5823
          %v5842 = vsub.f32 %v4277, %v5823
          %v5843 = vsub.f32 %v4278, %v5823
          %v5844 = vmul.f32 %v5824, 1.442695
          %v5845 = vpow.pop %v5844
          %v5846 = vmul.f32 %v5825, 1.442695
          %v5847 = vpow.pop %v5846
          %v5848 = vmul.f32 %v5826, 1.442695
          %v5849 = vpow.pop %v5848
          %v5850 = vmul.f32 %v5827, 1.442695
          %v5851 = vpow.pop %v5850
          %v5852 = vmul.f32 %v5828, 1.442695
          %v5853 = vpow.pop %v5852
          %v5854 = vmul.f32 %v5829, 1.442695
          %v5855 = vpow.pop %v5854
          %v5856 = vmul.f32 %v5830, 1.442695
          %v5857 = vpow.pop %v5856
          %v5858 = vmul.f32 %v5831, 1.442695
          %v5859 = vpow.pop %v5858
          %v5860 = vmul.f32 %v5832, 1.442695
          %v5861 = vpow.pop %v5860
          %v5862 = vmul.f32 %v5833, 1.442695
          %v5863 = vpow.pop %v5862
          %v5864 = vmul.f32 %v5834, 1.442695
          %v5865 = vpow.pop %v5864
          %v5866 = vmul.f32 %v5835, 1.442695
          %v5867 = vpow.pop %v5866
          %v5868 = vmul.f32 %v5836, 1.442695
          %v5869 = vpow.pop %v5868
          %v5870 = vmul.f32 %v5837, 1.442695
          %v5871 = vpow.pop %v5870
          %v5872 = vmul.f32 %v5838, 1.442695
          %v5873 = vpow.pop %v5872
          %v5874 = vmul.f32 %v5839, 1.442695
          %v5875 = vpow.pop %v5874
          %v5876 = vmul.f32 %v5840, 1.442695
          %v5877 = vpow.pop %v5876
          %v5878 = vmul.f32 %v5841, 1.442695
          %v5879 = vpow.pop %v5878
          %v5880 = vmul.f32 %v5842, 1.442695
          %v5881 = vpow.pop %v5880
          %v5882 = vmul.f32 %v5843, 1.442695
          %v5883 = vpow.pop %v5882
          %v5884 = vadd.f32 %v5845, %v5847
          %v5885 = vadd.f32 %v5884, %v5849
          %v5886 = vadd.f32 %v5885, %v5851
          %v5887 = vadd.f32 %v5886, %v5853
          %v5888 = vadd.f32 %v5887, %v5855
          %v5889 = vadd.f32 %v5888, %v5857
          %v5890 = vadd.f32 %v5889, %v5859
          %v5891 = vadd.f32 %v5890, %v5861
          %v5892 = vsel %vm3789, %v5863, 0.0
          %v5893 = vadd.f32 %v5891, %v5892
          %5894 = vadd.xlane.f32.xlu0 %v5893
          %v5895 = vpop.xlane.xlu0 %5894
          %v5896 = vadd.f32 %v5865, %v5867
          %v5897 = vadd.f32 %v5896, %v5869
          %v5898 = vadd.f32 %v5897, %v5871
          %v5899 = vadd.f32 %v5898, %v5873
          %v5900 = vadd.f32 %v5899, %v5875
          %v5901 = vadd.f32 %v5900, %v5877
          %v5902 = vadd.f32 %v5901, %v5879
          %v5903 = vadd.f32 %v5902, %v5881
          %v5904 = vsel %vm3789, %v5883, 0.0
          %v5905 = vadd.f32 %v5903, %v5904
          %5906 = vadd.xlane.f32.xlu0 %v5905
          %v5907 = vpop.xlane.xlu0 %5906
          %v5908 = vlog2.pop %v5895
          %v5909 = vmul.f32 %v5908, 0.6931472
          %v5910 = vlog2.pop %v5907
          %v5911 = vmul.f32 %v5910, 0.6931472
          %v5912 = vadd.f32 %v5909, %v5811
          %v5913 = vadd.f32 %v5911, %v5823
          %v5914 = vadd.s32 %v5550, 128
          %v5915 = vadd.s32 %v5550, 256
          %v5916 = vadd.s32 %v5550, 384
          %v5917 = vadd.s32 %v5550, 512
          %v5918 = vadd.s32 %v5550, 640
          %v5919 = vadd.s32 %v5550, 768
          %v5920 = vadd.s32 %v5550, 896
          %v5921 = vadd.s32 %v5550, 1024
          %v5922 = vadd.s32 %v5550, 1152
          %5923 = vset.pattern.permute.xlu0 0
          %5924 = vperm.xlu0 %5923, %v4279
          %v5925 = vpop.permute.xlu0 %5924
          %5926 = vset.pattern.permute.xlu0 0
          %5927 = vperm.xlu0 %5926, %v4280
          %v5928 = vpop.permute.xlu0 %5927
          %vm5929 = vcmp.eq.s32.totalorder %v5550, %v5925
          %vm5930 = vcmp.eq.s32.totalorder %v5914, %v5925
          %vm5931 = vcmp.eq.s32.totalorder %v5915, %v5925
          %vm5932 = vcmp.eq.s32.totalorder %v5916, %v5925
          %vm5933 = vcmp.eq.s32.totalorder %v5917, %v5925
          %vm5934 = vcmp.eq.s32.totalorder %v5918, %v5925
          %vm5935 = vcmp.eq.s32.totalorder %v5919, %v5925
          %vm5936 = vcmp.eq.s32.totalorder %v5920, %v5925
          %vm5937 = vcmp.eq.s32.totalorder %v5921, %v5925
          %vm5938 = vcmp.eq.s32.totalorder %v5922, %v5925
          %vm5939 = vcmp.eq.s32.totalorder %v5550, %v5928
          %vm5940 = vcmp.eq.s32.totalorder %v5914, %v5928
          %vm5941 = vcmp.eq.s32.totalorder %v5915, %v5928
          %vm5942 = vcmp.eq.s32.totalorder %v5916, %v5928
          %vm5943 = vcmp.eq.s32.totalorder %v5917, %v5928
          %vm5944 = vcmp.eq.s32.totalorder %v5918, %v5928
          %vm5945 = vcmp.eq.s32.totalorder %v5919, %v5928
          %vm5946 = vcmp.eq.s32.totalorder %v5920, %v5928
          %vm5947 = vcmp.eq.s32.totalorder %v5921, %v5928
          %vm5948 = vcmp.eq.s32.totalorder %v5922, %v5928
          %v5949 = vsel %vm5929, %v4259, 0.0
          %v5950 = vsel %vm5930, %v4260, 0.0
          %v5951 = vsel %vm5931, %v4261, 0.0
          %v5952 = vsel %vm5932, %v4262, 0.0
          %v5953 = vsel %vm5933, %v4263, 0.0
          %v5954 = vsel %vm5934, %v4264, 0.0
          %v5955 = vsel %vm5935, %v4265, 0.0
          %v5956 = vsel %vm5936, %v4266, 0.0
          %v5957 = vsel %vm5937, %v4267, 0.0
          %v5958 = vsel %vm5938, %v4268, 0.0
          %v5959 = vsel %vm5939, %v4269, 0.0
          %v5960 = vsel %vm5940, %v4270, 0.0
          %v5961 = vsel %vm5941, %v4271, 0.0
          %v5962 = vsel %vm5942, %v4272, 0.0
          %v5963 = vsel %vm5943, %v4273, 0.0
          %v5964 = vsel %vm5944, %v4274, 0.0
          %v5965 = vsel %vm5945, %v4275, 0.0
          %v5966 = vsel %vm5946, %v4276, 0.0
          %v5967 = vsel %vm5947, %v4277, 0.0
          %v5968 = vsel %vm5948, %v4278, 0.0
          %v5969 = vadd.f32 %v5949, %v5950
          %v5970 = vadd.f32 %v5969, %v5951
          %v5971 = vadd.f32 %v5970, %v5952
          %v5972 = vadd.f32 %v5971, %v5953
          %v5973 = vadd.f32 %v5972, %v5954
          %v5974 = vadd.f32 %v5973, %v5955
          %v5975 = vadd.f32 %v5974, %v5956
          %v5976 = vadd.f32 %v5975, %v5957
          %v5977 = vsel %vm3789, %v5958, 0.0
          %v5978 = vadd.f32 %v5976, %v5977
          %5979 = vadd.xlane.f32.xlu0 %v5978
          %v5980 = vpop.xlane.xlu0 %5979
          %v5981 = vadd.f32 %v5959, %v5960
          %v5982 = vadd.f32 %v5981, %v5961
          %v5983 = vadd.f32 %v5982, %v5962
          %v5984 = vadd.f32 %v5983, %v5963
          %v5985 = vadd.f32 %v5984, %v5964
          %v5986 = vadd.f32 %v5985, %v5965
          %v5987 = vadd.f32 %v5986, %v5966
          %v5988 = vadd.f32 %v5987, %v5967
          %v5989 = vsel %vm3789, %v5968, 0.0
          %v5990 = vadd.f32 %v5988, %v5989
          %5991 = vadd.xlane.f32.xlu0 %v5990
          %v5992 = vpop.xlane.xlu0 %5991
          %v5993 = vsub.f32 %v5912, %v5980
          %v5994 = vsub.f32 %v5913, %v5992
          %v5995 = vsel %vm5762, %v5993, 0.0
          %v5996 = vsel %vm5762, %v5994, 0.0
          %v5997 = vadd.f32 %v5995, %v5996
          %5998 = vadd.xlane.f32.xlu0 %v5997
          %v5999 = vpop.xlane.xlu0 %5998
          %v6000 = vrot.slane %v5999, 4
          %v6001 = vadd.f32 %v5999, %v6000
          %v6002 = vrot.slane %v6001, 2
          %v6003 = vadd.f32 %v6001, %v6002
          %v6004 = vrot.slane %v6003, 1
          %v6005 = vadd.f32 %v6003, %v6004
          %s6006 = vtos %v6005
          %s6007 = smul.f32 %s6006, 0.0625
          %s6008 = sld [smem:[#allocation3]]
          %s6009 = smul.f32 %s6008, %s5799
          %s6010 = sld [smem:[#allocation4]]
          %s6011 = smul.f32 %s6010, %s6007
          %s6012 = sadd.f32 %s6009, %s6011
          %s6013 = scalar_lea.smem [#allocation13], 0
          %6014 = sst [smem:[%s6013]] %s6012
        $region72: #{tpu_custom_call.1} parent=47 // pred_fallthru
          _
        // Predicated region
        $region73: #{tpu_custom_call.1} parent=47 // pred_check
          %p6015 = pneg %p198
        $region74: #{tpu_custom_call.1} parent=47 // pred_check_branch
          %6017 = sbr.rel (%p6015) target = $region76
        $region75: #{tpu_custom_call.1} parent=47 // pred_region
          %s6019 = ssub.s32 16, 16
          %6020 = vsyncadd [#allocation7], %s6019
          %6023 = dma.smem_to_hbm [#allocation13], 16, %s7, [#allocation7]
        $region76: #{tpu_custom_call.1} parent=47 // pred_fallthru
          _
        // Predicated region
        $region77: #{tpu_custom_call.1} parent=47 // pred_check
          %p6024 = pneg %p198
        $region78: #{tpu_custom_call.1} parent=47 // pred_check_branch
          %6026 = sbr.rel (%p6024) target = $region80
        $region79: #{tpu_custom_call.1} parent=47 // pred_region
          %6027 = dma.done [#allocation7], 16
        $region80: #{tpu_custom_call.1} parent=47 // pred_fallthru
          _
        %6028 = sfence
      $region48: #{tpu_custom_call.1} parent=5 // pred_fallthru
        _
      %p6029 = scmp.le.s32.totalorder 2, %s23
      // Predicated region
      $region81: #{tpu_custom_call.1} parent=5 // pred_check
        %p6030 = pneg %p6029
      $region82: #{tpu_custom_call.1} parent=5 // pred_check_branch
        %6032 = sbr.rel (%p6030) target = $region84
      $region83: #{tpu_custom_call.1} parent=5 // pred_region
        %s6033 = ssub.s32 %s23, 2
      $region84: #{tpu_custom_call.1} parent=5 // pred_fallthru
        _
    $region6: #{tpu_custom_call.1} parent=1 // loop_footer
      %s27 = sadd.s32 1, %s23
    $region7: #{tpu_custom_call.1} parent=1 // loop_footer_branch
      %22 = sbr.rel target = $region3
    $region8: #{tpu_custom_call.1} parent=1 // loop_exit
      _
    %6034 = vsyncpa [#allocation6], 1
    %s6035 = scalar_lea.sflag [#allocation6], 1
    %6036 = vsyncpa %s6035, 1
    %6037 = vsyncpa [#allocation9], 1
    %s6038 = scalar_lea.sflag [#allocation9], 1
    %6039 = vsyncpa %s6038, 1
    %6040 = vsyncpa [#allocation12], 1
    %6041 = vsyncpa [#allocation7], 1
    %s6042 = scalar_lea.sflag [#allocation7], 1
    %6043 = vsyncpa %s6042, 1

</llo_original>
